<compile_context>
chip_gen: v7x
topology: tpu7x:2x2x1
jax: 0.10.0
libtpu: 0.0.40
codegen_flags: <defaults>
</compile_context>

<pallas_src>
import functools

import jax
import jax.numpy as jnp
from jax.experimental import pallas as pl
from jax.experimental.pallas import tpu as pltpu


def _round_up(x, m):
    return (x + m - 1) // m * m


def _compute_ssim_map(x_ref, y_ref, colb_ref, rowb_ref, c1, c2, win_size):
    """Returns the SSIM map on the lane/sublane-padded (Ho_pad, Wo_pad) grid."""
    x = x_ref[0].astype(jnp.float32)          # (H, W)
    y = y_ref[0].astype(jnp.float32)          # (H, W)
    H, _ = x.shape
    col_band = colb_ref[...]                  # (W, Wo_pad), carries 1/win^2
    row_band = rowb_ref[...]                  # (Ho_pad, H), 0/1

    # Stack the 5 operand maps along the M (sublane) axis -> one MXU push for
    # the whole column pass.
    slab = jnp.concatenate([x, y, x * x, y * y, x * y], axis=0)   # (5H, W)

    col = jax.lax.dot_general(
        slab, col_band, (((1,), (0,)), ((), ())),
        precision=jax.lax.Precision.HIGHEST,
        preferred_element_type=jnp.float32)                       # (5H, Wo_pad)

    def row_pass(m):
        a = col[m * H:(m + 1) * H, :]                             # (H, Wo_pad)
        return jax.lax.dot_general(
            row_band, a, (((1,), (0,)), ((), ())),
            precision=jax.lax.Precision.HIGHEST,
            preferred_element_type=jnp.float32)                   # (Ho_pad, Wo_pad)

    ux, uy, uxx, uyy, uxy = [row_pass(m) for m in range(5)]

    np_ = float(win_size * win_size)
    cov_norm = np_ / (np_ - 1.0)
    vx = cov_norm * (uxx - ux * ux)
    vy = cov_norm * (uyy - uy * uy)
    vxy = cov_norm * (uxy - ux * uy)

    a1 = 2.0 * ux * uy + c1
    a2 = 2.0 * vxy + c2
    b1 = ux * ux + uy * uy + c1
    b2 = vx + vy + c2
    return (a1 * a2) / (b1 * b2)              # (Ho_pad, Wo_pad)


def _ssim_sum_kernel(dr_ref, x_ref, y_ref, colb_ref, rowb_ref, ssum_ref, *,
                     win_size, k1, k2, ho, wo):
    n = pl.program_id(0)
    dr = dr_ref[n]
    c1 = (k1 * dr) ** 2
    c2 = (k2 * dr) ** 2
    s = _compute_ssim_map(x_ref, y_ref, colb_ref, rowb_ref, c1, c2, win_size)
    ho_pad, wo_pad = s.shape
    r = jax.lax.broadcasted_iota(jnp.int32, (ho_pad, wo_pad), 0)
    c = jax.lax.broadcasted_iota(jnp.int32, (ho_pad, wo_pad), 1)
    valid = (r < ho) & (c < wo)
    ssum_ref[...] = jnp.sum(jnp.where(valid, s, 0.0)).reshape(1, 1, 1)


def _ssim_map_kernel(dr_ref, x_ref, y_ref, colb_ref, rowb_ref, s_ref, *,
                     win_size, k1, k2):
    n = pl.program_id(0)
    dr = dr_ref[n]
    c1 = (k1 * dr) ** 2
    c2 = (k2 * dr) ** 2
    # Lane-dense store of the padded map; wrapper crops the halo.
    s_ref[0] = _compute_ssim_map(x_ref, y_ref, colb_ref, rowb_ref,
                                 c1, c2, win_size)


def _make_bands(H, W, win_size):
    """Static banded matrices implementing the 'valid' box filter."""
    Ho = H - win_size + 1
    Wo = W - win_size + 1
    Ho_pad = _round_up(Ho, 8)
    Wo_pad = _round_up(Wo, 128)
    inv_np = 1.0 / float(win_size * win_size)

    w_idx = jnp.arange(W)[:, None]                 # (W, 1)
    c_idx = jnp.arange(Wo_pad)[None, :]            # (1, Wo_pad)
    col_band = ((c_idx < Wo) & (w_idx >= c_idx) &
                (w_idx < c_idx + win_size)).astype(jnp.float32) * inv_np

    r_idx = jnp.arange(Ho_pad)[:, None]            # (Ho_pad, 1)
    h_idx = jnp.arange(H)[None, :]                 # (1, H)
    row_band = ((r_idx < Ho) & (h_idx >= r_idx) &
                (h_idx < r_idx + win_size)).astype(jnp.float32)
    return col_band, row_band, Ho, Wo, Ho_pad, Wo_pad


def ssim_loss_pallas(X, Y, data_range, reduced=True,
                     win_size=11, k1=0.01, k2=0.03):
    """X, Y: (N, 1, H, W) float; data_range: (N,) float. Matches SSIMLoss.forward."""
    N, C, H, W = X.shape
    assert C == 1, "SSIMLoss conv weight is (1,1,win,win) -> single channel"
    assert win_size > 1, "cov_norm divides by win_size**2 - 1"

    col_band, row_band, Ho, Wo, Ho_pad, Wo_pad = _make_bands(H, W, win_size)

    # Keep the caller dtype for the HBM->VMEM DMA; cast to f32 inside kernel.
    x = X.reshape(N, H, W)
    y = Y.reshape(N, H, W)
    dr = data_range.astype(jnp.float32)

    in_specs = [
        pl.BlockSpec(memory_space=pltpu.MemorySpace.SMEM),         # data_range
        pl.BlockSpec((1, H, W), lambda n: (n, 0, 0)),              # X
        pl.BlockSpec((1, H, W), lambda n: (n, 0, 0)),              # Y
        pl.BlockSpec((W, Wo_pad), lambda n: (0, 0)),               # column band
        pl.BlockSpec((Ho_pad, H), lambda n: (0, 0)),               # row band
    ]

    itemsize = jnp.dtype(x.dtype).itemsize
    flops_per_img = (2 * 5 * H * W * Wo_pad            # column band matmul
                     + 2 * 5 * Ho_pad * H * Wo_pad     # row band matmuls
                     + 30 * Ho_pad * Wo_pad            # SSIM elementwise
                     + 3 * H * W)                      # xx / yy / xy
    bytes_in = 2 * N * H * W * itemsize + (W * Wo_pad + Ho_pad * H) * 4 + N * 4
    bytes_out = N * 4 if reduced else N * Ho_pad * Wo_pad * 4
    cost = pl.CostEstimate(flops=int(N * flops_per_img), transcendentals=0,
                           bytes_accessed=int(bytes_in + bytes_out))

    compiler_params = pltpu.CompilerParams(
        dimension_semantics=("parallel",))

    if reduced:
        # Sum-only kernel: never write the SSIM map back to HBM.
        kernel = functools.partial(_ssim_sum_kernel, win_size=win_size,
                                   k1=k1, k2=k2, ho=Ho, wo=Wo)
        s_sum = pl.pallas_call(
            kernel,
            out_shape=jax.ShapeDtypeStruct((N, 1, 1), jnp.float32),
            grid=(N,),
            in_specs=in_specs,
            out_specs=pl.BlockSpec((1, 1, 1), lambda n: (n, 0, 0)),
            compiler_params=compiler_params,
            cost_estimate=cost,
        )(dr, x, y, col_band, row_band)
        return 1.0 - jnp.sum(s_sum) / (N * Ho * Wo)
    else:
        # Lane-dense padded map output; crop in the wrapper.
        kernel = functools.partial(_ssim_map_kernel, win_size=win_size,
                                   k1=k1, k2=k2)
        s_map = pl.pallas_call(
            kernel,
            out_shape=jax.ShapeDtypeStruct((N, Ho_pad, Wo_pad), jnp.float32),
            grid=(N,),
            in_specs=in_specs,
            out_specs=pl.BlockSpec((1, Ho_pad, Wo_pad), lambda n: (n, 0, 0)),
            compiler_params=compiler_params,
            cost_estimate=cost,
        )(dr, x, y, col_band, row_band)
        return 1.0 - s_map[:, :Ho, :Wo].reshape(N, 1, Ho, Wo)


def ssim_loss_ref(X, Y, data_range, reduced=True, win_size=11, k1=0.01, k2=0.03):
    """Pure-JAX reference mirroring the PyTorch module."""
    w = jnp.ones((1, 1, win_size, win_size), jnp.float32) / (win_size ** 2)
    conv = lambda a: jax.lax.conv_general_dilated(
        a.astype(jnp.float32), w, (1, 1), "VALID",
        dimension_numbers=("NCHW", "OIHW", "NCHW"),
        precision=jax.lax.Precision.HIGHEST)
    dr = data_range.astype(jnp.float32)[:, None, None, None]
    C1 = (k1 * dr) ** 2
    C2 = (k2 * dr) ** 2
    ux, uy = conv(X), conv(Y)
    uxx, uyy, uxy = conv(X * X), conv(Y * Y), conv(X * Y)
    NP = win_size ** 2
    cov_norm = NP / (NP - 1)
    vx = cov_norm * (uxx - ux * ux)
    vy = cov_norm * (uyy - uy * uy)
    vxy = cov_norm * (uxy - ux * uy)
    A1, A2 = 2 * ux * uy + C1, 2 * vxy + C2
    B1, B2 = ux ** 2 + uy ** 2 + C1, vx + vy + C2
    S = A1 * A2 / (B1 * B2)
    if reduced:
        return 1.0 - S.mean()
    return 1.0 - S


if __name__ == "__main__":
    key = jax.random.PRNGKey(0)
    kx, ky, kd = jax.random.split(key, 3)

    N, C, H, W = 2, 1, 16, 16          # win_size=11 -> 6x6 SSIM map
    X = jax.random.uniform(kx, (N, C, H, W), jnp.float32)
    Y = jax.random.uniform(ky, (N, C, H, W), jnp.float32)
    data_range = jax.random.uniform(kd, (N,), jnp.float32,
                                    minval=0.5, maxval=1.5)

    # reduced=True path (scalar loss, sum-only kernel)
    loss = jax.block_until_ready(ssim_loss_pallas(X, Y, data_range, reduced=True))
    ref = jax.block_until_ready(ssim_loss_ref(X, Y, data_range, reduced=True))
    assert jnp.allclose(loss, ref, rtol=1e-3, atol=1e-3), (loss, ref)

    # reduced=False path (full 1 - S map, lane-padded store + crop)
    smap = jax.block_until_ready(ssim_loss_pallas(X, Y, data_range, reduced=False))
    smap_ref = jax.block_until_ready(ssim_loss_ref(X, Y, data_range, reduced=False))
    assert smap.shape == smap_ref.shape, (smap.shape, smap_ref.shape)
    assert jnp.allclose(smap, smap_ref, rtol=1e-3, atol=1e-3)

    print("KERNEL_OK")
</pallas_src>

<mosaic_0001>
module attributes {stable_mosaic.version = 11 : i64} {
  func.func @_ssim_sum_kernel(%arg0: i32, %arg1: memref<2xf32, #tpu.memory_space<smem>>, %arg2: memref<1x16x16xf32, #tpu.memory_space<vmem>>, %arg3: memref<1x16x16xf32, #tpu.memory_space<vmem>>, %arg4: memref<16x128xf32, #tpu.memory_space<vmem>>, %arg5: memref<8x16xf32, #tpu.memory_space<vmem>>, %arg6: memref<1x1x1xf32, #tpu.memory_space<vmem>>) attributes {dimension_semantics = [#tpu.dimension_semantics<parallel>], iteration_bounds = array<i64: 2>, scalar_prefetch = 0 : i64, scratch_operands = 0 : i64, tpu.core_type = #tpu.core_type<tc>, window_params = [{transform_indices = @transform_0, window_bounds = array<i64: 2>}, {transform_indices = @transform_1, window_bounds = array<i64: 1, 16, 16>}, {transform_indices = @transform_2, window_bounds = array<i64: 1, 16, 16>}, {pipeline_mode = #tpu.pipeline_mode<synchronous>, transform_indices = @transform_3, window_bounds = array<i64: 16, 128>}, {pipeline_mode = #tpu.pipeline_mode<synchronous>, transform_indices = @transform_4, window_bounds = array<i64: 8, 16>}, {transform_indices = @transform_5, window_bounds = array<i64: 1, 1, 1>}]} {
    %0 = arith.index_cast %arg0 : i32 to index
    %1 = memref.load %arg1[%0] : memref<2xf32, #tpu.memory_space<smem>>
    %cst = arith.constant 0.00999999977 : f32
    %2 = arith.mulf %cst, %1 : f32
    %3 = arith.mulf %2, %2 : f32
    %cst_0 = arith.constant 3.000000e-02 : f32
    %4 = arith.mulf %cst_0, %1 : f32
    %5 = arith.mulf %4, %4 : f32
    %c0 = arith.constant 0 : index
    %c0_1 = arith.constant 0 : index
    %c0_2 = arith.constant 0 : index
    %6 = vector.load %arg2[%c0, %c0_1, %c0_2] : memref<1x16x16xf32, #tpu.memory_space<vmem>>, vector<1x16x16xf32>
    %7 = vector.shape_cast %6 : vector<1x16x16xf32> to vector<16x16xf32>
    %c0_3 = arith.constant 0 : index
    %c0_4 = arith.constant 0 : index
    %c0_5 = arith.constant 0 : index
    %8 = vector.load %arg3[%c0_3, %c0_4, %c0_5] : memref<1x16x16xf32, #tpu.memory_space<vmem>>, vector<1x16x16xf32>
    %9 = vector.shape_cast %8 : vector<1x16x16xf32> to vector<16x16xf32>
    %c0_6 = arith.constant 0 : index
    %c0_7 = arith.constant 0 : index
    %10 = vector.load %arg4[%c0_6, %c0_7] : memref<16x128xf32, #tpu.memory_space<vmem>>, vector<16x128xf32>
    %c0_8 = arith.constant 0 : index
    %c0_9 = arith.constant 0 : index
    %11 = vector.load %arg5[%c0_8, %c0_9] : memref<8x16xf32, #tpu.memory_space<vmem>>, vector<8x16xf32>
    %12 = arith.mulf %7, %7 : vector<16x16xf32>
    %13 = arith.mulf %9, %9 : vector<16x16xf32>
    %14 = arith.mulf %7, %9 : vector<16x16xf32>
    %15 = tpu.concatenate %7, %9, %12, %13, %14 in 0 : vector<16x16xf32>, vector<16x16xf32>, vector<16x16xf32>, vector<16x16xf32>, vector<16x16xf32> -> vector<80x16xf32>
    %cst_10 = arith.constant dense<0.000000e+00> : vector<80x128xf32>
    %16 = tpu.matmul %15, %10, %cst_10 {dimension_numbers = #tpu.dot_dimension_numbers<[1], [0], [0], [1], [0, 0, 1, 1], [], []>, precision = #tpu.contract_precision<fp32>} : vector<80x16xf32>, vector<16x128xf32>, vector<80x128xf32> -> vector<80x128xf32>
    %17 = vector.extract_strided_slice %16 {offsets = [0, 0], sizes = [16, 128], strides = [1, 1]} : vector<80x128xf32> to vector<16x128xf32>
    %cst_11 = arith.constant dense<0.000000e+00> : vector<8x128xf32>
    %18 = tpu.matmul %11, %17, %cst_11 {dimension_numbers = #tpu.dot_dimension_numbers<[1], [0], [0], [1], [0, 0, 1, 1], [], []>, precision = #tpu.contract_precision<fp32>} : vector<8x16xf32>, vector<16x128xf32>, vector<8x128xf32> -> vector<8x128xf32>
    %19 = vector.extract_strided_slice %16 {offsets = [16, 0], sizes = [16, 128], strides = [1, 1]} : vector<80x128xf32> to vector<16x128xf32>
    %cst_12 = arith.constant dense<0.000000e+00> : vector<8x128xf32>
    %20 = tpu.matmul %11, %19, %cst_12 {dimension_numbers = #tpu.dot_dimension_numbers<[1], [0], [0], [1], [0, 0, 1, 1], [], []>, precision = #tpu.contract_precision<fp32>} : vector<8x16xf32>, vector<16x128xf32>, vector<8x128xf32> -> vector<8x128xf32>
    %21 = vector.extract_strided_slice %16 {offsets = [32, 0], sizes = [16, 128], strides = [1, 1]} : vector<80x128xf32> to vector<16x128xf32>
    %cst_13 = arith.constant dense<0.000000e+00> : vector<8x128xf32>
    %22 = tpu.matmul %11, %21, %cst_13 {dimension_numbers = #tpu.dot_dimension_numbers<[1], [0], [0], [1], [0, 0, 1, 1], [], []>, precision = #tpu.contract_precision<fp32>} : vector<8x16xf32>, vector<16x128xf32>, vector<8x128xf32> -> vector<8x128xf32>
    %23 = vector.extract_strided_slice %16 {offsets = [48, 0], sizes = [16, 128], strides = [1, 1]} : vector<80x128xf32> to vector<16x128xf32>
    %cst_14 = arith.constant dense<0.000000e+00> : vector<8x128xf32>
    %24 = tpu.matmul %11, %23, %cst_14 {dimension_numbers = #tpu.dot_dimension_numbers<[1], [0], [0], [1], [0, 0, 1, 1], [], []>, precision = #tpu.contract_precision<fp32>} : vector<8x16xf32>, vector<16x128xf32>, vector<8x128xf32> -> vector<8x128xf32>
    %25 = vector.extract_strided_slice %16 {offsets = [64, 0], sizes = [16, 128], strides = [1, 1]} : vector<80x128xf32> to vector<16x128xf32>
    %cst_15 = arith.constant dense<0.000000e+00> : vector<8x128xf32>
    %26 = tpu.matmul %11, %25, %cst_15 {dimension_numbers = #tpu.dot_dimension_numbers<[1], [0], [0], [1], [0, 0, 1, 1], [], []>, precision = #tpu.contract_precision<fp32>} : vector<8x16xf32>, vector<16x128xf32>, vector<8x128xf32> -> vector<8x128xf32>
    %27 = arith.mulf %18, %18 : vector<8x128xf32>
    %28 = arith.subf %22, %27 : vector<8x128xf32>
    %cst_16 = arith.constant 1.00833333 : f32
    %29 = vector.broadcast %cst_16 : f32 to vector<8x128xf32>
    %30 = arith.mulf %29, %28 : vector<8x128xf32>
    %31 = arith.mulf %20, %20 : vector<8x128xf32>
    %32 = arith.subf %24, %31 : vector<8x128xf32>
    %cst_17 = arith.constant 1.00833333 : f32
    %33 = vector.broadcast %cst_17 : f32 to vector<8x128xf32>
    %34 = arith.mulf %33, %32 : vector<8x128xf32>
    %35 = arith.mulf %18, %20 : vector<8x128xf32>
    %36 = arith.subf %26, %35 : vector<8x128xf32>
    %cst_18 = arith.constant 1.00833333 : f32
    %37 = vector.broadcast %cst_18 : f32 to vector<8x128xf32>
    %38 = arith.mulf %37, %36 : vector<8x128xf32>
    %cst_19 = arith.constant 2.000000e+00 : f32
    %39 = vector.broadcast %cst_19 : f32 to vector<8x128xf32>
    %40 = arith.mulf %39, %18 : vector<8x128xf32>
    %41 = arith.mulf %40, %20 : vector<8x128xf32>
    %42 = vector.broadcast %3 : f32 to vector<8x128xf32>
    %43 = arith.addf %41, %42 : vector<8x128xf32>
    %cst_20 = arith.constant 2.000000e+00 : f32
    %44 = vector.broadcast %cst_20 : f32 to vector<8x128xf32>
    %45 = arith.mulf %44, %38 : vector<8x128xf32>
    %46 = vector.broadcast %5 : f32 to vector<8x128xf32>
    %47 = arith.addf %45, %46 : vector<8x128xf32>
    %48 = arith.mulf %18, %18 : vector<8x128xf32>
    %49 = arith.mulf %20, %20 : vector<8x128xf32>
    %50 = arith.addf %48, %49 : vector<8x128xf32>
    %51 = vector.broadcast %3 : f32 to vector<8x128xf32>
    %52 = arith.addf %50, %51 : vector<8x128xf32>
    %53 = arith.addf %30, %34 : vector<8x128xf32>
    %54 = vector.broadcast %5 : f32 to vector<8x128xf32>
    %55 = arith.addf %53, %54 : vector<8x128xf32>
    %56 = arith.mulf %43, %47 : vector<8x128xf32>
    %57 = arith.mulf %52, %55 : vector<8x128xf32>
    %58 = arith.divf %56, %57 : vector<8x128xf32>
    %59 = tpu.iota {dimensions = array<i32: 0>} : vector<8x128xi32>
    %60 = tpu.iota {dimensions = array<i32: 1>} : vector<8x128xi32>
    %c6_i32 = arith.constant 6 : i32
    %61 = vector.broadcast %c6_i32 : i32 to vector<8x128xi32>
    %62 = arith.cmpi slt, %59, %61 : vector<8x128xi32>
    %c6_i32_21 = arith.constant 6 : i32
    %63 = vector.broadcast %c6_i32_21 : i32 to vector<8x128xi32>
    %64 = arith.cmpi slt, %60, %63 : vector<8x128xi32>
    %65 = arith.andi %62, %64 : vector<8x128xi1>
    %cst_22 = arith.constant 0.000000e+00 : f32
    %66 = vector.broadcast %cst_22 : f32 to vector<8x128xf32>
    %67 = arith.select %65, %58, %66 : vector<8x128xi1>, vector<8x128xf32>
    %68 = vector.shape_cast %67 : vector<8x128xf32> to vector<1x8x128xf32>
    %cst_23 = arith.constant dense<0.000000e+00> : vector<1xf32>
    %69 = vector.multi_reduction <add>, %68, %cst_23 [1, 2] : vector<1x8x128xf32> to vector<1xf32>
    %70 = vector.shape_cast %69 : vector<1xf32> to vector<1x1x1xf32>
    %71 = vector.extract %70[0, 0, 0] : f32 from vector<1x1x1xf32>
    %72 = vector.broadcast %71 : f32 to vector<1x1x1xf32>
    %c0_24 = arith.constant 0 : index
    %c0_25 = arith.constant 0 : index
    %c0_26 = arith.constant 0 : index
    %73 = vector.load %arg6[%c0_24, %c0_25, %c0_26] : memref<1x1x1xf32, #tpu.memory_space<vmem>>, vector<1x1x1xf32>
    tpu.vector_store %arg6[%c0_24, %c0_25, %c0_26], %72 {strides = array<i32>} : memref<1x1x1xf32, #tpu.memory_space<vmem>>, vector<1x1x1xf32>,
    return
  }
  func.func @transform_0(%arg0: i32) -> i32 {
    %c0_i32 = arith.constant 0 : i32
    %c0_i32_0 = arith.constant 0 : i32
    return %c0_i32 : i32
  }
  func.func @transform_1(%arg0: i32) -> (i32, i32, i32) {
    %c0_i32 = arith.constant 0 : i32
    %c0_i32_0 = arith.constant 0 : i32
    %c0_i32_1 = arith.constant 0 : i32
    return %arg0, %c0_i32, %c0_i32_0 : i32, i32, i32
  }
  func.func @transform_2(%arg0: i32) -> (i32, i32, i32) {
    %c0_i32 = arith.constant 0 : i32
    %c0_i32_0 = arith.constant 0 : i32
    %c0_i32_1 = arith.constant 0 : i32
    return %arg0, %c0_i32, %c0_i32_0 : i32, i32, i32
  }
  func.func @transform_3(%arg0: i32) -> (i32, i32) {
    %c0_i32 = arith.constant 0 : i32
    %c0_i32_0 = arith.constant 0 : i32
    %c0_i32_1 = arith.constant 0 : i32
    return %c0_i32, %c0_i32_0 : i32, i32
  }
  func.func @transform_4(%arg0: i32) -> (i32, i32) {
    %c0_i32 = arith.constant 0 : i32
    %c0_i32_0 = arith.constant 0 : i32
    %c0_i32_1 = arith.constant 0 : i32
    return %c0_i32, %c0_i32_0 : i32, i32
  }
  func.func @transform_5(%arg0: i32) -> (i32, i32, i32) {
    %c0_i32 = arith.constant 0 : i32
    %c0_i32_0 = arith.constant 0 : i32
    %c0_i32_1 = arith.constant 0 : i32
    return %arg0, %c0_i32, %c0_i32_0 : i32, i32, i32
  }
}

</mosaic_0001>

<llo_original>
// kernel: tpu_custom_call.1
$region0: #{tpu_custom_call.1}
  #allocation0 [shape = 'u32[]', space=smem, size = 0x4, offset = 0x4, fixed_abs, tag = 'smem constant byte address 0x4 - core index']
  #allocation1 [shape = 'u32[144,128]{1,0:T(1,128)}', space=vmem, size = 0x12000, scoped, tag = 'internal scratch']
  %s0 = inlined_call_operand.hbm [shape: f32[2], index: 0, kind: input, shape index: {}]
  %s1 = inlined_call_operand.hbm [shape: f32[2,16,16], index: 1, kind: input, shape index: {}]
  %s2 = inlined_call_operand.hbm [shape: f32[2,16,16], index: 2, kind: input, shape index: {}]
  %s3 = inlined_call_operand.hbm [shape: f32[16,128], index: 3, kind: input, shape index: {}]
  %s4 = inlined_call_operand.vmem [shape: f32[8,16], index: 4, kind: input, shape index: {}]
  %s5 = inlined_call_operand.vmem [shape: f32[2,1,1], index: 5, kind: output, shape index: {}]
  %s6 = sld [smem:[#allocation0]]
  $region69: #{tpu_custom_call.1} parent=0
    _
  %s8 = ssub.s32 1, %s6
  %s9 = scalar_select 0, %s8, %s6
  $region1: #{tpu_custom_call.1} parent=0
    #allocation2 [shape = 'u8[512]{0}', space=smem, size = 0x200, scoped, tag = 'input window, operand 0, single buffered']
    #allocation3 [shape = 's32[2]{0}', space=sflag, size = 0x8, scoped, tag = 'scoped memory for tpu_custom_call.1']
    #allocation4 [shape = 's32[2]{0}', space=sflag, size = 0x8, scoped, tag = 'scoped memory for tpu_custom_call.1']
    #allocation5 [shape = 'u8[16384]{0}', space=vmem, size = 0x4000, scoped, tag = 'input window, operand 1']
    #allocation6 [shape = 'u8[16384]{0}', space=vmem, size = 0x4000, scoped, tag = 'input window, operand 2']
    #allocation7 [shape = 's32[2]{0}', space=sflag, size = 0x8, scoped, tag = 'scoped memory for tpu_custom_call.1']
    #allocation8 [shape = 'u8[8192]{0}', space=vmem, size = 0x2000, scoped, tag = 'input window, operand 3, single buffered']
    %10 = vsyncpa [#allocation4], 0
    %11 = vsyncpa [#allocation3], 0
    %s12 = scalar_lea.sflag [#allocation3], 1
    %13 = vsyncpa %s12, 0
    %14 = vsyncpa [#allocation7], 0
    %s15 = scalar_lea.sflag [#allocation7], 1
    %16 = vsyncpa %s15, 0
    loop: start=0, step=1, limit=4
    $region2: #{tpu_custom_call.1} parent=1 // loop_pre_header
      _
    $region3: #{tpu_custom_call.1} parent=1 // loop_header
      %s18 = sphi 0, %s22
      %p19 = scmp.ge.s32.totalorder %s18, 4
      %s26 = sphi 0, %s26
      %s28 = sphi 0, %s26
      %s29 = sphi 0, %s28
      %s43 = sphi 0, %s29
      %s49 = sphi 0, %s51
      %s52 = sphi 0, %s49
      %s53 = sphi 0, %s52
      %s69 = sphi 0, %s53
      %s75 = sphi 0, %s77
      %s78 = sphi 0, %s75
      %s79 = sphi 0, %s78
      %s95 = sphi 0, %s79
      %s99 = sphi 0, %s99
      %s101 = sphi 0, %s99
      %s102 = sphi 0, %s101
      %s116 = sphi 0, %s102
      %s120 = sphi 0, %s120
      %s122 = sphi 0, %s120
      %s123 = sphi 0, %s122
      %s137 = sphi 0, %s123
      %s143 = sphi 0, %s145
      %s146 = sphi 0, %s143
      %s147 = sphi 0, %s146
      %s163 = sphi 0, %s147
    $region4: #{tpu_custom_call.1} parent=1 // loop_header_branch
      %21 = sbr.rel (%p19) target = $region8
    $region5: #{tpu_custom_call.1} parent=1 // loop_body
      %s23 = ssub.s32 %s18, 1
      %s24 = ssub.s32 %s18, 2
      %s25 = sadd.s32 %s18, 1
      %s27 = sadd.s32 %s26, 1
      %p30 = scmp.eq.s32.totalorder %s18, 1
      %p31 = scmp.ne.s32.totalorder %s26, %s28
      %p32 = scmp.eq.s32.totalorder %s18, 0
      %p33 = por %p31, %p32
      %p34 = scmp.ne.s32.totalorder %s26, %s28
      %p35 = scmp.eq.s32.totalorder %s23, 1
      %p36 = por %p34, %p35
      %p37 = scmp.ne.s32.totalorder %s28, %s29
      %p38 = scmp.eq.s32.totalorder %s23, 0
      %p39 = por %p37, %p38
      %p40 = scmp.ne.s32.totalorder %s28, %s29
      %p41 = scmp.eq.s32.totalorder %s24, 1
      %p42 = por %p40, %p41
      %p44 = scmp.ne.s32.totalorder %s29, %s43
      %p45 = scmp.eq.s32.totalorder %s24, 0
      %p46 = por %p44, %p45
      %s47 = ssub.s32 %s18, %s25
      %p48 = scmp.eq.s32.totalorder %s47, 0
      %s50 = sadd.s32 %s49, 1
      %s51 = scalar_select %p48, %s49, %s50
      %p54 = pneg %p48
      %p55 = scmp.eq.s32.totalorder %s18, 1
      %p56 = por %p54, %p55
      %p57 = scmp.ne.s32.totalorder %s49, %s52
      %p58 = scmp.eq.s32.totalorder %s18, 0
      %p59 = por %p57, %p58
      %p60 = scmp.ne.s32.totalorder %s49, %s52
      %p61 = scmp.eq.s32.totalorder %s23, 1
      %p62 = por %p60, %p61
      %p63 = scmp.ne.s32.totalorder %s52, %s53
      %p64 = scmp.eq.s32.totalorder %s23, 0
      %p65 = por %p63, %p64
      %p66 = scmp.ne.s32.totalorder %s52, %s53
      %p67 = scmp.eq.s32.totalorder %s24, 1
      %p68 = por %p66, %p67
      %p70 = scmp.ne.s32.totalorder %s53, %s69
      %p71 = scmp.eq.s32.totalorder %s24, 0
      %p72 = por %p70, %p71
      %s73 = ssub.s32 %s18, %s25
      %p74 = scmp.eq.s32.totalorder %s73, 0
      %s76 = sadd.s32 %s75, 1
      %s77 = scalar_select %p74, %s75, %s76
      %p80 = pneg %p74
      %p81 = scmp.eq.s32.totalorder %s18, 1
      %p82 = por %p80, %p81
      %p83 = scmp.ne.s32.totalorder %s75, %s78
      %p84 = scmp.eq.s32.totalorder %s18, 0
      %p85 = por %p83, %p84
      %p86 = scmp.ne.s32.totalorder %s75, %s78
      %p87 = scmp.eq.s32.totalorder %s23, 1
      %p88 = por %p86, %p87
      %p89 = scmp.ne.s32.totalorder %s78, %s79
      %p90 = scmp.eq.s32.totalorder %s23, 0
      %p91 = por %p89, %p90
      %p92 = scmp.ne.s32.totalorder %s78, %s79
      %p93 = scmp.eq.s32.totalorder %s24, 1
      %p94 = por %p92, %p93
      %p96 = scmp.ne.s32.totalorder %s79, %s95
      %p97 = scmp.eq.s32.totalorder %s24, 0
      %p98 = por %p96, %p97
      %s100 = sadd.s32 %s99, 1
      %p103 = scmp.eq.s32.totalorder %s18, 1
      %p104 = scmp.ne.s32.totalorder %s99, %s101
      %p105 = scmp.eq.s32.totalorder %s18, 0
      %p106 = por %p104, %p105
      %p107 = scmp.ne.s32.totalorder %s99, %s101
      %p108 = scmp.eq.s32.totalorder %s23, 1
      %p109 = por %p107, %p108
      %p110 = scmp.ne.s32.totalorder %s101, %s102
      %p111 = scmp.eq.s32.totalorder %s23, 0
      %p112 = por %p110, %p111
      %p113 = scmp.ne.s32.totalorder %s101, %s102
      %p114 = scmp.eq.s32.totalorder %s24, 1
      %p115 = por %p113, %p114
      %p117 = scmp.ne.s32.totalorder %s102, %s116
      %p118 = scmp.eq.s32.totalorder %s24, 0
      %p119 = por %p117, %p118
      %s121 = sadd.s32 %s120, 1
      %p124 = scmp.eq.s32.totalorder %s18, 1
      %p125 = scmp.ne.s32.totalorder %s120, %s122
      %p126 = scmp.eq.s32.totalorder %s18, 0
      %p127 = por %p125, %p126
      %p128 = scmp.ne.s32.totalorder %s120, %s122
      %p129 = scmp.eq.s32.totalorder %s23, 1
      %p130 = por %p128, %p129
      %p131 = scmp.ne.s32.totalorder %s122, %s123
      %p132 = scmp.eq.s32.totalorder %s23, 0
      %p133 = por %p131, %p132
      %p134 = scmp.ne.s32.totalorder %s122, %s123
      %p135 = scmp.eq.s32.totalorder %s24, 1
      %p136 = por %p134, %p135
      %p138 = scmp.ne.s32.totalorder %s123, %s137
      %p139 = scmp.eq.s32.totalorder %s24, 0
      %p140 = por %p138, %p139
      %s141 = ssub.s32 %s18, %s25
      %p142 = scmp.eq.s32.totalorder %s141, 0
      %s144 = sadd.s32 %s143, 1
      %s145 = scalar_select %p142, %s143, %s144
      %p148 = pneg %p142
      %p149 = scmp.eq.s32.totalorder %s18, 1
      %p150 = por %p148, %p149
      %p151 = scmp.ne.s32.totalorder %s143, %s146
      %p152 = scmp.eq.s32.totalorder %s18, 0
      %p153 = por %p151, %p152
      %p154 = scmp.ne.s32.totalorder %s143, %s146
      %p155 = scmp.eq.s32.totalorder %s23, 1
      %p156 = por %p154, %p155
      %p157 = scmp.ne.s32.totalorder %s146, %s147
      %p158 = scmp.eq.s32.totalorder %s23, 0
      %p159 = por %p157, %p158
      %p160 = scmp.ne.s32.totalorder %s146, %s147
      %p161 = scmp.eq.s32.totalorder %s24, 1
      %p162 = por %p160, %p161
      %p164 = scmp.ne.s32.totalorder %s147, %s163
      %p165 = scmp.eq.s32.totalorder %s24, 0
      %p166 = por %p164, %p165
      %p167 = scmp.le.s32.totalorder 1, %s18
      %p168 = scmp.lt.s32.totalorder %s18, 3
      %p169 = pnand %p167, %p168
      %p170 = pneg %p169
      // Predicated region
      $region9: #{tpu_custom_call.1} parent=5 // pred_check
        _
      $region10: #{tpu_custom_call.1} parent=5 // pred_check_branch
        %172 = sbr.rel (%p169) target = $region12
      $region11: #{tpu_custom_call.1} parent=5 // pred_region
        %s173 = ssub.s32 %s18, 1
        // Predicated region
        $region13: #{tpu_custom_call.1} parent=11 // pred_check
          %p174 = pneg %p39
        $region14: #{tpu_custom_call.1} parent=11 // pred_check_branch
          %176 = sbr.rel (%p174) target = $region16
        $region15: #{tpu_custom_call.1} parent=11 // pred_region
          %s178 = ssub.s32 16, 16
          %179 = vsyncadd [#allocation4], %s178
          %182 = dma.hbm_to_smem %s0, 16, [#allocation2], [#allocation4]
        $region16: #{tpu_custom_call.1} parent=11 // pred_fallthru
          _
        // Predicated region
        $region17: #{tpu_custom_call.1} parent=11 // pred_check
          %p183 = pneg %p112
        $region18: #{tpu_custom_call.1} parent=11 // pred_check_branch
          %185 = sbr.rel (%p183) target = $region20
        $region19: #{tpu_custom_call.1} parent=11 // pred_region
          %s187 = ssub.s32 256, 256
          %188 = vsyncadd [#allocation7], %s187
          %s189 = sshll.u32 [#allocation8], 4
          %s190 = int_to_ptr.vmem [resolvable:$true] %s189
          %195 = dma.hbm_to_vmem [thread:$0]  %s3, 256, %s190, [#allocation7], 128, 128, 8
        $region20: #{tpu_custom_call.1} parent=11 // pred_fallthru
          _
        // Predicated region
        $region21: #{tpu_custom_call.1} parent=11 // pred_check
          %p196 = pneg %p133
        $region22: #{tpu_custom_call.1} parent=11 // pred_check_branch
          %198 = sbr.rel (%p196) target = $region24
        $region23: #{tpu_custom_call.1} parent=11 // pred_region
          _
        $region24: #{tpu_custom_call.1} parent=11 // pred_fallthru
          _
      $region12: #{tpu_custom_call.1} parent=5 // pred_fallthru
        _
      %p199 = scmp.lt.s32.totalorder %s18, 2
      // Predicated region
      $region25: #{tpu_custom_call.1} parent=5 // pred_check
        %p200 = pneg %p199
      $region26: #{tpu_custom_call.1} parent=5 // pred_check_branch
        %202 = sbr.rel (%p200) target = $region28
      $region27: #{tpu_custom_call.1} parent=5 // pred_region
        // Predicated region
        $region29: #{tpu_custom_call.1} parent=27 // pred_check
          %p203 = pneg %p59
        $region30: #{tpu_custom_call.1} parent=27 // pred_check_branch
          %205 = sbr.rel (%p203) target = $region32
        $region31: #{tpu_custom_call.1} parent=27 // pred_region
          %s206 = sand.u32 %s49, 1
          %s207 = scalar_lea.sflag [#allocation3], %s206
          %s208 = sand.u32 %s49, 1
          %s209 = smul.addr %s208, 16
          %s210 = scalar_lea.vmem [#allocation5], %s209
          %s212 = ssub.s32 256, 256
          %213 = vsyncadd %s207, %s212
          %s214 = smul.addr %s18, 2
          %s215 = smul.addr %s214, 128
          %s216 = scalar_lea.hbm %s1, %s215
          %s217 = sshll.u32 %s210, 4
          %s218 = int_to_ptr.vmem [resolvable:$true] %s217
          %223 = dma.hbm_to_vmem [thread:$0]  %s216, 256, %s218, %s207, 128, 128, 8
        $region32: #{tpu_custom_call.1} parent=27 // pred_fallthru
          _
        // Predicated region
        $region33: #{tpu_custom_call.1} parent=27 // pred_check
          %p224 = pneg %p85
        $region34: #{tpu_custom_call.1} parent=27 // pred_check_branch
          %226 = sbr.rel (%p224) target = $region36
        $region35: #{tpu_custom_call.1} parent=27 // pred_region
          %s227 = sand.u32 %s18, 1
          %s228 = scalar_lea.sflag [#allocation7], %s227
          %s229 = sand.u32 %s75, 1
          %s230 = smul.addr %s229, 16
          %s231 = scalar_lea.vmem [#allocation6], %s230
          %s233 = ssub.s32 256, 256
          %234 = vsyncadd %s228, %s233
          %s235 = smul.addr %s18, 2
          %s236 = smul.addr %s235, 128
          %s237 = scalar_lea.hbm %s2, %s236
          %s238 = sshll.u32 %s231, 4
          %s239 = int_to_ptr.vmem [resolvable:$true] %s238
          %244 = dma.hbm_to_vmem [thread:$0]  %s237, 256, %s239, %s228, 128, 128, 8
        $region36: #{tpu_custom_call.1} parent=27 // pred_fallthru
          _
      $region28: #{tpu_custom_call.1} parent=5 // pred_fallthru
        _
      %p245 = scmp.le.s32.totalorder 1, %s18
      %p246 = scmp.lt.s32.totalorder %s18, 3
      %p247 = pnand %p245, %p246
      %p248 = pneg %p247
      // Predicated region
      $region37: #{tpu_custom_call.1} parent=5 // pred_check
        _
      $region38: #{tpu_custom_call.1} parent=5 // pred_check_branch
        %250 = sbr.rel (%p247) target = $region40
      $region39: #{tpu_custom_call.1} parent=5 // pred_region
        %s251 = ssub.s32 %s18, 1
        // Predicated region
        $region41: #{tpu_custom_call.1} parent=39 // pred_check
          %p252 = pneg %p39
        $region42: #{tpu_custom_call.1} parent=39 // pred_check_branch
          %254 = sbr.rel (%p252) target = $region44
        $region43: #{tpu_custom_call.1} parent=39 // pred_region
          %255 = dma.done [#allocation4], 16
        $region44: #{tpu_custom_call.1} parent=39 // pred_fallthru
          _
        %s256 = sand.u32 %s52, 1
        %s257 = scalar_lea.sflag [#allocation3], %s256
        %s258 = sand.u32 %s52, 1
        %s259 = smul.addr %s258, 16
        %s260 = scalar_lea.vmem [#allocation5], %s259
        // Predicated region
        $region45: #{tpu_custom_call.1} parent=39 // pred_check
          %p261 = pneg %p65
        $region46: #{tpu_custom_call.1} parent=39 // pred_check_branch
          %263 = sbr.rel (%p261) target = $region48
        $region47: #{tpu_custom_call.1} parent=39 // pred_region
          %264 = dma.done %s257, 256
        $region48: #{tpu_custom_call.1} parent=39 // pred_fallthru
          _
        %s265 = sand.u32 %s23, 1
        %s266 = scalar_lea.sflag [#allocation7], %s265
        %s267 = sand.u32 %s78, 1
        %s268 = smul.addr %s267, 16
        %s269 = scalar_lea.vmem [#allocation6], %s268
        // Predicated region
        $region49: #{tpu_custom_call.1} parent=39 // pred_check
          %p270 = pneg %p91
        $region50: #{tpu_custom_call.1} parent=39 // pred_check_branch
          %272 = sbr.rel (%p270) target = $region52
        $region51: #{tpu_custom_call.1} parent=39 // pred_region
          %273 = dma.done %s266, 256
        $region52: #{tpu_custom_call.1} parent=39 // pred_fallthru
          _
        // Predicated region
        $region53: #{tpu_custom_call.1} parent=39 // pred_check
          %p274 = pneg %p112
        $region54: #{tpu_custom_call.1} parent=39 // pred_check_branch
          %276 = sbr.rel (%p274) target = $region56
        $region55: #{tpu_custom_call.1} parent=39 // pred_region
          %277 = dma.done [#allocation7], 256
        $region56: #{tpu_custom_call.1} parent=39 // pred_fallthru
          _
        %278 = sfence
        %p279 = pneg %p39
        %p280 = pneg %p36
        %s281 = sand.u32 %s52, 1
        %s282 = scalar_lea.sflag [#allocation3], %s281
        %s283 = sand.u32 %s52, 1
        %s284 = smul.addr %s283, 16
        %s285 = scalar_lea.vmem [#allocation5], %s284
        %p286 = pneg %p65
        %p287 = pneg %p62
        %s288 = sand.u32 %s23, 1
        %s289 = scalar_lea.sflag [#allocation7], %s288
        %s290 = sand.u32 %s78, 1
        %s291 = smul.addr %s290, 16
        %s292 = scalar_lea.vmem [#allocation6], %s291
        %p293 = pneg %p91
        %p294 = pneg %p88
        %p295 = pneg %p112
        %p296 = pneg %p109
        %p297 = pneg %p133
        %p298 = pneg %p130
        %p299 = pneg %p159
        %p300 = pneg %p156
        %p301 = scmp.lt.s32.totalorder %s23, 1
        %s302 = scalar_select %p301, %s23, 1
        %s303 = scalar_lea.vmem %s5, %s302
        %p304 = scmp.lt.s32.totalorder %s23, 1
        %s305 = scalar_select %p304, %s23, 1
        %s306 = scalar_lea.vmem %s5, %s305
        %s307 = sld [smem:[#allocation2 + %s23]]
        %s308 = smul.f32 %s307, 0.01
        %s309 = smul.f32 %s308, %s308
        %s310 = smul.f32 %s307, 0.03
        %s311 = smul.f32 %s310, %s310
        %v312 = vld [vmem:[%s260] sm:$0xff]
        %v313 = vld [vmem:[%s260 + $0x8] sm:$0xff]
        %v314 = vld [vmem:[%s269] sm:$0xff]
        %v315 = vld [vmem:[%s269 + $0x8] sm:$0xff]
        %v316 = vld [vmem:[#allocation8] sm:$0xff]
        %v317 = vld [vmem:[#allocation8 + $0x8] sm:$0xff]
        %v318 = vld [vmem:[%s4] sm:$0xff]
        %v319 = vmul.f32 %v312, %v312
        %v320 = vmul.f32 %v313, %v313
        %v321 = vmul.f32 %v314, %v314
        %v322 = vmul.f32 %v315, %v315
        %v323 = vmul.f32 %v312, %v314
        %v324 = vmul.f32 %v313, %v315
        %vm325 = vcmask 130048
        %v327 = vsel %vm325, %v312, 0
        %v330 = vsel %vm325, %v313, 0
        %v333 = vsel %vm325, %v314, 0
        %v336 = vsel %vm325, %v315, 0
        %v339 = vsel %vm325, %v319, 0
        %v342 = vsel %vm325, %v320, 0
        %v345 = vsel %vm325, %v321, 0
        %v348 = vsel %vm325, %v322, 0
        %v351 = vsel %vm325, %v323, 0
        %v354 = vsel %vm325, %v324, 0
        %356 = vmatprep.subr.mxu0 0.0
        %v357 = vand.u32 %v316, 4294901760
        %358 = vmatpush1.msra.mxu0 %v357
        %359 = vmatprep.subr.mxu0 0.0
        %v360 = vand.u32 %v317, 4294901760
        %361 = vmatpush1.msra.mxu0 %v360
        %362 = vmatprep.subr.mxu0 0.0
        %363 = vmatpush1.msra.mxu0 0.0
        %364 = vmatprep.subr.mxu0 0.0
        %365 = vmatpush1.msra.mxu0 0.0
        %366 = vmatprep.subr.mxu0 0.0
        %367 = vmatpush1.msra.mxu0 0.0
        %368 = vmatprep.subr.mxu0 0.0
        %369 = vmatpush1.msra.mxu0 0.0
        %370 = vmatprep.subr.mxu0 0.0
        %371 = vmatpush1.msra.mxu0 0.0
        %372 = vmatprep.subr.mxu0 0.0
        %373 = vmatpush1.msra.mxu0 0.0
        %374 = vmatprep.subr.mxu0 0.0
        %375 = vmatpush1.msra.mxu0 0.0
        %376 = vmatprep.subr.mxu0 0.0
        %377 = vmatpush1.msra.mxu0 0.0
        %378 = vmatprep.subr.mxu0 0.0
        %379 = vmatpush1.msra.mxu0 0.0
        %380 = vmatprep.subr.mxu0 0.0
        %381 = vmatpush1.msra.mxu0 0.0
        %382 = vmatprep.subr.mxu0 0.0
        %383 = vmatpush1.msra.mxu0 0.0
        %384 = vmatprep.subr.mxu0 0.0
        %385 = vmatpush1.msra.mxu0 0.0
        %386 = vmatprep.subr.mxu0 0.0
        %387 = vmatpush1.msra.mxu0 0.0
        %388 = vmatprep.subr.mxu0 0.0
        %389 = vmatpush1.msra.mxu0 0.0
        %390 = vmatprep.subr.mxu0 0.0
        %391 = vmatpush1.msra.mxu0 0.0
        %392 = vmatprep.subr.mxu0 0.0
        %393 = vmatpush1.msra.mxu0 0.0
        %394 = vmatprep.subr.mxu0 0.0
        %395 = vmatpush1.msra.mxu0 0.0
        %396 = vmatprep.subr.mxu0 0.0
        %397 = vmatpush1.msra.mxu0 0.0
        %398 = vmatprep.subr.mxu0 0.0
        %399 = vmatpush1.msra.mxu0 0.0
        %400 = vmatprep.subr.mxu0 0.0
        %401 = vmatpush1.msra.mxu0 0.0
        %402 = vmatprep.subr.mxu0 0.0
        %403 = vmatpush1.msra.mxu0 0.0
        %404 = vmatprep.subr.mxu0 0.0
        %405 = vmatpush1.msra.mxu0 0.0
        %406 = vmatprep.subr.mxu0 0.0
        %407 = vmatpush1.msra.mxu0 0.0
        %408 = vmatprep.subr.mxu0 0.0
        %409 = vmatpush1.msra.mxu0 0.0
        %410 = vmatprep.subr.mxu0 0.0
        %411 = vmatpush1.msra.mxu0 0.0
        %412 = vmatprep.subr.mxu0 0.0
        %413 = vmatpush1.msra.mxu0 0.0
        %414 = vmatprep.subr.mxu0 0.0
        %415 = vmatpush1.msra.mxu0 0.0
        %416 = vmatprep.subr.mxu0 0.0
        %417 = vmatpush1.msra.mxu0 0.0
        %418 = vmatprep.subr.mxu0 0.0
        %419 = vmatpush1.msra.mxu0 0.0
        %420 = vmatprep.subr.mxu0 0.0
        %421 = vmatpush1.msra.mxu0 0.0
        %422 = vmatprep.mubr.f32.mxu0 0.0
        %v423 = vand.u32 %v327, 4294901760
        %v424 = vsub.f32 %v327, %v423
        %v425 = vand.u32 %v424, 4294901760
        %v426 = vsub.f32 %v424, %v425
        %v427 = vand.u32 %v426, 4294901760
        %428 = vmatmul.mubr.f32.gmra.mrb[0].mxu0 %v427
        %v429 = vpop.f32.mrb[0].mxu0
        %v430 = vadd.f32 0.0, %v429
        %v431 = vpop.f32.mrb[0].mxu0
        %432 = vmatprep.mubr.f32.mxu0 0.0
        %v433 = vand.u32 %v330, 4294901760
        %v434 = vsub.f32 %v330, %v433
        %v435 = vand.u32 %v434, 4294901760
        %v436 = vsub.f32 %v434, %v435
        %v437 = vand.u32 %v436, 4294901760
        %438 = vmatmul.mubr.f32.gmra.mrb[0].mxu0 %v437
        %v439 = vpop.f32.mrb[0].mxu0
        %v440 = vadd.f32 0.0, %v439
        %v441 = vpop.f32.mrb[0].mxu0
        %442 = vmatprep.mubr.f32.mxu0 0.0
        %v443 = vand.u32 %v333, 4294901760
        %v444 = vsub.f32 %v333, %v443
        %v445 = vand.u32 %v444, 4294901760
        %v446 = vsub.f32 %v444, %v445
        %v447 = vand.u32 %v446, 4294901760
        %448 = vmatmul.mubr.f32.gmra.mrb[0].mxu0 %v447
        %v449 = vpop.f32.mrb[0].mxu0
        %v450 = vadd.f32 0.0, %v449
        %v451 = vpop.f32.mrb[0].mxu0
        %452 = vmatprep.mubr.f32.mxu0 0.0
        %v453 = vand.u32 %v336, 4294901760
        %v454 = vsub.f32 %v336, %v453
        %v455 = vand.u32 %v454, 4294901760
        %v456 = vsub.f32 %v454, %v455
        %v457 = vand.u32 %v456, 4294901760
        %458 = vmatmul.mubr.f32.gmra.mrb[0].mxu0 %v457
        %v459 = vpop.f32.mrb[0].mxu0
        %v460 = vadd.f32 0.0, %v459
        %v461 = vpop.f32.mrb[0].mxu0
        %462 = vmatprep.mubr.f32.mxu0 0.0
        %v463 = vand.u32 %v339, 4294901760
        %v464 = vsub.f32 %v339, %v463
        %v465 = vand.u32 %v464, 4294901760
        %v466 = vsub.f32 %v464, %v465
        %v467 = vand.u32 %v466, 4294901760
        %468 = vmatmul.mubr.f32.gmra.mrb[0].mxu0 %v467
        %v469 = vpop.f32.mrb[0].mxu0
        %v470 = vadd.f32 0.0, %v469
        %v471 = vpop.f32.mrb[0].mxu0
        %472 = vmatprep.mubr.f32.mxu0 0.0
        %v473 = vand.u32 %v342, 4294901760
        %v474 = vsub.f32 %v342, %v473
        %v475 = vand.u32 %v474, 4294901760
        %v476 = vsub.f32 %v474, %v475
        %v477 = vand.u32 %v476, 4294901760
        %478 = vmatmul.mubr.f32.gmra.mrb[0].mxu0 %v477
        %v479 = vpop.f32.mrb[0].mxu0
        %v480 = vadd.f32 0.0, %v479
        %v481 = vpop.f32.mrb[0].mxu0
        %482 = vmatprep.mubr.f32.mxu0 0.0
        %v483 = vand.u32 %v345, 4294901760
        %v484 = vsub.f32 %v345, %v483
        %v485 = vand.u32 %v484, 4294901760
        %v486 = vsub.f32 %v484, %v485
        %v487 = vand.u32 %v486, 4294901760
        %488 = vmatmul.mubr.f32.gmra.mrb[0].mxu0 %v487
        %v489 = vpop.f32.mrb[0].mxu0
        %v490 = vadd.f32 0.0, %v489
        %v491 = vpop.f32.mrb[0].mxu0
        %492 = vmatprep.mubr.f32.mxu0 0.0
        %v493 = vand.u32 %v348, 4294901760
        %v494 = vsub.f32 %v348, %v493
        %v495 = vand.u32 %v494, 4294901760
        %v496 = vsub.f32 %v494, %v495
        %v497 = vand.u32 %v496, 4294901760
        %498 = vmatmul.mubr.f32.gmra.mrb[0].mxu0 %v497
        %v499 = vpop.f32.mrb[0].mxu0
        %v500 = vadd.f32 0.0, %v499
        %v501 = vpop.f32.mrb[0].mxu0
        %502 = vmatprep.mubr.f32.mxu0 0.0
        %v503 = vand.u32 %v351, 4294901760
        %v504 = vsub.f32 %v351, %v503
        %v505 = vand.u32 %v504, 4294901760
        %v506 = vsub.f32 %v504, %v505
        %v507 = vand.u32 %v506, 4294901760
        %508 = vmatmul.mubr.f32.gmra.mrb[0].mxu0 %v507
        %v509 = vpop.f32.mrb[0].mxu0
        %v510 = vadd.f32 0.0, %v509
        %v511 = vpop.f32.mrb[0].mxu0
        %512 = vmatprep.mubr.f32.mxu0 0.0
        %v513 = vand.u32 %v354, 4294901760
        %v514 = vsub.f32 %v354, %v513
        %v515 = vand.u32 %v514, 4294901760
        %v516 = vsub.f32 %v514, %v515
        %v517 = vand.u32 %v516, 4294901760
        %518 = vmatmul.mubr.f32.gmra.mrb[0].mxu0 %v517
        %v519 = vpop.f32.mrb[0].mxu0
        %v520 = vadd.f32 0.0, %v519
        %v521 = vpop.f32.mrb[0].mxu0
        %522 = vdwg.mxu0
        %523 = vmatprep.subr.mxu0 0.0
        %v524 = vand.u32 %v316, 4294901760
        %v525 = vsub.f32 %v316, %v524
        %v526 = vand.u32 %v525, 4294901760
        %v527 = vsub.f32 %v525, %v526
        %v528 = vand.u32 %v527, 4294901760
        %529 = vmatpush1.msra.mxu0 %v528
        %530 = vmatprep.subr.mxu0 0.0
        %v531 = vand.u32 %v317, 4294901760
        %v532 = vsub.f32 %v317, %v531
        %v533 = vand.u32 %v532, 4294901760
        %v534 = vsub.f32 %v532, %v533
        %v535 = vand.u32 %v534, 4294901760
        %536 = vmatpush1.msra.mxu0 %v535
        %537 = vmatprep.subr.mxu0 0.0
        %538 = vmatpush1.msra.mxu0 0.0
        %539 = vmatprep.subr.mxu0 0.0
        %540 = vmatpush1.msra.mxu0 0.0
        %541 = vmatprep.subr.mxu0 0.0
        %542 = vmatpush1.msra.mxu0 0.0
        %543 = vmatprep.subr.mxu0 0.0
        %544 = vmatpush1.msra.mxu0 0.0
        %545 = vmatprep.subr.mxu0 0.0
        %546 = vmatpush1.msra.mxu0 0.0
        %547 = vmatprep.subr.mxu0 0.0
        %548 = vmatpush1.msra.mxu0 0.0
        %549 = vmatprep.subr.mxu0 0.0
        %550 = vmatpush1.msra.mxu0 0.0
        %551 = vmatprep.subr.mxu0 0.0
        %552 = vmatpush1.msra.mxu0 0.0
        %553 = vmatprep.subr.mxu0 0.0
        %554 = vmatpush1.msra.mxu0 0.0
        %555 = vmatprep.subr.mxu0 0.0
        %556 = vmatpush1.msra.mxu0 0.0
        %557 = vmatprep.subr.mxu0 0.0
        %558 = vmatpush1.msra.mxu0 0.0
        %559 = vmatprep.subr.mxu0 0.0
        %560 = vmatpush1.msra.mxu0 0.0
        %561 = vmatprep.subr.mxu0 0.0
        %562 = vmatpush1.msra.mxu0 0.0
        %563 = vmatprep.subr.mxu0 0.0
        %564 = vmatpush1.msra.mxu0 0.0
        %565 = vmatprep.subr.mxu0 0.0
        %566 = vmatpush1.msra.mxu0 0.0
        %567 = vmatprep.subr.mxu0 0.0
        %568 = vmatpush1.msra.mxu0 0.0
        %569 = vmatprep.subr.mxu0 0.0
        %570 = vmatpush1.msra.mxu0 0.0
        %571 = vmatprep.subr.mxu0 0.0
        %572 = vmatpush1.msra.mxu0 0.0
        %573 = vmatprep.subr.mxu0 0.0
        %574 = vmatpush1.msra.mxu0 0.0
        %575 = vmatprep.subr.mxu0 0.0
        %576 = vmatpush1.msra.mxu0 0.0
        %577 = vmatprep.subr.mxu0 0.0
        %578 = vmatpush1.msra.mxu0 0.0
        %579 = vmatprep.subr.mxu0 0.0
        %580 = vmatpush1.msra.mxu0 0.0
        %581 = vmatprep.subr.mxu0 0.0
        %582 = vmatpush1.msra.mxu0 0.0
        %583 = vmatprep.subr.mxu0 0.0
        %584 = vmatpush1.msra.mxu0 0.0
        %585 = vmatprep.subr.mxu0 0.0
        %586 = vmatpush1.msra.mxu0 0.0
        %587 = vmatprep.subr.mxu0 0.0
        %588 = vmatpush1.msra.mxu0 0.0
        %589 = vmatprep.subr.mxu0 0.0
        %590 = vmatpush1.msra.mxu0 0.0
        %591 = vmatprep.subr.mxu0 0.0
        %592 = vmatpush1.msra.mxu0 0.0
        %593 = vmatprep.subr.mxu0 0.0
        %594 = vmatpush1.msra.mxu0 0.0
        %595 = vmatprep.subr.mxu0 0.0
        %596 = vmatpush1.msra.mxu0 0.0
        %597 = vmatprep.mubr.f32.mxu0 0.0
        %v598 = vand.u32 %v327, 4294901760
        %599 = vmatmul.mubr.f32.gmra.mrb[0].mxu0 %v598
        %v600 = vpop.f32.mrb[0].mxu0
        %v601 = vadd.f32 %v430, %v600
        %v602 = vpop.f32.mrb[0].mxu0
        %603 = vmatprep.mubr.f32.mxu0 0.0
        %v604 = vand.u32 %v330, 4294901760
        %605 = vmatmul.mubr.f32.gmra.mrb[0].mxu0 %v604
        %v606 = vpop.f32.mrb[0].mxu0
        %v607 = vadd.f32 %v440, %v606
        %v608 = vpop.f32.mrb[0].mxu0
        %609 = vmatprep.mubr.f32.mxu0 0.0
        %v610 = vand.u32 %v333, 4294901760
        %611 = vmatmul.mubr.f32.gmra.mrb[0].mxu0 %v610
        %v612 = vpop.f32.mrb[0].mxu0
        %v613 = vadd.f32 %v450, %v612
        %v614 = vpop.f32.mrb[0].mxu0
        %615 = vmatprep.mubr.f32.mxu0 0.0
        %v616 = vand.u32 %v336, 4294901760
        %617 = vmatmul.mubr.f32.gmra.mrb[0].mxu0 %v616
        %v618 = vpop.f32.mrb[0].mxu0
        %v619 = vadd.f32 %v460, %v618
        %v620 = vpop.f32.mrb[0].mxu0
        %621 = vmatprep.mubr.f32.mxu0 0.0
        %v622 = vand.u32 %v339, 4294901760
        %623 = vmatmul.mubr.f32.gmra.mrb[0].mxu0 %v622
        %v624 = vpop.f32.mrb[0].mxu0
        %v625 = vadd.f32 %v470, %v624
        %v626 = vpop.f32.mrb[0].mxu0
        %627 = vmatprep.mubr.f32.mxu0 0.0
        %v628 = vand.u32 %v342, 4294901760
        %629 = vmatmul.mubr.f32.gmra.mrb[0].mxu0 %v628
        %v630 = vpop.f32.mrb[0].mxu0
        %v631 = vadd.f32 %v480, %v630
        %v632 = vpop.f32.mrb[0].mxu0
        %633 = vmatprep.mubr.f32.mxu0 0.0
        %v634 = vand.u32 %v345, 4294901760
        %635 = vmatmul.mubr.f32.gmra.mrb[0].mxu0 %v634
        %v636 = vpop.f32.mrb[0].mxu0
        %v637 = vadd.f32 %v490, %v636
        %v638 = vpop.f32.mrb[0].mxu0
        %639 = vmatprep.mubr.f32.mxu0 0.0
        %v640 = vand.u32 %v348, 4294901760
        %641 = vmatmul.mubr.f32.gmra.mrb[0].mxu0 %v640
        %v642 = vpop.f32.mrb[0].mxu0
        %v643 = vadd.f32 %v500, %v642
        %v644 = vpop.f32.mrb[0].mxu0
        %645 = vmatprep.mubr.f32.mxu0 0.0
        %v646 = vand.u32 %v351, 4294901760
        %647 = vmatmul.mubr.f32.gmra.mrb[0].mxu0 %v646
        %v648 = vpop.f32.mrb[0].mxu0
        %v649 = vadd.f32 %v510, %v648
        %v650 = vpop.f32.mrb[0].mxu0
        %651 = vmatprep.mubr.f32.mxu0 0.0
        %v652 = vand.u32 %v354, 4294901760
        %653 = vmatmul.mubr.f32.gmra.mrb[0].mxu0 %v652
        %v654 = vpop.f32.mrb[0].mxu0
        %v655 = vadd.f32 %v520, %v654
        %v656 = vpop.f32.mrb[0].mxu0
        %657 = vdwg.mxu0
        %658 = vmatprep.subr.mxu0 0.0
        %v659 = vand.u32 %v316, 4294901760
        %v660 = vsub.f32 %v316, %v659
        %661 = vmatpush1.msra.mxu0 %v660
        %662 = vmatprep.subr.mxu0 0.0
        %v663 = vand.u32 %v317, 4294901760
        %v664 = vsub.f32 %v317, %v663
        %665 = vmatpush1.msra.mxu0 %v664
        %666 = vmatprep.subr.mxu0 0.0
        %667 = vmatpush1.msra.mxu0 0.0
        %668 = vmatprep.subr.mxu0 0.0
        %669 = vmatpush1.msra.mxu0 0.0
        %670 = vmatprep.subr.mxu0 0.0
        %671 = vmatpush1.msra.mxu0 0.0
        %672 = vmatprep.subr.mxu0 0.0
        %673 = vmatpush1.msra.mxu0 0.0
        %674 = vmatprep.subr.mxu0 0.0
        %675 = vmatpush1.msra.mxu0 0.0
        %676 = vmatprep.subr.mxu0 0.0
        %677 = vmatpush1.msra.mxu0 0.0
        %678 = vmatprep.subr.mxu0 0.0
        %679 = vmatpush1.msra.mxu0 0.0
        %680 = vmatprep.subr.mxu0 0.0
        %681 = vmatpush1.msra.mxu0 0.0
        %682 = vmatprep.subr.mxu0 0.0
        %683 = vmatpush1.msra.mxu0 0.0
        %684 = vmatprep.subr.mxu0 0.0
        %685 = vmatpush1.msra.mxu0 0.0
        %686 = vmatprep.subr.mxu0 0.0
        %687 = vmatpush1.msra.mxu0 0.0
        %688 = vmatprep.subr.mxu0 0.0
        %689 = vmatpush1.msra.mxu0 0.0
        %690 = vmatprep.subr.mxu0 0.0
        %691 = vmatpush1.msra.mxu0 0.0
        %692 = vmatprep.subr.mxu0 0.0
        %693 = vmatpush1.msra.mxu0 0.0
        %694 = vmatprep.subr.mxu0 0.0
        %695 = vmatpush1.msra.mxu0 0.0
        %696 = vmatprep.subr.mxu0 0.0
        %697 = vmatpush1.msra.mxu0 0.0
        %698 = vmatprep.subr.mxu0 0.0
        %699 = vmatpush1.msra.mxu0 0.0
        %700 = vmatprep.subr.mxu0 0.0
        %701 = vmatpush1.msra.mxu0 0.0
        %702 = vmatprep.subr.mxu0 0.0
        %703 = vmatpush1.msra.mxu0 0.0
        %704 = vmatprep.subr.mxu0 0.0
        %705 = vmatpush1.msra.mxu0 0.0
        %706 = vmatprep.subr.mxu0 0.0
        %707 = vmatpush1.msra.mxu0 0.0
        %708 = vmatprep.subr.mxu0 0.0
        %709 = vmatpush1.msra.mxu0 0.0
        %710 = vmatprep.subr.mxu0 0.0
        %711 = vmatpush1.msra.mxu0 0.0
        %712 = vmatprep.subr.mxu0 0.0
        %713 = vmatpush1.msra.mxu0 0.0
        %714 = vmatprep.subr.mxu0 0.0
        %715 = vmatpush1.msra.mxu0 0.0
        %716 = vmatprep.subr.mxu0 0.0
        %717 = vmatpush1.msra.mxu0 0.0
        %718 = vmatprep.subr.mxu0 0.0
        %719 = vmatpush1.msra.mxu0 0.0
        %720 = vmatprep.subr.mxu0 0.0
        %721 = vmatpush1.msra.mxu0 0.0
        %722 = vmatprep.subr.mxu0 0.0
        %723 = vmatpush1.msra.mxu0 0.0
        %724 = vmatprep.subr.mxu0 0.0
        %725 = vmatpush1.msra.mxu0 0.0
        %726 = vmatprep.mubr.f32.mxu0 0.0
        %v727 = vand.u32 %v327, 4294901760
        %v728 = vsub.f32 %v327, %v727
        %729 = vmatmul.mubr.f32.gmra.mrb[0].mxu0 %v728
        %v730 = vpop.f32.mrb[0].mxu0
        %v731 = vadd.f32 %v601, %v730
        %v732 = vpop.f32.mrb[0].mxu0
        %733 = vmatprep.mubr.f32.mxu0 0.0
        %v734 = vand.u32 %v330, 4294901760
        %v735 = vsub.f32 %v330, %v734
        %736 = vmatmul.mubr.f32.gmra.mrb[0].mxu0 %v735
        %v737 = vpop.f32.mrb[0].mxu0
        %v738 = vadd.f32 %v607, %v737
        %v739 = vpop.f32.mrb[0].mxu0
        %740 = vmatprep.mubr.f32.mxu0 0.0
        %v741 = vand.u32 %v333, 4294901760
        %v742 = vsub.f32 %v333, %v741
        %743 = vmatmul.mubr.f32.gmra.mrb[0].mxu0 %v742
        %v744 = vpop.f32.mrb[0].mxu0
        %v745 = vadd.f32 %v613, %v744
        %v746 = vpop.f32.mrb[0].mxu0
        %747 = vmatprep.mubr.f32.mxu0 0.0
        %v748 = vand.u32 %v336, 4294901760
        %v749 = vsub.f32 %v336, %v748
        %750 = vmatmul.mubr.f32.gmra.mrb[0].mxu0 %v749
        %v751 = vpop.f32.mrb[0].mxu0
        %v752 = vadd.f32 %v619, %v751
        %v753 = vpop.f32.mrb[0].mxu0
        %754 = vmatprep.mubr.f32.mxu0 0.0
        %v755 = vand.u32 %v339, 4294901760
        %v756 = vsub.f32 %v339, %v755
        %757 = vmatmul.mubr.f32.gmra.mrb[0].mxu0 %v756
        %v758 = vpop.f32.mrb[0].mxu0
        %v759 = vadd.f32 %v625, %v758
        %v760 = vpop.f32.mrb[0].mxu0
        %761 = vmatprep.mubr.f32.mxu0 0.0
        %v762 = vand.u32 %v342, 4294901760
        %v763 = vsub.f32 %v342, %v762
        %764 = vmatmul.mubr.f32.gmra.mrb[0].mxu0 %v763
        %v765 = vpop.f32.mrb[0].mxu0
        %v766 = vadd.f32 %v631, %v765
        %v767 = vpop.f32.mrb[0].mxu0
        %768 = vmatprep.mubr.f32.mxu0 0.0
        %v769 = vand.u32 %v345, 4294901760
        %v770 = vsub.f32 %v345, %v769
        %771 = vmatmul.mubr.f32.gmra.mrb[0].mxu0 %v770
        %v772 = vpop.f32.mrb[0].mxu0
        %v773 = vadd.f32 %v637, %v772
        %v774 = vpop.f32.mrb[0].mxu0
        %775 = vmatprep.mubr.f32.mxu0 0.0
        %v776 = vand.u32 %v348, 4294901760
        %v777 = vsub.f32 %v348, %v776
        %778 = vmatmul.mubr.f32.gmra.mrb[0].mxu0 %v777
        %v779 = vpop.f32.mrb[0].mxu0
        %v780 = vadd.f32 %v643, %v779
        %v781 = vpop.f32.mrb[0].mxu0
        %782 = vmatprep.mubr.f32.mxu0 0.0
        %v783 = vand.u32 %v351, 4294901760
        %v784 = vsub.f32 %v351, %v783
        %785 = vmatmul.mubr.f32.gmra.mrb[0].mxu0 %v784
        %v786 = vpop.f32.mrb[0].mxu0
        %v787 = vadd.f32 %v649, %v786
        %v788 = vpop.f32.mrb[0].mxu0
        %789 = vmatprep.mubr.f32.mxu0 0.0
        %v790 = vand.u32 %v354, 4294901760
        %v791 = vsub.f32 %v354, %v790
        %792 = vmatmul.mubr.f32.gmra.mrb[0].mxu0 %v791
        %v793 = vpop.f32.mrb[0].mxu0
        %v794 = vadd.f32 %v655, %v793
        %v795 = vpop.f32.mrb[0].mxu0
        %796 = vdwg.mxu0
        %797 = vmatprep.subr.mxu0 0.0
        %v798 = vand.u32 %v316, 4294901760
        %799 = vmatpush1.msra.mxu0 %v798
        %800 = vmatprep.subr.mxu0 0.0
        %v801 = vand.u32 %v317, 4294901760
        %802 = vmatpush1.msra.mxu0 %v801
        %803 = vmatprep.subr.mxu0 0.0
        %804 = vmatpush1.msra.mxu0 0.0
        %805 = vmatprep.subr.mxu0 0.0
        %806 = vmatpush1.msra.mxu0 0.0
        %807 = vmatprep.subr.mxu0 0.0
        %808 = vmatpush1.msra.mxu0 0.0
        %809 = vmatprep.subr.mxu0 0.0
        %810 = vmatpush1.msra.mxu0 0.0
        %811 = vmatprep.subr.mxu0 0.0
        %812 = vmatpush1.msra.mxu0 0.0
        %813 = vmatprep.subr.mxu0 0.0
        %814 = vmatpush1.msra.mxu0 0.0
        %815 = vmatprep.subr.mxu0 0.0
        %816 = vmatpush1.msra.mxu0 0.0
        %817 = vmatprep.subr.mxu0 0.0
        %818 = vmatpush1.msra.mxu0 0.0
        %819 = vmatprep.subr.mxu0 0.0
        %820 = vmatpush1.msra.mxu0 0.0
        %821 = vmatprep.subr.mxu0 0.0
        %822 = vmatpush1.msra.mxu0 0.0
        %823 = vmatprep.subr.mxu0 0.0
        %824 = vmatpush1.msra.mxu0 0.0
        %825 = vmatprep.subr.mxu0 0.0
        %826 = vmatpush1.msra.mxu0 0.0
        %827 = vmatprep.subr.mxu0 0.0
        %828 = vmatpush1.msra.mxu0 0.0
        %829 = vmatprep.subr.mxu0 0.0
        %830 = vmatpush1.msra.mxu0 0.0
        %831 = vmatprep.subr.mxu0 0.0
        %832 = vmatpush1.msra.mxu0 0.0
        %833 = vmatprep.subr.mxu0 0.0
        %834 = vmatpush1.msra.mxu0 0.0
        %835 = vmatprep.subr.mxu0 0.0
        %836 = vmatpush1.msra.mxu0 0.0
        %837 = vmatprep.subr.mxu0 0.0
        %838 = vmatpush1.msra.mxu0 0.0
        %839 = vmatprep.subr.mxu0 0.0
        %840 = vmatpush1.msra.mxu0 0.0
        %841 = vmatprep.subr.mxu0 0.0
        %842 = vmatpush1.msra.mxu0 0.0
        %843 = vmatprep.subr.mxu0 0.0
        %844 = vmatpush1.msra.mxu0 0.0
        %845 = vmatprep.subr.mxu0 0.0
        %846 = vmatpush1.msra.mxu0 0.0
        %847 = vmatprep.subr.mxu0 0.0
        %848 = vmatpush1.msra.mxu0 0.0
        %849 = vmatprep.subr.mxu0 0.0
        %850 = vmatpush1.msra.mxu0 0.0
        %851 = vmatprep.subr.mxu0 0.0
        %852 = vmatpush1.msra.mxu0 0.0
        %853 = vmatprep.subr.mxu0 0.0
        %854 = vmatpush1.msra.mxu0 0.0
        %855 = vmatprep.subr.mxu0 0.0
        %856 = vmatpush1.msra.mxu0 0.0
        %857 = vmatprep.subr.mxu0 0.0
        %858 = vmatpush1.msra.mxu0 0.0
        %859 = vmatprep.subr.mxu0 0.0
        %860 = vmatpush1.msra.mxu0 0.0
        %861 = vmatprep.subr.mxu0 0.0
        %862 = vmatpush1.msra.mxu0 0.0
        %863 = vmatprep.mubr.f32.mxu0 0.0
        %v864 = vand.u32 %v327, 4294901760
        %v865 = vsub.f32 %v327, %v864
        %v866 = vand.u32 %v865, 4294901760
        %867 = vmatmul.mubr.f32.gmra.mrb[0].mxu0 %v866
        %v868 = vpop.f32.mrb[0].mxu0
        %v869 = vadd.f32 %v731, %v868
        %v870 = vpop.f32.mrb[0].mxu0
        %871 = vmatprep.mubr.f32.mxu0 0.0
        %v872 = vand.u32 %v330, 4294901760
        %v873 = vsub.f32 %v330, %v872
        %v874 = vand.u32 %v873, 4294901760
        %875 = vmatmul.mubr.f32.gmra.mrb[0].mxu0 %v874
        %v876 = vpop.f32.mrb[0].mxu0
        %v877 = vadd.f32 %v738, %v876
        %v878 = vpop.f32.mrb[0].mxu0
        %879 = vmatprep.mubr.f32.mxu0 0.0
        %v880 = vand.u32 %v333, 4294901760
        %v881 = vsub.f32 %v333, %v880
        %v882 = vand.u32 %v881, 4294901760
        %883 = vmatmul.mubr.f32.gmra.mrb[0].mxu0 %v882
        %v884 = vpop.f32.mrb[0].mxu0
        %v885 = vadd.f32 %v745, %v884
        %v886 = vpop.f32.mrb[0].mxu0
        %887 = vmatprep.mubr.f32.mxu0 0.0
        %v888 = vand.u32 %v336, 4294901760
        %v889 = vsub.f32 %v336, %v888
        %v890 = vand.u32 %v889, 4294901760
        %891 = vmatmul.mubr.f32.gmra.mrb[0].mxu0 %v890
        %v892 = vpop.f32.mrb[0].mxu0
        %v893 = vadd.f32 %v752, %v892
        %v894 = vpop.f32.mrb[0].mxu0
        %895 = vmatprep.mubr.f32.mxu0 0.0
        %v896 = vand.u32 %v339, 4294901760
        %v897 = vsub.f32 %v339, %v896
        %v898 = vand.u32 %v897, 4294901760
        %899 = vmatmul.mubr.f32.gmra.mrb[0].mxu0 %v898
        %v900 = vpop.f32.mrb[0].mxu0
        %v901 = vadd.f32 %v759, %v900
        %v902 = vpop.f32.mrb[0].mxu0
        %903 = vmatprep.mubr.f32.mxu0 0.0
        %v904 = vand.u32 %v342, 4294901760
        %v905 = vsub.f32 %v342, %v904
        %v906 = vand.u32 %v905, 4294901760
        %907 = vmatmul.mubr.f32.gmra.mrb[0].mxu0 %v906
        %v908 = vpop.f32.mrb[0].mxu0
        %v909 = vadd.f32 %v766, %v908
        %v910 = vpop.f32.mrb[0].mxu0
        %911 = vmatprep.mubr.f32.mxu0 0.0
        %v912 = vand.u32 %v345, 4294901760
        %v913 = vsub.f32 %v345, %v912
        %v914 = vand.u32 %v913, 4294901760
        %915 = vmatmul.mubr.f32.gmra.mrb[0].mxu0 %v914
        %v916 = vpop.f32.mrb[0].mxu0
        %v917 = vadd.f32 %v773, %v916
        %v918 = vpop.f32.mrb[0].mxu0
        %919 = vmatprep.mubr.f32.mxu0 0.0
        %v920 = vand.u32 %v348, 4294901760
        %v921 = vsub.f32 %v348, %v920
        %v922 = vand.u32 %v921, 4294901760
        %923 = vmatmul.mubr.f32.gmra.mrb[0].mxu0 %v922
        %v924 = vpop.f32.mrb[0].mxu0
        %v925 = vadd.f32 %v780, %v924
        %v926 = vpop.f32.mrb[0].mxu0
        %927 = vmatprep.mubr.f32.mxu0 0.0
        %v928 = vand.u32 %v351, 4294901760
        %v929 = vsub.f32 %v351, %v928
        %v930 = vand.u32 %v929, 4294901760
        %931 = vmatmul.mubr.f32.gmra.mrb[0].mxu0 %v930
        %v932 = vpop.f32.mrb[0].mxu0
        %v933 = vadd.f32 %v787, %v932
        %v934 = vpop.f32.mrb[0].mxu0
        %935 = vmatprep.mubr.f32.mxu0 0.0
        %v936 = vand.u32 %v354, 4294901760
        %v937 = vsub.f32 %v354, %v936
        %v938 = vand.u32 %v937, 4294901760
        %939 = vmatmul.mubr.f32.gmra.mrb[0].mxu0 %v938
        %v940 = vpop.f32.mrb[0].mxu0
        %v941 = vadd.f32 %v794, %v940
        %v942 = vpop.f32.mrb[0].mxu0
        %943 = vdwg.mxu0
        %944 = vmatprep.subr.mxu0 0.0
        %v945 = vand.u32 %v316, 4294901760
        %v946 = vsub.f32 %v316, %v945
        %v947 = vand.u32 %v946, 4294901760
        %948 = vmatpush1.msra.mxu0 %v947
        %949 = vmatprep.subr.mxu0 0.0
        %v950 = vand.u32 %v317, 4294901760
        %v951 = vsub.f32 %v317, %v950
        %v952 = vand.u32 %v951, 4294901760
        %953 = vmatpush1.msra.mxu0 %v952
        %954 = vmatprep.subr.mxu0 0.0
        %955 = vmatpush1.msra.mxu0 0.0
        %956 = vmatprep.subr.mxu0 0.0
        %957 = vmatpush1.msra.mxu0 0.0
        %958 = vmatprep.subr.mxu0 0.0
        %959 = vmatpush1.msra.mxu0 0.0
        %960 = vmatprep.subr.mxu0 0.0
        %961 = vmatpush1.msra.mxu0 0.0
        %962 = vmatprep.subr.mxu0 0.0
        %963 = vmatpush1.msra.mxu0 0.0
        %964 = vmatprep.subr.mxu0 0.0
        %965 = vmatpush1.msra.mxu0 0.0
        %966 = vmatprep.subr.mxu0 0.0
        %967 = vmatpush1.msra.mxu0 0.0
        %968 = vmatprep.subr.mxu0 0.0
        %969 = vmatpush1.msra.mxu0 0.0
        %970 = vmatprep.subr.mxu0 0.0
        %971 = vmatpush1.msra.mxu0 0.0
        %972 = vmatprep.subr.mxu0 0.0
        %973 = vmatpush1.msra.mxu0 0.0
        %974 = vmatprep.subr.mxu0 0.0
        %975 = vmatpush1.msra.mxu0 0.0
        %976 = vmatprep.subr.mxu0 0.0
        %977 = vmatpush1.msra.mxu0 0.0
        %978 = vmatprep.subr.mxu0 0.0
        %979 = vmatpush1.msra.mxu0 0.0
        %980 = vmatprep.subr.mxu0 0.0
        %981 = vmatpush1.msra.mxu0 0.0
        %982 = vmatprep.subr.mxu0 0.0
        %983 = vmatpush1.msra.mxu0 0.0
        %984 = vmatprep.subr.mxu0 0.0
        %985 = vmatpush1.msra.mxu0 0.0
        %986 = vmatprep.subr.mxu0 0.0
        %987 = vmatpush1.msra.mxu0 0.0
        %988 = vmatprep.subr.mxu0 0.0
        %989 = vmatpush1.msra.mxu0 0.0
        %990 = vmatprep.subr.mxu0 0.0
        %991 = vmatpush1.msra.mxu0 0.0
        %992 = vmatprep.subr.mxu0 0.0
        %993 = vmatpush1.msra.mxu0 0.0
        %994 = vmatprep.subr.mxu0 0.0
        %995 = vmatpush1.msra.mxu0 0.0
        %996 = vmatprep.subr.mxu0 0.0
        %997 = vmatpush1.msra.mxu0 0.0
        %998 = vmatprep.subr.mxu0 0.0
        %999 = vmatpush1.msra.mxu0 0.0
        %1000 = vmatprep.subr.mxu0 0.0
        %1001 = vmatpush1.msra.mxu0 0.0
        %1002 = vmatprep.subr.mxu0 0.0
        %1003 = vmatpush1.msra.mxu0 0.0
        %1004 = vmatprep.subr.mxu0 0.0
        %1005 = vmatpush1.msra.mxu0 0.0
        %1006 = vmatprep.subr.mxu0 0.0
        %1007 = vmatpush1.msra.mxu0 0.0
        %1008 = vmatprep.subr.mxu0 0.0
        %1009 = vmatpush1.msra.mxu0 0.0
        %1010 = vmatprep.subr.mxu0 0.0
        %1011 = vmatpush1.msra.mxu0 0.0
        %1012 = vmatprep.subr.mxu0 0.0
        %1013 = vmatpush1.msra.mxu0 0.0
        %1014 = vmatprep.mubr.f32.mxu0 0.0
        %v1015 = vand.u32 %v327, 4294901760
        %1016 = vmatmul.mubr.f32.gmra.mrb[0].mxu0 %v1015
        %v1017 = vpop.f32.mrb[0].mxu0
        %v1018 = vadd.f32 %v869, %v1017
        %v1019 = vpop.f32.mrb[0].mxu0
        %1020 = vmatprep.mubr.f32.mxu0 0.0
        %v1021 = vand.u32 %v330, 4294901760
        %1022 = vmatmul.mubr.f32.gmra.mrb[0].mxu0 %v1021
        %v1023 = vpop.f32.mrb[0].mxu0
        %v1024 = vadd.f32 %v877, %v1023
        %v1025 = vpop.f32.mrb[0].mxu0
        %1026 = vmatprep.mubr.f32.mxu0 0.0
        %v1027 = vand.u32 %v333, 4294901760
        %1028 = vmatmul.mubr.f32.gmra.mrb[0].mxu0 %v1027
        %v1029 = vpop.f32.mrb[0].mxu0
        %v1030 = vadd.f32 %v885, %v1029
        %v1031 = vpop.f32.mrb[0].mxu0
        %1032 = vmatprep.mubr.f32.mxu0 0.0
        %v1033 = vand.u32 %v336, 4294901760
        %1034 = vmatmul.mubr.f32.gmra.mrb[0].mxu0 %v1033
        %v1035 = vpop.f32.mrb[0].mxu0
        %v1036 = vadd.f32 %v893, %v1035
        %v1037 = vpop.f32.mrb[0].mxu0
        %1038 = vmatprep.mubr.f32.mxu0 0.0
        %v1039 = vand.u32 %v339, 4294901760
        %1040 = vmatmul.mubr.f32.gmra.mrb[0].mxu0 %v1039
        %v1041 = vpop.f32.mrb[0].mxu0
        %v1042 = vadd.f32 %v901, %v1041
        %v1043 = vpop.f32.mrb[0].mxu0
        %1044 = vmatprep.mubr.f32.mxu0 0.0
        %v1045 = vand.u32 %v342, 4294901760
        %1046 = vmatmul.mubr.f32.gmra.mrb[0].mxu0 %v1045
        %v1047 = vpop.f32.mrb[0].mxu0
        %v1048 = vadd.f32 %v909, %v1047
        %v1049 = vpop.f32.mrb[0].mxu0
        %1050 = vmatprep.mubr.f32.mxu0 0.0
        %v1051 = vand.u32 %v345, 4294901760
        %1052 = vmatmul.mubr.f32.gmra.mrb[0].mxu0 %v1051
        %v1053 = vpop.f32.mrb[0].mxu0
        %v1054 = vadd.f32 %v917, %v1053
        %v1055 = vpop.f32.mrb[0].mxu0
        %1056 = vmatprep.mubr.f32.mxu0 0.0
        %v1057 = vand.u32 %v348, 4294901760
        %1058 = vmatmul.mubr.f32.gmra.mrb[0].mxu0 %v1057
        %v1059 = vpop.f32.mrb[0].mxu0
        %v1060 = vadd.f32 %v925, %v1059
        %v1061 = vpop.f32.mrb[0].mxu0
        %1062 = vmatprep.mubr.f32.mxu0 0.0
        %v1063 = vand.u32 %v351, 4294901760
        %1064 = vmatmul.mubr.f32.gmra.mrb[0].mxu0 %v1063
        %v1065 = vpop.f32.mrb[0].mxu0
        %v1066 = vadd.f32 %v933, %v1065
        %v1067 = vpop.f32.mrb[0].mxu0
        %1068 = vmatprep.mubr.f32.mxu0 0.0
        %v1069 = vand.u32 %v354, 4294901760
        %1070 = vmatmul.mubr.f32.gmra.mrb[0].mxu0 %v1069
        %v1071 = vpop.f32.mrb[0].mxu0
        %v1072 = vadd.f32 %v941, %v1071
        %v1073 = vpop.f32.mrb[0].mxu0
        %1074 = vdwg.mxu0
        %1075 = vmatprep.subr.mxu0 0.0
        %v1076 = vand.u32 %v316, 4294901760
        %1077 = vmatpush1.msra.mxu0 %v1076
        %1078 = vmatprep.subr.mxu0 0.0
        %v1079 = vand.u32 %v317, 4294901760
        %1080 = vmatpush1.msra.mxu0 %v1079
        %1081 = vmatprep.subr.mxu0 0.0
        %1082 = vmatpush1.msra.mxu0 0.0
        %1083 = vmatprep.subr.mxu0 0.0
        %1084 = vmatpush1.msra.mxu0 0.0
        %1085 = vmatprep.subr.mxu0 0.0
        %1086 = vmatpush1.msra.mxu0 0.0
        %1087 = vmatprep.subr.mxu0 0.0
        %1088 = vmatpush1.msra.mxu0 0.0
        %1089 = vmatprep.subr.mxu0 0.0
        %1090 = vmatpush1.msra.mxu0 0.0
        %1091 = vmatprep.subr.mxu0 0.0
        %1092 = vmatpush1.msra.mxu0 0.0
        %1093 = vmatprep.subr.mxu0 0.0
        %1094 = vmatpush1.msra.mxu0 0.0
        %1095 = vmatprep.subr.mxu0 0.0
        %1096 = vmatpush1.msra.mxu0 0.0
        %1097 = vmatprep.subr.mxu0 0.0
        %1098 = vmatpush1.msra.mxu0 0.0
        %1099 = vmatprep.subr.mxu0 0.0
        %1100 = vmatpush1.msra.mxu0 0.0
        %1101 = vmatprep.subr.mxu0 0.0
        %1102 = vmatpush1.msra.mxu0 0.0
        %1103 = vmatprep.subr.mxu0 0.0
        %1104 = vmatpush1.msra.mxu0 0.0
        %1105 = vmatprep.subr.mxu0 0.0
        %1106 = vmatpush1.msra.mxu0 0.0
        %1107 = vmatprep.subr.mxu0 0.0
        %1108 = vmatpush1.msra.mxu0 0.0
        %1109 = vmatprep.subr.mxu0 0.0
        %1110 = vmatpush1.msra.mxu0 0.0
        %1111 = vmatprep.subr.mxu0 0.0
        %1112 = vmatpush1.msra.mxu0 0.0
        %1113 = vmatprep.subr.mxu0 0.0
        %1114 = vmatpush1.msra.mxu0 0.0
        %1115 = vmatprep.subr.mxu0 0.0
        %1116 = vmatpush1.msra.mxu0 0.0
        %1117 = vmatprep.subr.mxu0 0.0
        %1118 = vmatpush1.msra.mxu0 0.0
        %1119 = vmatprep.subr.mxu0 0.0
        %1120 = vmatpush1.msra.mxu0 0.0
        %1121 = vmatprep.subr.mxu0 0.0
        %1122 = vmatpush1.msra.mxu0 0.0
        %1123 = vmatprep.subr.mxu0 0.0
        %1124 = vmatpush1.msra.mxu0 0.0
        %1125 = vmatprep.subr.mxu0 0.0
        %1126 = vmatpush1.msra.mxu0 0.0
        %1127 = vmatprep.subr.mxu0 0.0
        %1128 = vmatpush1.msra.mxu0 0.0
        %1129 = vmatprep.subr.mxu0 0.0
        %1130 = vmatpush1.msra.mxu0 0.0
        %1131 = vmatprep.subr.mxu0 0.0
        %1132 = vmatpush1.msra.mxu0 0.0
        %1133 = vmatprep.subr.mxu0 0.0
        %1134 = vmatpush1.msra.mxu0 0.0
        %1135 = vmatprep.subr.mxu0 0.0
        %1136 = vmatpush1.msra.mxu0 0.0
        %1137 = vmatprep.subr.mxu0 0.0
        %1138 = vmatpush1.msra.mxu0 0.0
        %1139 = vmatprep.subr.mxu0 0.0
        %1140 = vmatpush1.msra.mxu0 0.0
        %1141 = vmatprep.mubr.f32.mxu0 0.0
        %v1142 = vand.u32 %v327, 4294901760
        %1143 = vmatmul.mubr.f32.gmra.mrb[0].mxu0 %v1142
        %v1144 = vpop.f32.mrb[0].mxu0
        %v1145 = vadd.f32 %v1018, %v1144
        %v1146 = vpop.f32.mrb[0].mxu0
        %1147 = vmatprep.mubr.f32.mxu0 0.0
        %v1148 = vand.u32 %v330, 4294901760
        %1149 = vmatmul.mubr.f32.gmra.mrb[0].mxu0 %v1148
        %v1150 = vpop.f32.mrb[0].mxu0
        %v1151 = vadd.f32 %v1024, %v1150
        %v1152 = vpop.f32.mrb[0].mxu0
        %1153 = vmatprep.mubr.f32.mxu0 0.0
        %v1154 = vand.u32 %v333, 4294901760
        %1155 = vmatmul.mubr.f32.gmra.mrb[0].mxu0 %v1154
        %v1156 = vpop.f32.mrb[0].mxu0
        %v1157 = vadd.f32 %v1030, %v1156
        %v1158 = vpop.f32.mrb[0].mxu0
        %1159 = vmatprep.mubr.f32.mxu0 0.0
        %v1160 = vand.u32 %v336, 4294901760
        %1161 = vmatmul.mubr.f32.gmra.mrb[0].mxu0 %v1160
        %v1162 = vpop.f32.mrb[0].mxu0
        %v1163 = vadd.f32 %v1036, %v1162
        %v1164 = vpop.f32.mrb[0].mxu0
        %1165 = vmatprep.mubr.f32.mxu0 0.0
        %v1166 = vand.u32 %v339, 4294901760
        %1167 = vmatmul.mubr.f32.gmra.mrb[0].mxu0 %v1166
        %v1168 = vpop.f32.mrb[0].mxu0
        %v1169 = vadd.f32 %v1042, %v1168
        %v1170 = vpop.f32.mrb[0].mxu0
        %1171 = vmatprep.mubr.f32.mxu0 0.0
        %v1172 = vand.u32 %v342, 4294901760
        %1173 = vmatmul.mubr.f32.gmra.mrb[0].mxu0 %v1172
        %v1174 = vpop.f32.mrb[0].mxu0
        %v1175 = vadd.f32 %v1048, %v1174
        %v1176 = vpop.f32.mrb[0].mxu0
        %1177 = vmatprep.mubr.f32.mxu0 0.0
        %v1178 = vand.u32 %v345, 4294901760
        %1179 = vmatmul.mubr.f32.gmra.mrb[0].mxu0 %v1178
        %v1180 = vpop.f32.mrb[0].mxu0
        %v1181 = vadd.f32 %v1054, %v1180
        %v1182 = vpop.f32.mrb[0].mxu0
        %1183 = vmatprep.mubr.f32.mxu0 0.0
        %v1184 = vand.u32 %v348, 4294901760
        %1185 = vmatmul.mubr.f32.gmra.mrb[0].mxu0 %v1184
        %v1186 = vpop.f32.mrb[0].mxu0
        %v1187 = vadd.f32 %v1060, %v1186
        %v1188 = vpop.f32.mrb[0].mxu0
        %1189 = vmatprep.mubr.f32.mxu0 0.0
        %v1190 = vand.u32 %v351, 4294901760
        %1191 = vmatmul.mubr.f32.gmra.mrb[0].mxu0 %v1190
        %v1192 = vpop.f32.mrb[0].mxu0
        %v1193 = vadd.f32 %v1066, %v1192
        %v1194 = vpop.f32.mrb[0].mxu0
        %1195 = vmatprep.mubr.f32.mxu0 0.0
        %v1196 = vand.u32 %v354, 4294901760
        %1197 = vmatmul.mubr.f32.gmra.mrb[0].mxu0 %v1196
        %v1198 = vpop.f32.mrb[0].mxu0
        %v1199 = vadd.f32 %v1072, %v1198
        %v1200 = vpop.f32.mrb[0].mxu0
        %1201 = vdwg.mxu0
        %v1203 = vsel %vm325, %v318, 0
        %1205 = vmatprep.subr.mxu0 0.0
        %v1206 = vand.u32 %v1145, 4294901760
        %1207 = vmatpush1.msra.mxu0 %v1206
        %1208 = vmatprep.subr.mxu0 0.0
        %v1209 = vand.u32 %v1151, 4294901760
        %1210 = vmatpush1.msra.mxu0 %v1209
        %1211 = vmatprep.subr.mxu0 0.0
        %1212 = vmatpush1.msra.mxu0 0.0
        %1213 = vmatprep.subr.mxu0 0.0
        %1214 = vmatpush1.msra.mxu0 0.0
        %1215 = vmatprep.subr.mxu0 0.0
        %1216 = vmatpush1.msra.mxu0 0.0
        %1217 = vmatprep.subr.mxu0 0.0
        %1218 = vmatpush1.msra.mxu0 0.0
        %1219 = vmatprep.subr.mxu0 0.0
        %1220 = vmatpush1.msra.mxu0 0.0
        %1221 = vmatprep.subr.mxu0 0.0
        %1222 = vmatpush1.msra.mxu0 0.0
        %1223 = vmatprep.subr.mxu0 0.0
        %1224 = vmatpush1.msra.mxu0 0.0
        %1225 = vmatprep.subr.mxu0 0.0
        %1226 = vmatpush1.msra.mxu0 0.0
        %1227 = vmatprep.subr.mxu0 0.0
        %1228 = vmatpush1.msra.mxu0 0.0
        %1229 = vmatprep.subr.mxu0 0.0
        %1230 = vmatpush1.msra.mxu0 0.0
        %1231 = vmatprep.subr.mxu0 0.0
        %1232 = vmatpush1.msra.mxu0 0.0
        %1233 = vmatprep.subr.mxu0 0.0
        %1234 = vmatpush1.msra.mxu0 0.0
        %1235 = vmatprep.subr.mxu0 0.0
        %1236 = vmatpush1.msra.mxu0 0.0
        %1237 = vmatprep.subr.mxu0 0.0
        %1238 = vmatpush1.msra.mxu0 0.0
        %1239 = vmatprep.subr.mxu0 0.0
        %1240 = vmatpush1.msra.mxu0 0.0
        %1241 = vmatprep.subr.mxu0 0.0
        %1242 = vmatpush1.msra.mxu0 0.0
        %1243 = vmatprep.subr.mxu0 0.0
        %1244 = vmatpush1.msra.mxu0 0.0
        %1245 = vmatprep.subr.mxu0 0.0
        %1246 = vmatpush1.msra.mxu0 0.0
        %1247 = vmatprep.subr.mxu0 0.0
        %1248 = vmatpush1.msra.mxu0 0.0
        %1249 = vmatprep.subr.mxu0 0.0
        %1250 = vmatpush1.msra.mxu0 0.0
        %1251 = vmatprep.subr.mxu0 0.0
        %1252 = vmatpush1.msra.mxu0 0.0
        %1253 = vmatprep.subr.mxu0 0.0
        %1254 = vmatpush1.msra.mxu0 0.0
        %1255 = vmatprep.subr.mxu0 0.0
        %1256 = vmatpush1.msra.mxu0 0.0
        %1257 = vmatprep.subr.mxu0 0.0
        %1258 = vmatpush1.msra.mxu0 0.0
        %1259 = vmatprep.subr.mxu0 0.0
        %1260 = vmatpush1.msra.mxu0 0.0
        %1261 = vmatprep.subr.mxu0 0.0
        %1262 = vmatpush1.msra.mxu0 0.0
        %1263 = vmatprep.subr.mxu0 0.0
        %1264 = vmatpush1.msra.mxu0 0.0
        %1265 = vmatprep.subr.mxu0 0.0
        %1266 = vmatpush1.msra.mxu0 0.0
        %1267 = vmatprep.subr.mxu0 0.0
        %1268 = vmatpush1.msra.mxu0 0.0
        %1269 = vmatprep.subr.mxu0 0.0
        %1270 = vmatpush1.msra.mxu0 0.0
        %1271 = vmatprep.mubr.f32.mxu0 0.0
        %v1272 = vand.u32 %v1203, 4294901760
        %v1273 = vsub.f32 %v1203, %v1272
        %v1274 = vand.u32 %v1273, 4294901760
        %v1275 = vsub.f32 %v1273, %v1274
        %v1276 = vand.u32 %v1275, 4294901760
        %1277 = vmatmul.mubr.f32.gmra.mrb[0].mxu0 %v1276
        %v1278 = vpop.f32.mrb[0].mxu0
        %v1279 = vadd.f32 0.0, %v1278
        %v1280 = vpop.f32.mrb[0].mxu0
        %1281 = vdwg.mxu0
        %1282 = vmatprep.subr.mxu0 0.0
        %v1283 = vand.u32 %v1145, 4294901760
        %v1284 = vsub.f32 %v1145, %v1283
        %v1285 = vand.u32 %v1284, 4294901760
        %v1286 = vsub.f32 %v1284, %v1285
        %v1287 = vand.u32 %v1286, 4294901760
        %1288 = vmatpush1.msra.mxu0 %v1287
        %1289 = vmatprep.subr.mxu0 0.0
        %v1290 = vand.u32 %v1151, 4294901760
        %v1291 = vsub.f32 %v1151, %v1290
        %v1292 = vand.u32 %v1291, 4294901760
        %v1293 = vsub.f32 %v1291, %v1292
        %v1294 = vand.u32 %v1293, 4294901760
        %1295 = vmatpush1.msra.mxu0 %v1294
        %1296 = vmatprep.subr.mxu0 0.0
        %1297 = vmatpush1.msra.mxu0 0.0
        %1298 = vmatprep.subr.mxu0 0.0
        %1299 = vmatpush1.msra.mxu0 0.0
        %1300 = vmatprep.subr.mxu0 0.0
        %1301 = vmatpush1.msra.mxu0 0.0
        %1302 = vmatprep.subr.mxu0 0.0
        %1303 = vmatpush1.msra.mxu0 0.0
        %1304 = vmatprep.subr.mxu0 0.0
        %1305 = vmatpush1.msra.mxu0 0.0
        %1306 = vmatprep.subr.mxu0 0.0
        %1307 = vmatpush1.msra.mxu0 0.0
        %1308 = vmatprep.subr.mxu0 0.0
        %1309 = vmatpush1.msra.mxu0 0.0
        %1310 = vmatprep.subr.mxu0 0.0
        %1311 = vmatpush1.msra.mxu0 0.0
        %1312 = vmatprep.subr.mxu0 0.0
        %1313 = vmatpush1.msra.mxu0 0.0
        %1314 = vmatprep.subr.mxu0 0.0
        %1315 = vmatpush1.msra.mxu0 0.0
        %1316 = vmatprep.subr.mxu0 0.0
        %1317 = vmatpush1.msra.mxu0 0.0
        %1318 = vmatprep.subr.mxu0 0.0
        %1319 = vmatpush1.msra.mxu0 0.0
        %1320 = vmatprep.subr.mxu0 0.0
        %1321 = vmatpush1.msra.mxu0 0.0
        %1322 = vmatprep.subr.mxu0 0.0
        %1323 = vmatpush1.msra.mxu0 0.0
        %1324 = vmatprep.subr.mxu0 0.0
        %1325 = vmatpush1.msra.mxu0 0.0
        %1326 = vmatprep.subr.mxu0 0.0
        %1327 = vmatpush1.msra.mxu0 0.0
        %1328 = vmatprep.subr.mxu0 0.0
        %1329 = vmatpush1.msra.mxu0 0.0
        %1330 = vmatprep.subr.mxu0 0.0
        %1331 = vmatpush1.msra.mxu0 0.0
        %1332 = vmatprep.subr.mxu0 0.0
        %1333 = vmatpush1.msra.mxu0 0.0
        %1334 = vmatprep.subr.mxu0 0.0
        %1335 = vmatpush1.msra.mxu0 0.0
        %1336 = vmatprep.subr.mxu0 0.0
        %1337 = vmatpush1.msra.mxu0 0.0
        %1338 = vmatprep.subr.mxu0 0.0
        %1339 = vmatpush1.msra.mxu0 0.0
        %1340 = vmatprep.subr.mxu0 0.0
        %1341 = vmatpush1.msra.mxu0 0.0
        %1342 = vmatprep.subr.mxu0 0.0
        %1343 = vmatpush1.msra.mxu0 0.0
        %1344 = vmatprep.subr.mxu0 0.0
        %1345 = vmatpush1.msra.mxu0 0.0
        %1346 = vmatprep.subr.mxu0 0.0
        %1347 = vmatpush1.msra.mxu0 0.0
        %1348 = vmatprep.subr.mxu0 0.0
        %1349 = vmatpush1.msra.mxu0 0.0
        %1350 = vmatprep.subr.mxu0 0.0
        %1351 = vmatpush1.msra.mxu0 0.0
        %1352 = vmatprep.subr.mxu0 0.0
        %1353 = vmatpush1.msra.mxu0 0.0
        %1354 = vmatprep.subr.mxu0 0.0
        %1355 = vmatpush1.msra.mxu0 0.0
        %1356 = vmatprep.mubr.f32.mxu0 0.0
        %v1357 = vand.u32 %v1203, 4294901760
        %1358 = vmatmul.mubr.f32.gmra.mrb[0].mxu0 %v1357
        %v1359 = vpop.f32.mrb[0].mxu0
        %v1360 = vadd.f32 %v1279, %v1359
        %v1361 = vpop.f32.mrb[0].mxu0
        %1362 = vdwg.mxu0
        %1363 = vmatprep.subr.mxu0 0.0
        %v1364 = vand.u32 %v1145, 4294901760
        %v1365 = vsub.f32 %v1145, %v1364
        %1366 = vmatpush1.msra.mxu0 %v1365
        %1367 = vmatprep.subr.mxu0 0.0
        %v1368 = vand.u32 %v1151, 4294901760
        %v1369 = vsub.f32 %v1151, %v1368
        %1370 = vmatpush1.msra.mxu0 %v1369
        %1371 = vmatprep.subr.mxu0 0.0
        %1372 = vmatpush1.msra.mxu0 0.0
        %1373 = vmatprep.subr.mxu0 0.0
        %1374 = vmatpush1.msra.mxu0 0.0
        %1375 = vmatprep.subr.mxu0 0.0
        %1376 = vmatpush1.msra.mxu0 0.0
        %1377 = vmatprep.subr.mxu0 0.0
        %1378 = vmatpush1.msra.mxu0 0.0
        %1379 = vmatprep.subr.mxu0 0.0
        %1380 = vmatpush1.msra.mxu0 0.0
        %1381 = vmatprep.subr.mxu0 0.0
        %1382 = vmatpush1.msra.mxu0 0.0
        %1383 = vmatprep.subr.mxu0 0.0
        %1384 = vmatpush1.msra.mxu0 0.0
        %1385 = vmatprep.subr.mxu0 0.0
        %1386 = vmatpush1.msra.mxu0 0.0
        %1387 = vmatprep.subr.mxu0 0.0
        %1388 = vmatpush1.msra.mxu0 0.0
        %1389 = vmatprep.subr.mxu0 0.0
        %1390 = vmatpush1.msra.mxu0 0.0
        %1391 = vmatprep.subr.mxu0 0.0
        %1392 = vmatpush1.msra.mxu0 0.0
        %1393 = vmatprep.subr.mxu0 0.0
        %1394 = vmatpush1.msra.mxu0 0.0
        %1395 = vmatprep.subr.mxu0 0.0
        %1396 = vmatpush1.msra.mxu0 0.0
        %1397 = vmatprep.subr.mxu0 0.0
        %1398 = vmatpush1.msra.mxu0 0.0
        %1399 = vmatprep.subr.mxu0 0.0
        %1400 = vmatpush1.msra.mxu0 0.0
        %1401 = vmatprep.subr.mxu0 0.0
        %1402 = vmatpush1.msra.mxu0 0.0
        %1403 = vmatprep.subr.mxu0 0.0
        %1404 = vmatpush1.msra.mxu0 0.0
        %1405 = vmatprep.subr.mxu0 0.0
        %1406 = vmatpush1.msra.mxu0 0.0
        %1407 = vmatprep.subr.mxu0 0.0
        %1408 = vmatpush1.msra.mxu0 0.0
        %1409 = vmatprep.subr.mxu0 0.0
        %1410 = vmatpush1.msra.mxu0 0.0
        %1411 = vmatprep.subr.mxu0 0.0
        %1412 = vmatpush1.msra.mxu0 0.0
        %1413 = vmatprep.subr.mxu0 0.0
        %1414 = vmatpush1.msra.mxu0 0.0
        %1415 = vmatprep.subr.mxu0 0.0
        %1416 = vmatpush1.msra.mxu0 0.0
        %1417 = vmatprep.subr.mxu0 0.0
        %1418 = vmatpush1.msra.mxu0 0.0
        %1419 = vmatprep.subr.mxu0 0.0
        %1420 = vmatpush1.msra.mxu0 0.0
        %1421 = vmatprep.subr.mxu0 0.0
        %1422 = vmatpush1.msra.mxu0 0.0
        %1423 = vmatprep.subr.mxu0 0.0
        %1424 = vmatpush1.msra.mxu0 0.0
        %1425 = vmatprep.subr.mxu0 0.0
        %1426 = vmatpush1.msra.mxu0 0.0
        %1427 = vmatprep.subr.mxu0 0.0
        %1428 = vmatpush1.msra.mxu0 0.0
        %1429 = vmatprep.subr.mxu0 0.0
        %1430 = vmatpush1.msra.mxu0 0.0
        %1431 = vmatprep.mubr.f32.mxu0 0.0
        %v1432 = vand.u32 %v1203, 4294901760
        %v1433 = vsub.f32 %v1203, %v1432
        %1434 = vmatmul.mubr.f32.gmra.mrb[0].mxu0 %v1433
        %v1435 = vpop.f32.mrb[0].mxu0
        %v1436 = vadd.f32 %v1360, %v1435
        %v1437 = vpop.f32.mrb[0].mxu0
        %1438 = vdwg.mxu0
        %1439 = vmatprep.subr.mxu0 0.0
        %v1440 = vand.u32 %v1145, 4294901760
        %1441 = vmatpush1.msra.mxu0 %v1440
        %1442 = vmatprep.subr.mxu0 0.0
        %v1443 = vand.u32 %v1151, 4294901760
        %1444 = vmatpush1.msra.mxu0 %v1443
        %1445 = vmatprep.subr.mxu0 0.0
        %1446 = vmatpush1.msra.mxu0 0.0
        %1447 = vmatprep.subr.mxu0 0.0
        %1448 = vmatpush1.msra.mxu0 0.0
        %1449 = vmatprep.subr.mxu0 0.0
        %1450 = vmatpush1.msra.mxu0 0.0
        %1451 = vmatprep.subr.mxu0 0.0
        %1452 = vmatpush1.msra.mxu0 0.0
        %1453 = vmatprep.subr.mxu0 0.0
        %1454 = vmatpush1.msra.mxu0 0.0
        %1455 = vmatprep.subr.mxu0 0.0
        %1456 = vmatpush1.msra.mxu0 0.0
        %1457 = vmatprep.subr.mxu0 0.0
        %1458 = vmatpush1.msra.mxu0 0.0
        %1459 = vmatprep.subr.mxu0 0.0
        %1460 = vmatpush1.msra.mxu0 0.0
        %1461 = vmatprep.subr.mxu0 0.0
        %1462 = vmatpush1.msra.mxu0 0.0
        %1463 = vmatprep.subr.mxu0 0.0
        %1464 = vmatpush1.msra.mxu0 0.0
        %1465 = vmatprep.subr.mxu0 0.0
        %1466 = vmatpush1.msra.mxu0 0.0
        %1467 = vmatprep.subr.mxu0 0.0
        %1468 = vmatpush1.msra.mxu0 0.0
        %1469 = vmatprep.subr.mxu0 0.0
        %1470 = vmatpush1.msra.mxu0 0.0
        %1471 = vmatprep.subr.mxu0 0.0
        %1472 = vmatpush1.msra.mxu0 0.0
        %1473 = vmatprep.subr.mxu0 0.0
        %1474 = vmatpush1.msra.mxu0 0.0
        %1475 = vmatprep.subr.mxu0 0.0
        %1476 = vmatpush1.msra.mxu0 0.0
        %1477 = vmatprep.subr.mxu0 0.0
        %1478 = vmatpush1.msra.mxu0 0.0
        %1479 = vmatprep.subr.mxu0 0.0
        %1480 = vmatpush1.msra.mxu0 0.0
        %1481 = vmatprep.subr.mxu0 0.0
        %1482 = vmatpush1.msra.mxu0 0.0
        %1483 = vmatprep.subr.mxu0 0.0
        %1484 = vmatpush1.msra.mxu0 0.0
        %1485 = vmatprep.subr.mxu0 0.0
        %1486 = vmatpush1.msra.mxu0 0.0
        %1487 = vmatprep.subr.mxu0 0.0
        %1488 = vmatpush1.msra.mxu0 0.0
        %1489 = vmatprep.subr.mxu0 0.0
        %1490 = vmatpush1.msra.mxu0 0.0
        %1491 = vmatprep.subr.mxu0 0.0
        %1492 = vmatpush1.msra.mxu0 0.0
        %1493 = vmatprep.subr.mxu0 0.0
        %1494 = vmatpush1.msra.mxu0 0.0
        %1495 = vmatprep.subr.mxu0 0.0
        %1496 = vmatpush1.msra.mxu0 0.0
        %1497 = vmatprep.subr.mxu0 0.0
        %1498 = vmatpush1.msra.mxu0 0.0
        %1499 = vmatprep.subr.mxu0 0.0
        %1500 = vmatpush1.msra.mxu0 0.0
        %1501 = vmatprep.subr.mxu0 0.0
        %1502 = vmatpush1.msra.mxu0 0.0
        %1503 = vmatprep.subr.mxu0 0.0
        %1504 = vmatpush1.msra.mxu0 0.0
        %1505 = vmatprep.mubr.f32.mxu0 0.0
        %v1506 = vand.u32 %v1203, 4294901760
        %v1507 = vsub.f32 %v1203, %v1506
        %v1508 = vand.u32 %v1507, 4294901760
        %1509 = vmatmul.mubr.f32.gmra.mrb[0].mxu0 %v1508
        %v1510 = vpop.f32.mrb[0].mxu0
        %v1511 = vadd.f32 %v1436, %v1510
        %v1512 = vpop.f32.mrb[0].mxu0
        %1513 = vdwg.mxu0
        %1514 = vmatprep.subr.mxu0 0.0
        %v1515 = vand.u32 %v1145, 4294901760
        %v1516 = vsub.f32 %v1145, %v1515
        %v1517 = vand.u32 %v1516, 4294901760
        %1518 = vmatpush1.msra.mxu0 %v1517
        %1519 = vmatprep.subr.mxu0 0.0
        %v1520 = vand.u32 %v1151, 4294901760
        %v1521 = vsub.f32 %v1151, %v1520
        %v1522 = vand.u32 %v1521, 4294901760
        %1523 = vmatpush1.msra.mxu0 %v1522
        %1524 = vmatprep.subr.mxu0 0.0
        %1525 = vmatpush1.msra.mxu0 0.0
        %1526 = vmatprep.subr.mxu0 0.0
        %1527 = vmatpush1.msra.mxu0 0.0
        %1528 = vmatprep.subr.mxu0 0.0
        %1529 = vmatpush1.msra.mxu0 0.0
        %1530 = vmatprep.subr.mxu0 0.0
        %1531 = vmatpush1.msra.mxu0 0.0
        %1532 = vmatprep.subr.mxu0 0.0
        %1533 = vmatpush1.msra.mxu0 0.0
        %1534 = vmatprep.subr.mxu0 0.0
        %1535 = vmatpush1.msra.mxu0 0.0
        %1536 = vmatprep.subr.mxu0 0.0
        %1537 = vmatpush1.msra.mxu0 0.0
        %1538 = vmatprep.subr.mxu0 0.0
        %1539 = vmatpush1.msra.mxu0 0.0
        %1540 = vmatprep.subr.mxu0 0.0
        %1541 = vmatpush1.msra.mxu0 0.0
        %1542 = vmatprep.subr.mxu0 0.0
        %1543 = vmatpush1.msra.mxu0 0.0
        %1544 = vmatprep.subr.mxu0 0.0
        %1545 = vmatpush1.msra.mxu0 0.0
        %1546 = vmatprep.subr.mxu0 0.0
        %1547 = vmatpush1.msra.mxu0 0.0
        %1548 = vmatprep.subr.mxu0 0.0
        %1549 = vmatpush1.msra.mxu0 0.0
        %1550 = vmatprep.subr.mxu0 0.0
        %1551 = vmatpush1.msra.mxu0 0.0
        %1552 = vmatprep.subr.mxu0 0.0
        %1553 = vmatpush1.msra.mxu0 0.0
        %1554 = vmatprep.subr.mxu0 0.0
        %1555 = vmatpush1.msra.mxu0 0.0
        %1556 = vmatprep.subr.mxu0 0.0
        %1557 = vmatpush1.msra.mxu0 0.0
        %1558 = vmatprep.subr.mxu0 0.0
        %1559 = vmatpush1.msra.mxu0 0.0
        %1560 = vmatprep.subr.mxu0 0.0
        %1561 = vmatpush1.msra.mxu0 0.0
        %1562 = vmatprep.subr.mxu0 0.0
        %1563 = vmatpush1.msra.mxu0 0.0
        %1564 = vmatprep.subr.mxu0 0.0
        %1565 = vmatpush1.msra.mxu0 0.0
        %1566 = vmatprep.subr.mxu0 0.0
        %1567 = vmatpush1.msra.mxu0 0.0
        %1568 = vmatprep.subr.mxu0 0.0
        %1569 = vmatpush1.msra.mxu0 0.0
        %1570 = vmatprep.subr.mxu0 0.0
        %1571 = vmatpush1.msra.mxu0 0.0
        %1572 = vmatprep.subr.mxu0 0.0
        %1573 = vmatpush1.msra.mxu0 0.0
        %1574 = vmatprep.subr.mxu0 0.0
        %1575 = vmatpush1.msra.mxu0 0.0
        %1576 = vmatprep.subr.mxu0 0.0
        %1577 = vmatpush1.msra.mxu0 0.0
        %1578 = vmatprep.subr.mxu0 0.0
        %1579 = vmatpush1.msra.mxu0 0.0
        %1580 = vmatprep.subr.mxu0 0.0
        %1581 = vmatpush1.msra.mxu0 0.0
        %1582 = vmatprep.subr.mxu0 0.0
        %1583 = vmatpush1.msra.mxu0 0.0
        %1584 = vmatprep.mubr.f32.mxu0 0.0
        %v1585 = vand.u32 %v1203, 4294901760
        %1586 = vmatmul.mubr.f32.gmra.mrb[0].mxu0 %v1585
        %v1587 = vpop.f32.mrb[0].mxu0
        %v1588 = vadd.f32 %v1511, %v1587
        %v1589 = vpop.f32.mrb[0].mxu0
        %1590 = vdwg.mxu0
        %1591 = vmatprep.subr.mxu0 0.0
        %v1592 = vand.u32 %v1145, 4294901760
        %1593 = vmatpush1.msra.mxu0 %v1592
        %1594 = vmatprep.subr.mxu0 0.0
        %v1595 = vand.u32 %v1151, 4294901760
        %1596 = vmatpush1.msra.mxu0 %v1595
        %1597 = vmatprep.subr.mxu0 0.0
        %1598 = vmatpush1.msra.mxu0 0.0
        %1599 = vmatprep.subr.mxu0 0.0
        %1600 = vmatpush1.msra.mxu0 0.0
        %1601 = vmatprep.subr.mxu0 0.0
        %1602 = vmatpush1.msra.mxu0 0.0
        %1603 = vmatprep.subr.mxu0 0.0
        %1604 = vmatpush1.msra.mxu0 0.0
        %1605 = vmatprep.subr.mxu0 0.0
        %1606 = vmatpush1.msra.mxu0 0.0
        %1607 = vmatprep.subr.mxu0 0.0
        %1608 = vmatpush1.msra.mxu0 0.0
        %1609 = vmatprep.subr.mxu0 0.0
        %1610 = vmatpush1.msra.mxu0 0.0
        %1611 = vmatprep.subr.mxu0 0.0
        %1612 = vmatpush1.msra.mxu0 0.0
        %1613 = vmatprep.subr.mxu0 0.0
        %1614 = vmatpush1.msra.mxu0 0.0
        %1615 = vmatprep.subr.mxu0 0.0
        %1616 = vmatpush1.msra.mxu0 0.0
        %1617 = vmatprep.subr.mxu0 0.0
        %1618 = vmatpush1.msra.mxu0 0.0
        %1619 = vmatprep.subr.mxu0 0.0
        %1620 = vmatpush1.msra.mxu0 0.0
        %1621 = vmatprep.subr.mxu0 0.0
        %1622 = vmatpush1.msra.mxu0 0.0
        %1623 = vmatprep.subr.mxu0 0.0
        %1624 = vmatpush1.msra.mxu0 0.0
        %1625 = vmatprep.subr.mxu0 0.0
        %1626 = vmatpush1.msra.mxu0 0.0
        %1627 = vmatprep.subr.mxu0 0.0
        %1628 = vmatpush1.msra.mxu0 0.0
        %1629 = vmatprep.subr.mxu0 0.0
        %1630 = vmatpush1.msra.mxu0 0.0
        %1631 = vmatprep.subr.mxu0 0.0
        %1632 = vmatpush1.msra.mxu0 0.0
        %1633 = vmatprep.subr.mxu0 0.0
        %1634 = vmatpush1.msra.mxu0 0.0
        %1635 = vmatprep.subr.mxu0 0.0
        %1636 = vmatpush1.msra.mxu0 0.0
        %1637 = vmatprep.subr.mxu0 0.0
        %1638 = vmatpush1.msra.mxu0 0.0
        %1639 = vmatprep.subr.mxu0 0.0
        %1640 = vmatpush1.msra.mxu0 0.0
        %1641 = vmatprep.subr.mxu0 0.0
        %1642 = vmatpush1.msra.mxu0 0.0
        %1643 = vmatprep.subr.mxu0 0.0
        %1644 = vmatpush1.msra.mxu0 0.0
        %1645 = vmatprep.subr.mxu0 0.0
        %1646 = vmatpush1.msra.mxu0 0.0
        %1647 = vmatprep.subr.mxu0 0.0
        %1648 = vmatpush1.msra.mxu0 0.0
        %1649 = vmatprep.subr.mxu0 0.0
        %1650 = vmatpush1.msra.mxu0 0.0
        %1651 = vmatprep.subr.mxu0 0.0
        %1652 = vmatpush1.msra.mxu0 0.0
        %1653 = vmatprep.subr.mxu0 0.0
        %1654 = vmatpush1.msra.mxu0 0.0
        %1655 = vmatprep.subr.mxu0 0.0
        %1656 = vmatpush1.msra.mxu0 0.0
        %1657 = vmatprep.mubr.f32.mxu0 0.0
        %v1658 = vand.u32 %v1203, 4294901760
        %1659 = vmatmul.mubr.f32.gmra.mrb[0].mxu0 %v1658
        %v1660 = vpop.f32.mrb[0].mxu0
        %v1661 = vadd.f32 %v1588, %v1660
        %v1662 = vpop.f32.mrb[0].mxu0
        %1663 = vdwg.mxu0
        %1664 = vmatprep.subr.mxu0 0.0
        %v1665 = vand.u32 %v1157, 4294901760
        %1666 = vmatpush1.msra.mxu0 %v1665
        %1667 = vmatprep.subr.mxu0 0.0
        %v1668 = vand.u32 %v1163, 4294901760
        %1669 = vmatpush1.msra.mxu0 %v1668
        %1670 = vmatprep.subr.mxu0 0.0
        %1671 = vmatpush1.msra.mxu0 0.0
        %1672 = vmatprep.subr.mxu0 0.0
        %1673 = vmatpush1.msra.mxu0 0.0
        %1674 = vmatprep.subr.mxu0 0.0
        %1675 = vmatpush1.msra.mxu0 0.0
        %1676 = vmatprep.subr.mxu0 0.0
        %1677 = vmatpush1.msra.mxu0 0.0
        %1678 = vmatprep.subr.mxu0 0.0
        %1679 = vmatpush1.msra.mxu0 0.0
        %1680 = vmatprep.subr.mxu0 0.0
        %1681 = vmatpush1.msra.mxu0 0.0
        %1682 = vmatprep.subr.mxu0 0.0
        %1683 = vmatpush1.msra.mxu0 0.0
        %1684 = vmatprep.subr.mxu0 0.0
        %1685 = vmatpush1.msra.mxu0 0.0
        %1686 = vmatprep.subr.mxu0 0.0
        %1687 = vmatpush1.msra.mxu0 0.0
        %1688 = vmatprep.subr.mxu0 0.0
        %1689 = vmatpush1.msra.mxu0 0.0
        %1690 = vmatprep.subr.mxu0 0.0
        %1691 = vmatpush1.msra.mxu0 0.0
        %1692 = vmatprep.subr.mxu0 0.0
        %1693 = vmatpush1.msra.mxu0 0.0
        %1694 = vmatprep.subr.mxu0 0.0
        %1695 = vmatpush1.msra.mxu0 0.0
        %1696 = vmatprep.subr.mxu0 0.0
        %1697 = vmatpush1.msra.mxu0 0.0
        %1698 = vmatprep.subr.mxu0 0.0
        %1699 = vmatpush1.msra.mxu0 0.0
        %1700 = vmatprep.subr.mxu0 0.0
        %1701 = vmatpush1.msra.mxu0 0.0
        %1702 = vmatprep.subr.mxu0 0.0
        %1703 = vmatpush1.msra.mxu0 0.0
        %1704 = vmatprep.subr.mxu0 0.0
        %1705 = vmatpush1.msra.mxu0 0.0
        %1706 = vmatprep.subr.mxu0 0.0
        %1707 = vmatpush1.msra.mxu0 0.0
        %1708 = vmatprep.subr.mxu0 0.0
        %1709 = vmatpush1.msra.mxu0 0.0
        %1710 = vmatprep.subr.mxu0 0.0
        %1711 = vmatpush1.msra.mxu0 0.0
        %1712 = vmatprep.subr.mxu0 0.0
        %1713 = vmatpush1.msra.mxu0 0.0
        %1714 = vmatprep.subr.mxu0 0.0
        %1715 = vmatpush1.msra.mxu0 0.0
        %1716 = vmatprep.subr.mxu0 0.0
        %1717 = vmatpush1.msra.mxu0 0.0
        %1718 = vmatprep.subr.mxu0 0.0
        %1719 = vmatpush1.msra.mxu0 0.0
        %1720 = vmatprep.subr.mxu0 0.0
        %1721 = vmatpush1.msra.mxu0 0.0
        %1722 = vmatprep.subr.mxu0 0.0
        %1723 = vmatpush1.msra.mxu0 0.0
        %1724 = vmatprep.subr.mxu0 0.0
        %1725 = vmatpush1.msra.mxu0 0.0
        %1726 = vmatprep.subr.mxu0 0.0
        %1727 = vmatpush1.msra.mxu0 0.0
        %1728 = vmatprep.subr.mxu0 0.0
        %1729 = vmatpush1.msra.mxu0 0.0
        %1730 = vmatprep.mubr.f32.mxu0 0.0
        %v1731 = vand.u32 %v1203, 4294901760
        %v1732 = vsub.f32 %v1203, %v1731
        %v1733 = vand.u32 %v1732, 4294901760
        %v1734 = vsub.f32 %v1732, %v1733
        %v1735 = vand.u32 %v1734, 4294901760
        %1736 = vmatmul.mubr.f32.gmra.mrb[0].mxu0 %v1735
        %v1737 = vpop.f32.mrb[0].mxu0
        %v1738 = vadd.f32 0.0, %v1737
        %v1739 = vpop.f32.mrb[0].mxu0
        %1740 = vdwg.mxu0
        %1741 = vmatprep.subr.mxu0 0.0
        %v1742 = vand.u32 %v1157, 4294901760
        %v1743 = vsub.f32 %v1157, %v1742
        %v1744 = vand.u32 %v1743, 4294901760
        %v1745 = vsub.f32 %v1743, %v1744
        %v1746 = vand.u32 %v1745, 4294901760
        %1747 = vmatpush1.msra.mxu0 %v1746
        %1748 = vmatprep.subr.mxu0 0.0
        %v1749 = vand.u32 %v1163, 4294901760
        %v1750 = vsub.f32 %v1163, %v1749
        %v1751 = vand.u32 %v1750, 4294901760
        %v1752 = vsub.f32 %v1750, %v1751
        %v1753 = vand.u32 %v1752, 4294901760
        %1754 = vmatpush1.msra.mxu0 %v1753
        %1755 = vmatprep.subr.mxu0 0.0
        %1756 = vmatpush1.msra.mxu0 0.0
        %1757 = vmatprep.subr.mxu0 0.0
        %1758 = vmatpush1.msra.mxu0 0.0
        %1759 = vmatprep.subr.mxu0 0.0
        %1760 = vmatpush1.msra.mxu0 0.0
        %1761 = vmatprep.subr.mxu0 0.0
        %1762 = vmatpush1.msra.mxu0 0.0
        %1763 = vmatprep.subr.mxu0 0.0
        %1764 = vmatpush1.msra.mxu0 0.0
        %1765 = vmatprep.subr.mxu0 0.0
        %1766 = vmatpush1.msra.mxu0 0.0
        %1767 = vmatprep.subr.mxu0 0.0
        %1768 = vmatpush1.msra.mxu0 0.0
        %1769 = vmatprep.subr.mxu0 0.0
        %1770 = vmatpush1.msra.mxu0 0.0
        %1771 = vmatprep.subr.mxu0 0.0
        %1772 = vmatpush1.msra.mxu0 0.0
        %1773 = vmatprep.subr.mxu0 0.0
        %1774 = vmatpush1.msra.mxu0 0.0
        %1775 = vmatprep.subr.mxu0 0.0
        %1776 = vmatpush1.msra.mxu0 0.0
        %1777 = vmatprep.subr.mxu0 0.0
        %1778 = vmatpush1.msra.mxu0 0.0
        %1779 = vmatprep.subr.mxu0 0.0
        %1780 = vmatpush1.msra.mxu0 0.0
        %1781 = vmatprep.subr.mxu0 0.0
        %1782 = vmatpush1.msra.mxu0 0.0
        %1783 = vmatprep.subr.mxu0 0.0
        %1784 = vmatpush1.msra.mxu0 0.0
        %1785 = vmatprep.subr.mxu0 0.0
        %1786 = vmatpush1.msra.mxu0 0.0
        %1787 = vmatprep.subr.mxu0 0.0
        %1788 = vmatpush1.msra.mxu0 0.0
        %1789 = vmatprep.subr.mxu0 0.0
        %1790 = vmatpush1.msra.mxu0 0.0
        %1791 = vmatprep.subr.mxu0 0.0
        %1792 = vmatpush1.msra.mxu0 0.0
        %1793 = vmatprep.subr.mxu0 0.0
        %1794 = vmatpush1.msra.mxu0 0.0
        %1795 = vmatprep.subr.mxu0 0.0
        %1796 = vmatpush1.msra.mxu0 0.0
        %1797 = vmatprep.subr.mxu0 0.0
        %1798 = vmatpush1.msra.mxu0 0.0
        %1799 = vmatprep.subr.mxu0 0.0
        %1800 = vmatpush1.msra.mxu0 0.0
        %1801 = vmatprep.subr.mxu0 0.0
        %1802 = vmatpush1.msra.mxu0 0.0
        %1803 = vmatprep.subr.mxu0 0.0
        %1804 = vmatpush1.msra.mxu0 0.0
        %1805 = vmatprep.subr.mxu0 0.0
        %1806 = vmatpush1.msra.mxu0 0.0
        %1807 = vmatprep.subr.mxu0 0.0
        %1808 = vmatpush1.msra.mxu0 0.0
        %1809 = vmatprep.subr.mxu0 0.0
        %1810 = vmatpush1.msra.mxu0 0.0
        %1811 = vmatprep.subr.mxu0 0.0
        %1812 = vmatpush1.msra.mxu0 0.0
        %1813 = vmatprep.subr.mxu0 0.0
        %1814 = vmatpush1.msra.mxu0 0.0
        %1815 = vmatprep.mubr.f32.mxu0 0.0
        %v1816 = vand.u32 %v1203, 4294901760
        %1817 = vmatmul.mubr.f32.gmra.mrb[0].mxu0 %v1816
        %v1818 = vpop.f32.mrb[0].mxu0
        %v1819 = vadd.f32 %v1738, %v1818
        %v1820 = vpop.f32.mrb[0].mxu0
        %1821 = vdwg.mxu0
        %1822 = vmatprep.subr.mxu0 0.0
        %v1823 = vand.u32 %v1157, 4294901760
        %v1824 = vsub.f32 %v1157, %v1823
        %1825 = vmatpush1.msra.mxu0 %v1824
        %1826 = vmatprep.subr.mxu0 0.0
        %v1827 = vand.u32 %v1163, 4294901760
        %v1828 = vsub.f32 %v1163, %v1827
        %1829 = vmatpush1.msra.mxu0 %v1828
        %1830 = vmatprep.subr.mxu0 0.0
        %1831 = vmatpush1.msra.mxu0 0.0
        %1832 = vmatprep.subr.mxu0 0.0
        %1833 = vmatpush1.msra.mxu0 0.0
        %1834 = vmatprep.subr.mxu0 0.0
        %1835 = vmatpush1.msra.mxu0 0.0
        %1836 = vmatprep.subr.mxu0 0.0
        %1837 = vmatpush1.msra.mxu0 0.0
        %1838 = vmatprep.subr.mxu0 0.0
        %1839 = vmatpush1.msra.mxu0 0.0
        %1840 = vmatprep.subr.mxu0 0.0
        %1841 = vmatpush1.msra.mxu0 0.0
        %1842 = vmatprep.subr.mxu0 0.0
        %1843 = vmatpush1.msra.mxu0 0.0
        %1844 = vmatprep.subr.mxu0 0.0
        %1845 = vmatpush1.msra.mxu0 0.0
        %1846 = vmatprep.subr.mxu0 0.0
        %1847 = vmatpush1.msra.mxu0 0.0
        %1848 = vmatprep.subr.mxu0 0.0
        %1849 = vmatpush1.msra.mxu0 0.0
        %1850 = vmatprep.subr.mxu0 0.0
        %1851 = vmatpush1.msra.mxu0 0.0
        %1852 = vmatprep.subr.mxu0 0.0
        %1853 = vmatpush1.msra.mxu0 0.0
        %1854 = vmatprep.subr.mxu0 0.0
        %1855 = vmatpush1.msra.mxu0 0.0
        %1856 = vmatprep.subr.mxu0 0.0
        %1857 = vmatpush1.msra.mxu0 0.0
        %1858 = vmatprep.subr.mxu0 0.0
        %1859 = vmatpush1.msra.mxu0 0.0
        %1860 = vmatprep.subr.mxu0 0.0
        %1861 = vmatpush1.msra.mxu0 0.0
        %1862 = vmatprep.subr.mxu0 0.0
        %1863 = vmatpush1.msra.mxu0 0.0
        %1864 = vmatprep.subr.mxu0 0.0
        %1865 = vmatpush1.msra.mxu0 0.0
        %1866 = vmatprep.subr.mxu0 0.0
        %1867 = vmatpush1.msra.mxu0 0.0
        %1868 = vmatprep.subr.mxu0 0.0
        %1869 = vmatpush1.msra.mxu0 0.0
        %1870 = vmatprep.subr.mxu0 0.0
        %1871 = vmatpush1.msra.mxu0 0.0
        %1872 = vmatprep.subr.mxu0 0.0
        %1873 = vmatpush1.msra.mxu0 0.0
        %1874 = vmatprep.subr.mxu0 0.0
        %1875 = vmatpush1.msra.mxu0 0.0
        %1876 = vmatprep.subr.mxu0 0.0
        %1877 = vmatpush1.msra.mxu0 0.0
        %1878 = vmatprep.subr.mxu0 0.0
        %1879 = vmatpush1.msra.mxu0 0.0
        %1880 = vmatprep.subr.mxu0 0.0
        %1881 = vmatpush1.msra.mxu0 0.0
        %1882 = vmatprep.subr.mxu0 0.0
        %1883 = vmatpush1.msra.mxu0 0.0
        %1884 = vmatprep.subr.mxu0 0.0
        %1885 = vmatpush1.msra.mxu0 0.0
        %1886 = vmatprep.subr.mxu0 0.0
        %1887 = vmatpush1.msra.mxu0 0.0
        %1888 = vmatprep.subr.mxu0 0.0
        %1889 = vmatpush1.msra.mxu0 0.0
        %1890 = vmatprep.mubr.f32.mxu0 0.0
        %v1891 = vand.u32 %v1203, 4294901760
        %v1892 = vsub.f32 %v1203, %v1891
        %1893 = vmatmul.mubr.f32.gmra.mrb[0].mxu0 %v1892
        %v1894 = vpop.f32.mrb[0].mxu0
        %v1895 = vadd.f32 %v1819, %v1894
        %v1896 = vpop.f32.mrb[0].mxu0
        %1897 = vdwg.mxu0
        %1898 = vmatprep.subr.mxu0 0.0
        %v1899 = vand.u32 %v1157, 4294901760
        %1900 = vmatpush1.msra.mxu0 %v1899
        %1901 = vmatprep.subr.mxu0 0.0
        %v1902 = vand.u32 %v1163, 4294901760
        %1903 = vmatpush1.msra.mxu0 %v1902
        %1904 = vmatprep.subr.mxu0 0.0
        %1905 = vmatpush1.msra.mxu0 0.0
        %1906 = vmatprep.subr.mxu0 0.0
        %1907 = vmatpush1.msra.mxu0 0.0
        %1908 = vmatprep.subr.mxu0 0.0
        %1909 = vmatpush1.msra.mxu0 0.0
        %1910 = vmatprep.subr.mxu0 0.0
        %1911 = vmatpush1.msra.mxu0 0.0
        %1912 = vmatprep.subr.mxu0 0.0
        %1913 = vmatpush1.msra.mxu0 0.0
        %1914 = vmatprep.subr.mxu0 0.0
        %1915 = vmatpush1.msra.mxu0 0.0
        %1916 = vmatprep.subr.mxu0 0.0
        %1917 = vmatpush1.msra.mxu0 0.0
        %1918 = vmatprep.subr.mxu0 0.0
        %1919 = vmatpush1.msra.mxu0 0.0
        %1920 = vmatprep.subr.mxu0 0.0
        %1921 = vmatpush1.msra.mxu0 0.0
        %1922 = vmatprep.subr.mxu0 0.0
        %1923 = vmatpush1.msra.mxu0 0.0
        %1924 = vmatprep.subr.mxu0 0.0
        %1925 = vmatpush1.msra.mxu0 0.0
        %1926 = vmatprep.subr.mxu0 0.0
        %1927 = vmatpush1.msra.mxu0 0.0
        %1928 = vmatprep.subr.mxu0 0.0
        %1929 = vmatpush1.msra.mxu0 0.0
        %1930 = vmatprep.subr.mxu0 0.0
        %1931 = vmatpush1.msra.mxu0 0.0
        %1932 = vmatprep.subr.mxu0 0.0
        %1933 = vmatpush1.msra.mxu0 0.0
        %1934 = vmatprep.subr.mxu0 0.0
        %1935 = vmatpush1.msra.mxu0 0.0
        %1936 = vmatprep.subr.mxu0 0.0
        %1937 = vmatpush1.msra.mxu0 0.0
        %1938 = vmatprep.subr.mxu0 0.0
        %1939 = vmatpush1.msra.mxu0 0.0
        %1940 = vmatprep.subr.mxu0 0.0
        %1941 = vmatpush1.msra.mxu0 0.0
        %1942 = vmatprep.subr.mxu0 0.0
        %1943 = vmatpush1.msra.mxu0 0.0
        %1944 = vmatprep.subr.mxu0 0.0
        %1945 = vmatpush1.msra.mxu0 0.0
        %1946 = vmatprep.subr.mxu0 0.0
        %1947 = vmatpush1.msra.mxu0 0.0
        %1948 = vmatprep.subr.mxu0 0.0
        %1949 = vmatpush1.msra.mxu0 0.0
        %1950 = vmatprep.subr.mxu0 0.0
        %1951 = vmatpush1.msra.mxu0 0.0
        %1952 = vmatprep.subr.mxu0 0.0
        %1953 = vmatpush1.msra.mxu0 0.0
        %1954 = vmatprep.subr.mxu0 0.0
        %1955 = vmatpush1.msra.mxu0 0.0
        %1956 = vmatprep.subr.mxu0 0.0
        %1957 = vmatpush1.msra.mxu0 0.0
        %1958 = vmatprep.subr.mxu0 0.0
        %1959 = vmatpush1.msra.mxu0 0.0
        %1960 = vmatprep.subr.mxu0 0.0
        %1961 = vmatpush1.msra.mxu0 0.0
        %1962 = vmatprep.subr.mxu0 0.0
        %1963 = vmatpush1.msra.mxu0 0.0
        %1964 = vmatprep.mubr.f32.mxu0 0.0
        %v1965 = vand.u32 %v1203, 4294901760
        %v1966 = vsub.f32 %v1203, %v1965
        %v1967 = vand.u32 %v1966, 4294901760
        %1968 = vmatmul.mubr.f32.gmra.mrb[0].mxu0 %v1967
        %v1969 = vpop.f32.mrb[0].mxu0
        %v1970 = vadd.f32 %v1895, %v1969
        %v1971 = vpop.f32.mrb[0].mxu0
        %1972 = vdwg.mxu0
        %1973 = vmatprep.subr.mxu0 0.0
        %v1974 = vand.u32 %v1157, 4294901760
        %v1975 = vsub.f32 %v1157, %v1974
        %v1976 = vand.u32 %v1975, 4294901760
        %1977 = vmatpush1.msra.mxu0 %v1976
        %1978 = vmatprep.subr.mxu0 0.0
        %v1979 = vand.u32 %v1163, 4294901760
        %v1980 = vsub.f32 %v1163, %v1979
        %v1981 = vand.u32 %v1980, 4294901760
        %1982 = vmatpush1.msra.mxu0 %v1981
        %1983 = vmatprep.subr.mxu0 0.0
        %1984 = vmatpush1.msra.mxu0 0.0
        %1985 = vmatprep.subr.mxu0 0.0
        %1986 = vmatpush1.msra.mxu0 0.0
        %1987 = vmatprep.subr.mxu0 0.0
        %1988 = vmatpush1.msra.mxu0 0.0
        %1989 = vmatprep.subr.mxu0 0.0
        %1990 = vmatpush1.msra.mxu0 0.0
        %1991 = vmatprep.subr.mxu0 0.0
        %1992 = vmatpush1.msra.mxu0 0.0
        %1993 = vmatprep.subr.mxu0 0.0
        %1994 = vmatpush1.msra.mxu0 0.0
        %1995 = vmatprep.subr.mxu0 0.0
        %1996 = vmatpush1.msra.mxu0 0.0
        %1997 = vmatprep.subr.mxu0 0.0
        %1998 = vmatpush1.msra.mxu0 0.0
        %1999 = vmatprep.subr.mxu0 0.0
        %2000 = vmatpush1.msra.mxu0 0.0
        %2001 = vmatprep.subr.mxu0 0.0
        %2002 = vmatpush1.msra.mxu0 0.0
        %2003 = vmatprep.subr.mxu0 0.0
        %2004 = vmatpush1.msra.mxu0 0.0
        %2005 = vmatprep.subr.mxu0 0.0
        %2006 = vmatpush1.msra.mxu0 0.0
        %2007 = vmatprep.subr.mxu0 0.0
        %2008 = vmatpush1.msra.mxu0 0.0
        %2009 = vmatprep.subr.mxu0 0.0
        %2010 = vmatpush1.msra.mxu0 0.0
        %2011 = vmatprep.subr.mxu0 0.0
        %2012 = vmatpush1.msra.mxu0 0.0
        %2013 = vmatprep.subr.mxu0 0.0
        %2014 = vmatpush1.msra.mxu0 0.0
        %2015 = vmatprep.subr.mxu0 0.0
        %2016 = vmatpush1.msra.mxu0 0.0
        %2017 = vmatprep.subr.mxu0 0.0
        %2018 = vmatpush1.msra.mxu0 0.0
        %2019 = vmatprep.subr.mxu0 0.0
        %2020 = vmatpush1.msra.mxu0 0.0
        %2021 = vmatprep.subr.mxu0 0.0
        %2022 = vmatpush1.msra.mxu0 0.0
        %2023 = vmatprep.subr.mxu0 0.0
        %2024 = vmatpush1.msra.mxu0 0.0
        %2025 = vmatprep.subr.mxu0 0.0
        %2026 = vmatpush1.msra.mxu0 0.0
        %2027 = vmatprep.subr.mxu0 0.0
        %2028 = vmatpush1.msra.mxu0 0.0
        %2029 = vmatprep.subr.mxu0 0.0
        %2030 = vmatpush1.msra.mxu0 0.0
        %2031 = vmatprep.subr.mxu0 0.0
        %2032 = vmatpush1.msra.mxu0 0.0
        %2033 = vmatprep.subr.mxu0 0.0
        %2034 = vmatpush1.msra.mxu0 0.0
        %2035 = vmatprep.subr.mxu0 0.0
        %2036 = vmatpush1.msra.mxu0 0.0
        %2037 = vmatprep.subr.mxu0 0.0
        %2038 = vmatpush1.msra.mxu0 0.0
        %2039 = vmatprep.subr.mxu0 0.0
        %2040 = vmatpush1.msra.mxu0 0.0
        %2041 = vmatprep.subr.mxu0 0.0
        %2042 = vmatpush1.msra.mxu0 0.0
        %2043 = vmatprep.mubr.f32.mxu0 0.0
        %v2044 = vand.u32 %v1203, 4294901760
        %2045 = vmatmul.mubr.f32.gmra.mrb[0].mxu0 %v2044
        %v2046 = vpop.f32.mrb[0].mxu0
        %v2047 = vadd.f32 %v1970, %v2046
        %v2048 = vpop.f32.mrb[0].mxu0
        %2049 = vdwg.mxu0
        %2050 = vmatprep.subr.mxu0 0.0
        %v2051 = vand.u32 %v1157, 4294901760
        %2052 = vmatpush1.msra.mxu0 %v2051
        %2053 = vmatprep.subr.mxu0 0.0
        %v2054 = vand.u32 %v1163, 4294901760
        %2055 = vmatpush1.msra.mxu0 %v2054
        %2056 = vmatprep.subr.mxu0 0.0
        %2057 = vmatpush1.msra.mxu0 0.0
        %2058 = vmatprep.subr.mxu0 0.0
        %2059 = vmatpush1.msra.mxu0 0.0
        %2060 = vmatprep.subr.mxu0 0.0
        %2061 = vmatpush1.msra.mxu0 0.0
        %2062 = vmatprep.subr.mxu0 0.0
        %2063 = vmatpush1.msra.mxu0 0.0
        %2064 = vmatprep.subr.mxu0 0.0
        %2065 = vmatpush1.msra.mxu0 0.0
        %2066 = vmatprep.subr.mxu0 0.0
        %2067 = vmatpush1.msra.mxu0 0.0
        %2068 = vmatprep.subr.mxu0 0.0
        %2069 = vmatpush1.msra.mxu0 0.0
        %2070 = vmatprep.subr.mxu0 0.0
        %2071 = vmatpush1.msra.mxu0 0.0
        %2072 = vmatprep.subr.mxu0 0.0
        %2073 = vmatpush1.msra.mxu0 0.0
        %2074 = vmatprep.subr.mxu0 0.0
        %2075 = vmatpush1.msra.mxu0 0.0
        %2076 = vmatprep.subr.mxu0 0.0
        %2077 = vmatpush1.msra.mxu0 0.0
        %2078 = vmatprep.subr.mxu0 0.0
        %2079 = vmatpush1.msra.mxu0 0.0
        %2080 = vmatprep.subr.mxu0 0.0
        %2081 = vmatpush1.msra.mxu0 0.0
        %2082 = vmatprep.subr.mxu0 0.0
        %2083 = vmatpush1.msra.mxu0 0.0
        %2084 = vmatprep.subr.mxu0 0.0
        %2085 = vmatpush1.msra.mxu0 0.0
        %2086 = vmatprep.subr.mxu0 0.0
        %2087 = vmatpush1.msra.mxu0 0.0
        %2088 = vmatprep.subr.mxu0 0.0
        %2089 = vmatpush1.msra.mxu0 0.0
        %2090 = vmatprep.subr.mxu0 0.0
        %2091 = vmatpush1.msra.mxu0 0.0
        %2092 = vmatprep.subr.mxu0 0.0
        %2093 = vmatpush1.msra.mxu0 0.0
        %2094 = vmatprep.subr.mxu0 0.0
        %2095 = vmatpush1.msra.mxu0 0.0
        %2096 = vmatprep.subr.mxu0 0.0
        %2097 = vmatpush1.msra.mxu0 0.0
        %2098 = vmatprep.subr.mxu0 0.0
        %2099 = vmatpush1.msra.mxu0 0.0
        %2100 = vmatprep.subr.mxu0 0.0
        %2101 = vmatpush1.msra.mxu0 0.0
        %2102 = vmatprep.subr.mxu0 0.0
        %2103 = vmatpush1.msra.mxu0 0.0
        %2104 = vmatprep.subr.mxu0 0.0
        %2105 = vmatpush1.msra.mxu0 0.0
        %2106 = vmatprep.subr.mxu0 0.0
        %2107 = vmatpush1.msra.mxu0 0.0
        %2108 = vmatprep.subr.mxu0 0.0
        %2109 = vmatpush1.msra.mxu0 0.0
        %2110 = vmatprep.subr.mxu0 0.0
        %2111 = vmatpush1.msra.mxu0 0.0
        %2112 = vmatprep.subr.mxu0 0.0
        %2113 = vmatpush1.msra.mxu0 0.0
        %2114 = vmatprep.subr.mxu0 0.0
        %2115 = vmatpush1.msra.mxu0 0.0
        %2116 = vmatprep.mubr.f32.mxu0 0.0
        %v2117 = vand.u32 %v1203, 4294901760
        %2118 = vmatmul.mubr.f32.gmra.mrb[0].mxu0 %v2117
        %v2119 = vpop.f32.mrb[0].mxu0
        %v2120 = vadd.f32 %v2047, %v2119
        %v2121 = vpop.f32.mrb[0].mxu0
        %2122 = vdwg.mxu0
        %2123 = vmatprep.subr.mxu0 0.0
        %v2124 = vand.u32 %v1169, 4294901760
        %2125 = vmatpush1.msra.mxu0 %v2124
        %2126 = vmatprep.subr.mxu0 0.0
        %v2127 = vand.u32 %v1175, 4294901760
        %2128 = vmatpush1.msra.mxu0 %v2127
        %2129 = vmatprep.subr.mxu0 0.0
        %2130 = vmatpush1.msra.mxu0 0.0
        %2131 = vmatprep.subr.mxu0 0.0
        %2132 = vmatpush1.msra.mxu0 0.0
        %2133 = vmatprep.subr.mxu0 0.0
        %2134 = vmatpush1.msra.mxu0 0.0
        %2135 = vmatprep.subr.mxu0 0.0
        %2136 = vmatpush1.msra.mxu0 0.0
        %2137 = vmatprep.subr.mxu0 0.0
        %2138 = vmatpush1.msra.mxu0 0.0
        %2139 = vmatprep.subr.mxu0 0.0
        %2140 = vmatpush1.msra.mxu0 0.0
        %2141 = vmatprep.subr.mxu0 0.0
        %2142 = vmatpush1.msra.mxu0 0.0
        %2143 = vmatprep.subr.mxu0 0.0
        %2144 = vmatpush1.msra.mxu0 0.0
        %2145 = vmatprep.subr.mxu0 0.0
        %2146 = vmatpush1.msra.mxu0 0.0
        %2147 = vmatprep.subr.mxu0 0.0
        %2148 = vmatpush1.msra.mxu0 0.0
        %2149 = vmatprep.subr.mxu0 0.0
        %2150 = vmatpush1.msra.mxu0 0.0
        %2151 = vmatprep.subr.mxu0 0.0
        %2152 = vmatpush1.msra.mxu0 0.0
        %2153 = vmatprep.subr.mxu0 0.0
        %2154 = vmatpush1.msra.mxu0 0.0
        %2155 = vmatprep.subr.mxu0 0.0
        %2156 = vmatpush1.msra.mxu0 0.0
        %2157 = vmatprep.subr.mxu0 0.0
        %2158 = vmatpush1.msra.mxu0 0.0
        %2159 = vmatprep.subr.mxu0 0.0
        %2160 = vmatpush1.msra.mxu0 0.0
        %2161 = vmatprep.subr.mxu0 0.0
        %2162 = vmatpush1.msra.mxu0 0.0
        %2163 = vmatprep.subr.mxu0 0.0
        %2164 = vmatpush1.msra.mxu0 0.0
        %2165 = vmatprep.subr.mxu0 0.0
        %2166 = vmatpush1.msra.mxu0 0.0
        %2167 = vmatprep.subr.mxu0 0.0
        %2168 = vmatpush1.msra.mxu0 0.0
        %2169 = vmatprep.subr.mxu0 0.0
        %2170 = vmatpush1.msra.mxu0 0.0
        %2171 = vmatprep.subr.mxu0 0.0
        %2172 = vmatpush1.msra.mxu0 0.0
        %2173 = vmatprep.subr.mxu0 0.0
        %2174 = vmatpush1.msra.mxu0 0.0
        %2175 = vmatprep.subr.mxu0 0.0
        %2176 = vmatpush1.msra.mxu0 0.0
        %2177 = vmatprep.subr.mxu0 0.0
        %2178 = vmatpush1.msra.mxu0 0.0
        %2179 = vmatprep.subr.mxu0 0.0
        %2180 = vmatpush1.msra.mxu0 0.0
        %2181 = vmatprep.subr.mxu0 0.0
        %2182 = vmatpush1.msra.mxu0 0.0
        %2183 = vmatprep.subr.mxu0 0.0
        %2184 = vmatpush1.msra.mxu0 0.0
        %2185 = vmatprep.subr.mxu0 0.0
        %2186 = vmatpush1.msra.mxu0 0.0
        %2187 = vmatprep.subr.mxu0 0.0
        %2188 = vmatpush1.msra.mxu0 0.0
        %2189 = vmatprep.mubr.f32.mxu0 0.0
        %v2190 = vand.u32 %v1203, 4294901760
        %v2191 = vsub.f32 %v1203, %v2190
        %v2192 = vand.u32 %v2191, 4294901760
        %v2193 = vsub.f32 %v2191, %v2192
        %v2194 = vand.u32 %v2193, 4294901760
        %2195 = vmatmul.mubr.f32.gmra.mrb[0].mxu0 %v2194
        %v2196 = vpop.f32.mrb[0].mxu0
        %v2197 = vadd.f32 0.0, %v2196
        %v2198 = vpop.f32.mrb[0].mxu0
        %2199 = vdwg.mxu0
        %2200 = vmatprep.subr.mxu0 0.0
        %v2201 = vand.u32 %v1169, 4294901760
        %v2202 = vsub.f32 %v1169, %v2201
        %v2203 = vand.u32 %v2202, 4294901760
        %v2204 = vsub.f32 %v2202, %v2203
        %v2205 = vand.u32 %v2204, 4294901760
        %2206 = vmatpush1.msra.mxu0 %v2205
        %2207 = vmatprep.subr.mxu0 0.0
        %v2208 = vand.u32 %v1175, 4294901760
        %v2209 = vsub.f32 %v1175, %v2208
        %v2210 = vand.u32 %v2209, 4294901760
        %v2211 = vsub.f32 %v2209, %v2210
        %v2212 = vand.u32 %v2211, 4294901760
        %2213 = vmatpush1.msra.mxu0 %v2212
        %2214 = vmatprep.subr.mxu0 0.0
        %2215 = vmatpush1.msra.mxu0 0.0
        %2216 = vmatprep.subr.mxu0 0.0
        %2217 = vmatpush1.msra.mxu0 0.0
        %2218 = vmatprep.subr.mxu0 0.0
        %2219 = vmatpush1.msra.mxu0 0.0
        %2220 = vmatprep.subr.mxu0 0.0
        %2221 = vmatpush1.msra.mxu0 0.0
        %2222 = vmatprep.subr.mxu0 0.0
        %2223 = vmatpush1.msra.mxu0 0.0
        %2224 = vmatprep.subr.mxu0 0.0
        %2225 = vmatpush1.msra.mxu0 0.0
        %2226 = vmatprep.subr.mxu0 0.0
        %2227 = vmatpush1.msra.mxu0 0.0
        %2228 = vmatprep.subr.mxu0 0.0
        %2229 = vmatpush1.msra.mxu0 0.0
        %2230 = vmatprep.subr.mxu0 0.0
        %2231 = vmatpush1.msra.mxu0 0.0
        %2232 = vmatprep.subr.mxu0 0.0
        %2233 = vmatpush1.msra.mxu0 0.0
        %2234 = vmatprep.subr.mxu0 0.0
        %2235 = vmatpush1.msra.mxu0 0.0
        %2236 = vmatprep.subr.mxu0 0.0
        %2237 = vmatpush1.msra.mxu0 0.0
        %2238 = vmatprep.subr.mxu0 0.0
        %2239 = vmatpush1.msra.mxu0 0.0
        %2240 = vmatprep.subr.mxu0 0.0
        %2241 = vmatpush1.msra.mxu0 0.0
        %2242 = vmatprep.subr.mxu0 0.0
        %2243 = vmatpush1.msra.mxu0 0.0
        %2244 = vmatprep.subr.mxu0 0.0
        %2245 = vmatpush1.msra.mxu0 0.0
        %2246 = vmatprep.subr.mxu0 0.0
        %2247 = vmatpush1.msra.mxu0 0.0
        %2248 = vmatprep.subr.mxu0 0.0
        %2249 = vmatpush1.msra.mxu0 0.0
        %2250 = vmatprep.subr.mxu0 0.0
        %2251 = vmatpush1.msra.mxu0 0.0
        %2252 = vmatprep.subr.mxu0 0.0
        %2253 = vmatpush1.msra.mxu0 0.0
        %2254 = vmatprep.subr.mxu0 0.0
        %2255 = vmatpush1.msra.mxu0 0.0
        %2256 = vmatprep.subr.mxu0 0.0
        %2257 = vmatpush1.msra.mxu0 0.0
        %2258 = vmatprep.subr.mxu0 0.0
        %2259 = vmatpush1.msra.mxu0 0.0
        %2260 = vmatprep.subr.mxu0 0.0
        %2261 = vmatpush1.msra.mxu0 0.0
        %2262 = vmatprep.subr.mxu0 0.0
        %2263 = vmatpush1.msra.mxu0 0.0
        %2264 = vmatprep.subr.mxu0 0.0
        %2265 = vmatpush1.msra.mxu0 0.0
        %2266 = vmatprep.subr.mxu0 0.0
        %2267 = vmatpush1.msra.mxu0 0.0
        %2268 = vmatprep.subr.mxu0 0.0
        %2269 = vmatpush1.msra.mxu0 0.0
        %2270 = vmatprep.subr.mxu0 0.0
        %2271 = vmatpush1.msra.mxu0 0.0
        %2272 = vmatprep.subr.mxu0 0.0
        %2273 = vmatpush1.msra.mxu0 0.0
        %2274 = vmatprep.mubr.f32.mxu0 0.0
        %v2275 = vand.u32 %v1203, 4294901760
        %2276 = vmatmul.mubr.f32.gmra.mrb[0].mxu0 %v2275
        %v2277 = vpop.f32.mrb[0].mxu0
        %v2278 = vadd.f32 %v2197, %v2277
        %v2279 = vpop.f32.mrb[0].mxu0
        %2280 = vdwg.mxu0
        %2281 = vmatprep.subr.mxu0 0.0
        %v2282 = vand.u32 %v1169, 4294901760
        %v2283 = vsub.f32 %v1169, %v2282
        %2284 = vmatpush1.msra.mxu0 %v2283
        %2285 = vmatprep.subr.mxu0 0.0
        %v2286 = vand.u32 %v1175, 4294901760
        %v2287 = vsub.f32 %v1175, %v2286
        %2288 = vmatpush1.msra.mxu0 %v2287
        %2289 = vmatprep.subr.mxu0 0.0
        %2290 = vmatpush1.msra.mxu0 0.0
        %2291 = vmatprep.subr.mxu0 0.0
        %2292 = vmatpush1.msra.mxu0 0.0
        %2293 = vmatprep.subr.mxu0 0.0
        %2294 = vmatpush1.msra.mxu0 0.0
        %2295 = vmatprep.subr.mxu0 0.0
        %2296 = vmatpush1.msra.mxu0 0.0
        %2297 = vmatprep.subr.mxu0 0.0
        %2298 = vmatpush1.msra.mxu0 0.0
        %2299 = vmatprep.subr.mxu0 0.0
        %2300 = vmatpush1.msra.mxu0 0.0
        %2301 = vmatprep.subr.mxu0 0.0
        %2302 = vmatpush1.msra.mxu0 0.0
        %2303 = vmatprep.subr.mxu0 0.0
        %2304 = vmatpush1.msra.mxu0 0.0
        %2305 = vmatprep.subr.mxu0 0.0
        %2306 = vmatpush1.msra.mxu0 0.0
        %2307 = vmatprep.subr.mxu0 0.0
        %2308 = vmatpush1.msra.mxu0 0.0
        %2309 = vmatprep.subr.mxu0 0.0
        %2310 = vmatpush1.msra.mxu0 0.0
        %2311 = vmatprep.subr.mxu0 0.0
        %2312 = vmatpush1.msra.mxu0 0.0
        %2313 = vmatprep.subr.mxu0 0.0
        %2314 = vmatpush1.msra.mxu0 0.0
        %2315 = vmatprep.subr.mxu0 0.0
        %2316 = vmatpush1.msra.mxu0 0.0
        %2317 = vmatprep.subr.mxu0 0.0
        %2318 = vmatpush1.msra.mxu0 0.0
        %2319 = vmatprep.subr.mxu0 0.0
        %2320 = vmatpush1.msra.mxu0 0.0
        %2321 = vmatprep.subr.mxu0 0.0
        %2322 = vmatpush1.msra.mxu0 0.0
        %2323 = vmatprep.subr.mxu0 0.0
        %2324 = vmatpush1.msra.mxu0 0.0
        %2325 = vmatprep.subr.mxu0 0.0
        %2326 = vmatpush1.msra.mxu0 0.0
        %2327 = vmatprep.subr.mxu0 0.0
        %2328 = vmatpush1.msra.mxu0 0.0
        %2329 = vmatprep.subr.mxu0 0.0
        %2330 = vmatpush1.msra.mxu0 0.0
        %2331 = vmatprep.subr.mxu0 0.0
        %2332 = vmatpush1.msra.mxu0 0.0
        %2333 = vmatprep.subr.mxu0 0.0
        %2334 = vmatpush1.msra.mxu0 0.0
        %2335 = vmatprep.subr.mxu0 0.0
        %2336 = vmatpush1.msra.mxu0 0.0
        %2337 = vmatprep.subr.mxu0 0.0
        %2338 = vmatpush1.msra.mxu0 0.0
        %2339 = vmatprep.subr.mxu0 0.0
        %2340 = vmatpush1.msra.mxu0 0.0
        %2341 = vmatprep.subr.mxu0 0.0
        %2342 = vmatpush1.msra.mxu0 0.0
        %2343 = vmatprep.subr.mxu0 0.0
        %2344 = vmatpush1.msra.mxu0 0.0
        %2345 = vmatprep.subr.mxu0 0.0
        %2346 = vmatpush1.msra.mxu0 0.0
        %2347 = vmatprep.subr.mxu0 0.0
        %2348 = vmatpush1.msra.mxu0 0.0
        %2349 = vmatprep.mubr.f32.mxu0 0.0
        %v2350 = vand.u32 %v1203, 4294901760
        %v2351 = vsub.f32 %v1203, %v2350
        %2352 = vmatmul.mubr.f32.gmra.mrb[0].mxu0 %v2351
        %v2353 = vpop.f32.mrb[0].mxu0
        %v2354 = vadd.f32 %v2278, %v2353
        %v2355 = vpop.f32.mrb[0].mxu0
        %2356 = vdwg.mxu0
        %2357 = vmatprep.subr.mxu0 0.0
        %v2358 = vand.u32 %v1169, 4294901760
        %2359 = vmatpush1.msra.mxu0 %v2358
        %2360 = vmatprep.subr.mxu0 0.0
        %v2361 = vand.u32 %v1175, 4294901760
        %2362 = vmatpush1.msra.mxu0 %v2361
        %2363 = vmatprep.subr.mxu0 0.0
        %2364 = vmatpush1.msra.mxu0 0.0
        %2365 = vmatprep.subr.mxu0 0.0
        %2366 = vmatpush1.msra.mxu0 0.0
        %2367 = vmatprep.subr.mxu0 0.0
        %2368 = vmatpush1.msra.mxu0 0.0
        %2369 = vmatprep.subr.mxu0 0.0
        %2370 = vmatpush1.msra.mxu0 0.0
        %2371 = vmatprep.subr.mxu0 0.0
        %2372 = vmatpush1.msra.mxu0 0.0
        %2373 = vmatprep.subr.mxu0 0.0
        %2374 = vmatpush1.msra.mxu0 0.0
        %2375 = vmatprep.subr.mxu0 0.0
        %2376 = vmatpush1.msra.mxu0 0.0
        %2377 = vmatprep.subr.mxu0 0.0
        %2378 = vmatpush1.msra.mxu0 0.0
        %2379 = vmatprep.subr.mxu0 0.0
        %2380 = vmatpush1.msra.mxu0 0.0
        %2381 = vmatprep.subr.mxu0 0.0
        %2382 = vmatpush1.msra.mxu0 0.0
        %2383 = vmatprep.subr.mxu0 0.0
        %2384 = vmatpush1.msra.mxu0 0.0
        %2385 = vmatprep.subr.mxu0 0.0
        %2386 = vmatpush1.msra.mxu0 0.0
        %2387 = vmatprep.subr.mxu0 0.0
        %2388 = vmatpush1.msra.mxu0 0.0
        %2389 = vmatprep.subr.mxu0 0.0
        %2390 = vmatpush1.msra.mxu0 0.0
        %2391 = vmatprep.subr.mxu0 0.0
        %2392 = vmatpush1.msra.mxu0 0.0
        %2393 = vmatprep.subr.mxu0 0.0
        %2394 = vmatpush1.msra.mxu0 0.0
        %2395 = vmatprep.subr.mxu0 0.0
        %2396 = vmatpush1.msra.mxu0 0.0
        %2397 = vmatprep.subr.mxu0 0.0
        %2398 = vmatpush1.msra.mxu0 0.0
        %2399 = vmatprep.subr.mxu0 0.0
        %2400 = vmatpush1.msra.mxu0 0.0
        %2401 = vmatprep.subr.mxu0 0.0
        %2402 = vmatpush1.msra.mxu0 0.0
        %2403 = vmatprep.subr.mxu0 0.0
        %2404 = vmatpush1.msra.mxu0 0.0
        %2405 = vmatprep.subr.mxu0 0.0
        %2406 = vmatpush1.msra.mxu0 0.0
        %2407 = vmatprep.subr.mxu0 0.0
        %2408 = vmatpush1.msra.mxu0 0.0
        %2409 = vmatprep.subr.mxu0 0.0
        %2410 = vmatpush1.msra.mxu0 0.0
        %2411 = vmatprep.subr.mxu0 0.0
        %2412 = vmatpush1.msra.mxu0 0.0
        %2413 = vmatprep.subr.mxu0 0.0
        %2414 = vmatpush1.msra.mxu0 0.0
        %2415 = vmatprep.subr.mxu0 0.0
        %2416 = vmatpush1.msra.mxu0 0.0
        %2417 = vmatprep.subr.mxu0 0.0
        %2418 = vmatpush1.msra.mxu0 0.0
        %2419 = vmatprep.subr.mxu0 0.0
        %2420 = vmatpush1.msra.mxu0 0.0
        %2421 = vmatprep.subr.mxu0 0.0
        %2422 = vmatpush1.msra.mxu0 0.0
        %2423 = vmatprep.mubr.f32.mxu0 0.0
        %v2424 = vand.u32 %v1203, 4294901760
        %v2425 = vsub.f32 %v1203, %v2424
        %v2426 = vand.u32 %v2425, 4294901760
        %2427 = vmatmul.mubr.f32.gmra.mrb[0].mxu0 %v2426
        %v2428 = vpop.f32.mrb[0].mxu0
        %v2429 = vadd.f32 %v2354, %v2428
        %v2430 = vpop.f32.mrb[0].mxu0
        %2431 = vdwg.mxu0
        %2432 = vmatprep.subr.mxu0 0.0
        %v2433 = vand.u32 %v1169, 4294901760
        %v2434 = vsub.f32 %v1169, %v2433
        %v2435 = vand.u32 %v2434, 4294901760
        %2436 = vmatpush1.msra.mxu0 %v2435
        %2437 = vmatprep.subr.mxu0 0.0
        %v2438 = vand.u32 %v1175, 4294901760
        %v2439 = vsub.f32 %v1175, %v2438
        %v2440 = vand.u32 %v2439, 4294901760
        %2441 = vmatpush1.msra.mxu0 %v2440
        %2442 = vmatprep.subr.mxu0 0.0
        %2443 = vmatpush1.msra.mxu0 0.0
        %2444 = vmatprep.subr.mxu0 0.0
        %2445 = vmatpush1.msra.mxu0 0.0
        %2446 = vmatprep.subr.mxu0 0.0
        %2447 = vmatpush1.msra.mxu0 0.0
        %2448 = vmatprep.subr.mxu0 0.0
        %2449 = vmatpush1.msra.mxu0 0.0
        %2450 = vmatprep.subr.mxu0 0.0
        %2451 = vmatpush1.msra.mxu0 0.0
        %2452 = vmatprep.subr.mxu0 0.0
        %2453 = vmatpush1.msra.mxu0 0.0
        %2454 = vmatprep.subr.mxu0 0.0
        %2455 = vmatpush1.msra.mxu0 0.0
        %2456 = vmatprep.subr.mxu0 0.0
        %2457 = vmatpush1.msra.mxu0 0.0
        %2458 = vmatprep.subr.mxu0 0.0
        %2459 = vmatpush1.msra.mxu0 0.0
        %2460 = vmatprep.subr.mxu0 0.0
        %2461 = vmatpush1.msra.mxu0 0.0
        %2462 = vmatprep.subr.mxu0 0.0
        %2463 = vmatpush1.msra.mxu0 0.0
        %2464 = vmatprep.subr.mxu0 0.0
        %2465 = vmatpush1.msra.mxu0 0.0
        %2466 = vmatprep.subr.mxu0 0.0
        %2467 = vmatpush1.msra.mxu0 0.0
        %2468 = vmatprep.subr.mxu0 0.0
        %2469 = vmatpush1.msra.mxu0 0.0
        %2470 = vmatprep.subr.mxu0 0.0
        %2471 = vmatpush1.msra.mxu0 0.0
        %2472 = vmatprep.subr.mxu0 0.0
        %2473 = vmatpush1.msra.mxu0 0.0
        %2474 = vmatprep.subr.mxu0 0.0
        %2475 = vmatpush1.msra.mxu0 0.0
        %2476 = vmatprep.subr.mxu0 0.0
        %2477 = vmatpush1.msra.mxu0 0.0
        %2478 = vmatprep.subr.mxu0 0.0
        %2479 = vmatpush1.msra.mxu0 0.0
        %2480 = vmatprep.subr.mxu0 0.0
        %2481 = vmatpush1.msra.mxu0 0.0
        %2482 = vmatprep.subr.mxu0 0.0
        %2483 = vmatpush1.msra.mxu0 0.0
        %2484 = vmatprep.subr.mxu0 0.0
        %2485 = vmatpush1.msra.mxu0 0.0
        %2486 = vmatprep.subr.mxu0 0.0
        %2487 = vmatpush1.msra.mxu0 0.0
        %2488 = vmatprep.subr.mxu0 0.0
        %2489 = vmatpush1.msra.mxu0 0.0
        %2490 = vmatprep.subr.mxu0 0.0
        %2491 = vmatpush1.msra.mxu0 0.0
        %2492 = vmatprep.subr.mxu0 0.0
        %2493 = vmatpush1.msra.mxu0 0.0
        %2494 = vmatprep.subr.mxu0 0.0
        %2495 = vmatpush1.msra.mxu0 0.0
        %2496 = vmatprep.subr.mxu0 0.0
        %2497 = vmatpush1.msra.mxu0 0.0
        %2498 = vmatprep.subr.mxu0 0.0
        %2499 = vmatpush1.msra.mxu0 0.0
        %2500 = vmatprep.subr.mxu0 0.0
        %2501 = vmatpush1.msra.mxu0 0.0
        %2502 = vmatprep.mubr.f32.mxu0 0.0
        %v2503 = vand.u32 %v1203, 4294901760
        %2504 = vmatmul.mubr.f32.gmra.mrb[0].mxu0 %v2503
        %v2505 = vpop.f32.mrb[0].mxu0
        %v2506 = vadd.f32 %v2429, %v2505
        %v2507 = vpop.f32.mrb[0].mxu0
        %2508 = vdwg.mxu0
        %2509 = vmatprep.subr.mxu0 0.0
        %v2510 = vand.u32 %v1169, 4294901760
        %2511 = vmatpush1.msra.mxu0 %v2510
        %2512 = vmatprep.subr.mxu0 0.0
        %v2513 = vand.u32 %v1175, 4294901760
        %2514 = vmatpush1.msra.mxu0 %v2513
        %2515 = vmatprep.subr.mxu0 0.0
        %2516 = vmatpush1.msra.mxu0 0.0
        %2517 = vmatprep.subr.mxu0 0.0
        %2518 = vmatpush1.msra.mxu0 0.0
        %2519 = vmatprep.subr.mxu0 0.0
        %2520 = vmatpush1.msra.mxu0 0.0
        %2521 = vmatprep.subr.mxu0 0.0
        %2522 = vmatpush1.msra.mxu0 0.0
        %2523 = vmatprep.subr.mxu0 0.0
        %2524 = vmatpush1.msra.mxu0 0.0
        %2525 = vmatprep.subr.mxu0 0.0
        %2526 = vmatpush1.msra.mxu0 0.0
        %2527 = vmatprep.subr.mxu0 0.0
        %2528 = vmatpush1.msra.mxu0 0.0
        %2529 = vmatprep.subr.mxu0 0.0
        %2530 = vmatpush1.msra.mxu0 0.0
        %2531 = vmatprep.subr.mxu0 0.0
        %2532 = vmatpush1.msra.mxu0 0.0
        %2533 = vmatprep.subr.mxu0 0.0
        %2534 = vmatpush1.msra.mxu0 0.0
        %2535 = vmatprep.subr.mxu0 0.0
        %2536 = vmatpush1.msra.mxu0 0.0
        %2537 = vmatprep.subr.mxu0 0.0
        %2538 = vmatpush1.msra.mxu0 0.0
        %2539 = vmatprep.subr.mxu0 0.0
        %2540 = vmatpush1.msra.mxu0 0.0
        %2541 = vmatprep.subr.mxu0 0.0
        %2542 = vmatpush1.msra.mxu0 0.0
        %2543 = vmatprep.subr.mxu0 0.0
        %2544 = vmatpush1.msra.mxu0 0.0
        %2545 = vmatprep.subr.mxu0 0.0
        %2546 = vmatpush1.msra.mxu0 0.0
        %2547 = vmatprep.subr.mxu0 0.0
        %2548 = vmatpush1.msra.mxu0 0.0
        %2549 = vmatprep.subr.mxu0 0.0
        %2550 = vmatpush1.msra.mxu0 0.0
        %2551 = vmatprep.subr.mxu0 0.0
        %2552 = vmatpush1.msra.mxu0 0.0
        %2553 = vmatprep.subr.mxu0 0.0
        %2554 = vmatpush1.msra.mxu0 0.0
        %2555 = vmatprep.subr.mxu0 0.0
        %2556 = vmatpush1.msra.mxu0 0.0
        %2557 = vmatprep.subr.mxu0 0.0
        %2558 = vmatpush1.msra.mxu0 0.0
        %2559 = vmatprep.subr.mxu0 0.0
        %2560 = vmatpush1.msra.mxu0 0.0
        %2561 = vmatprep.subr.mxu0 0.0
        %2562 = vmatpush1.msra.mxu0 0.0
        %2563 = vmatprep.subr.mxu0 0.0
        %2564 = vmatpush1.msra.mxu0 0.0
        %2565 = vmatprep.subr.mxu0 0.0
        %2566 = vmatpush1.msra.mxu0 0.0
        %2567 = vmatprep.subr.mxu0 0.0
        %2568 = vmatpush1.msra.mxu0 0.0
        %2569 = vmatprep.subr.mxu0 0.0
        %2570 = vmatpush1.msra.mxu0 0.0
        %2571 = vmatprep.subr.mxu0 0.0
        %2572 = vmatpush1.msra.mxu0 0.0
        %2573 = vmatprep.subr.mxu0 0.0
        %2574 = vmatpush1.msra.mxu0 0.0
        %2575 = vmatprep.mubr.f32.mxu0 0.0
        %v2576 = vand.u32 %v1203, 4294901760
        %2577 = vmatmul.mubr.f32.gmra.mrb[0].mxu0 %v2576
        %v2578 = vpop.f32.mrb[0].mxu0
        %v2579 = vadd.f32 %v2506, %v2578
        %v2580 = vpop.f32.mrb[0].mxu0
        %2581 = vdwg.mxu0
        %2582 = vmatprep.subr.mxu0 0.0
        %v2583 = vand.u32 %v1181, 4294901760
        %2584 = vmatpush1.msra.mxu0 %v2583
        %2585 = vmatprep.subr.mxu0 0.0
        %v2586 = vand.u32 %v1187, 4294901760
        %2587 = vmatpush1.msra.mxu0 %v2586
        %2588 = vmatprep.subr.mxu0 0.0
        %2589 = vmatpush1.msra.mxu0 0.0
        %2590 = vmatprep.subr.mxu0 0.0
        %2591 = vmatpush1.msra.mxu0 0.0
        %2592 = vmatprep.subr.mxu0 0.0
        %2593 = vmatpush1.msra.mxu0 0.0
        %2594 = vmatprep.subr.mxu0 0.0
        %2595 = vmatpush1.msra.mxu0 0.0
        %2596 = vmatprep.subr.mxu0 0.0
        %2597 = vmatpush1.msra.mxu0 0.0
        %2598 = vmatprep.subr.mxu0 0.0
        %2599 = vmatpush1.msra.mxu0 0.0
        %2600 = vmatprep.subr.mxu0 0.0
        %2601 = vmatpush1.msra.mxu0 0.0
        %2602 = vmatprep.subr.mxu0 0.0
        %2603 = vmatpush1.msra.mxu0 0.0
        %2604 = vmatprep.subr.mxu0 0.0
        %2605 = vmatpush1.msra.mxu0 0.0
        %2606 = vmatprep.subr.mxu0 0.0
        %2607 = vmatpush1.msra.mxu0 0.0
        %2608 = vmatprep.subr.mxu0 0.0
        %2609 = vmatpush1.msra.mxu0 0.0
        %2610 = vmatprep.subr.mxu0 0.0
        %2611 = vmatpush1.msra.mxu0 0.0
        %2612 = vmatprep.subr.mxu0 0.0
        %2613 = vmatpush1.msra.mxu0 0.0
        %2614 = vmatprep.subr.mxu0 0.0
        %2615 = vmatpush1.msra.mxu0 0.0
        %2616 = vmatprep.subr.mxu0 0.0
        %2617 = vmatpush1.msra.mxu0 0.0
        %2618 = vmatprep.subr.mxu0 0.0
        %2619 = vmatpush1.msra.mxu0 0.0
        %2620 = vmatprep.subr.mxu0 0.0
        %2621 = vmatpush1.msra.mxu0 0.0
        %2622 = vmatprep.subr.mxu0 0.0
        %2623 = vmatpush1.msra.mxu0 0.0
        %2624 = vmatprep.subr.mxu0 0.0
        %2625 = vmatpush1.msra.mxu0 0.0
        %2626 = vmatprep.subr.mxu0 0.0
        %2627 = vmatpush1.msra.mxu0 0.0
        %2628 = vmatprep.subr.mxu0 0.0
        %2629 = vmatpush1.msra.mxu0 0.0
        %2630 = vmatprep.subr.mxu0 0.0
        %2631 = vmatpush1.msra.mxu0 0.0
        %2632 = vmatprep.subr.mxu0 0.0
        %2633 = vmatpush1.msra.mxu0 0.0
        %2634 = vmatprep.subr.mxu0 0.0
        %2635 = vmatpush1.msra.mxu0 0.0
        %2636 = vmatprep.subr.mxu0 0.0
        %2637 = vmatpush1.msra.mxu0 0.0
        %2638 = vmatprep.subr.mxu0 0.0
        %2639 = vmatpush1.msra.mxu0 0.0
        %2640 = vmatprep.subr.mxu0 0.0
        %2641 = vmatpush1.msra.mxu0 0.0
        %2642 = vmatprep.subr.mxu0 0.0
        %2643 = vmatpush1.msra.mxu0 0.0
        %2644 = vmatprep.subr.mxu0 0.0
        %2645 = vmatpush1.msra.mxu0 0.0
        %2646 = vmatprep.subr.mxu0 0.0
        %2647 = vmatpush1.msra.mxu0 0.0
        %2648 = vmatprep.mubr.f32.mxu0 0.0
        %v2649 = vand.u32 %v1203, 4294901760
        %v2650 = vsub.f32 %v1203, %v2649
        %v2651 = vand.u32 %v2650, 4294901760
        %v2652 = vsub.f32 %v2650, %v2651
        %v2653 = vand.u32 %v2652, 4294901760
        %2654 = vmatmul.mubr.f32.gmra.mrb[0].mxu0 %v2653
        %v2655 = vpop.f32.mrb[0].mxu0
        %v2656 = vadd.f32 0.0, %v2655
        %v2657 = vpop.f32.mrb[0].mxu0
        %2658 = vdwg.mxu0
        %2659 = vmatprep.subr.mxu0 0.0
        %v2660 = vand.u32 %v1181, 4294901760
        %v2661 = vsub.f32 %v1181, %v2660
        %v2662 = vand.u32 %v2661, 4294901760
        %v2663 = vsub.f32 %v2661, %v2662
        %v2664 = vand.u32 %v2663, 4294901760
        %2665 = vmatpush1.msra.mxu0 %v2664
        %2666 = vmatprep.subr.mxu0 0.0
        %v2667 = vand.u32 %v1187, 4294901760
        %v2668 = vsub.f32 %v1187, %v2667
        %v2669 = vand.u32 %v2668, 4294901760
        %v2670 = vsub.f32 %v2668, %v2669
        %v2671 = vand.u32 %v2670, 4294901760
        %2672 = vmatpush1.msra.mxu0 %v2671
        %2673 = vmatprep.subr.mxu0 0.0
        %2674 = vmatpush1.msra.mxu0 0.0
        %2675 = vmatprep.subr.mxu0 0.0
        %2676 = vmatpush1.msra.mxu0 0.0
        %2677 = vmatprep.subr.mxu0 0.0
        %2678 = vmatpush1.msra.mxu0 0.0
        %2679 = vmatprep.subr.mxu0 0.0
        %2680 = vmatpush1.msra.mxu0 0.0
        %2681 = vmatprep.subr.mxu0 0.0
        %2682 = vmatpush1.msra.mxu0 0.0
        %2683 = vmatprep.subr.mxu0 0.0
        %2684 = vmatpush1.msra.mxu0 0.0
        %2685 = vmatprep.subr.mxu0 0.0
        %2686 = vmatpush1.msra.mxu0 0.0
        %2687 = vmatprep.subr.mxu0 0.0
        %2688 = vmatpush1.msra.mxu0 0.0
        %2689 = vmatprep.subr.mxu0 0.0
        %2690 = vmatpush1.msra.mxu0 0.0
        %2691 = vmatprep.subr.mxu0 0.0
        %2692 = vmatpush1.msra.mxu0 0.0
        %2693 = vmatprep.subr.mxu0 0.0
        %2694 = vmatpush1.msra.mxu0 0.0
        %2695 = vmatprep.subr.mxu0 0.0
        %2696 = vmatpush1.msra.mxu0 0.0
        %2697 = vmatprep.subr.mxu0 0.0
        %2698 = vmatpush1.msra.mxu0 0.0
        %2699 = vmatprep.subr.mxu0 0.0
        %2700 = vmatpush1.msra.mxu0 0.0
        %2701 = vmatprep.subr.mxu0 0.0
        %2702 = vmatpush1.msra.mxu0 0.0
        %2703 = vmatprep.subr.mxu0 0.0
        %2704 = vmatpush1.msra.mxu0 0.0
        %2705 = vmatprep.subr.mxu0 0.0
        %2706 = vmatpush1.msra.mxu0 0.0
        %2707 = vmatprep.subr.mxu0 0.0
        %2708 = vmatpush1.msra.mxu0 0.0
        %2709 = vmatprep.subr.mxu0 0.0
        %2710 = vmatpush1.msra.mxu0 0.0
        %2711 = vmatprep.subr.mxu0 0.0
        %2712 = vmatpush1.msra.mxu0 0.0
        %2713 = vmatprep.subr.mxu0 0.0
        %2714 = vmatpush1.msra.mxu0 0.0
        %2715 = vmatprep.subr.mxu0 0.0
        %2716 = vmatpush1.msra.mxu0 0.0
        %2717 = vmatprep.subr.mxu0 0.0
        %2718 = vmatpush1.msra.mxu0 0.0
        %2719 = vmatprep.subr.mxu0 0.0
        %2720 = vmatpush1.msra.mxu0 0.0
        %2721 = vmatprep.subr.mxu0 0.0
        %2722 = vmatpush1.msra.mxu0 0.0
        %2723 = vmatprep.subr.mxu0 0.0
        %2724 = vmatpush1.msra.mxu0 0.0
        %2725 = vmatprep.subr.mxu0 0.0
        %2726 = vmatpush1.msra.mxu0 0.0
        %2727 = vmatprep.subr.mxu0 0.0
        %2728 = vmatpush1.msra.mxu0 0.0
        %2729 = vmatprep.subr.mxu0 0.0
        %2730 = vmatpush1.msra.mxu0 0.0
        %2731 = vmatprep.subr.mxu0 0.0
        %2732 = vmatpush1.msra.mxu0 0.0
        %2733 = vmatprep.mubr.f32.mxu0 0.0
        %v2734 = vand.u32 %v1203, 4294901760
        %2735 = vmatmul.mubr.f32.gmra.mrb[0].mxu0 %v2734
        %v2736 = vpop.f32.mrb[0].mxu0
        %v2737 = vadd.f32 %v2656, %v2736
        %v2738 = vpop.f32.mrb[0].mxu0
        %2739 = vdwg.mxu0
        %2740 = vmatprep.subr.mxu0 0.0
        %v2741 = vand.u32 %v1181, 4294901760
        %v2742 = vsub.f32 %v1181, %v2741
        %2743 = vmatpush1.msra.mxu0 %v2742
        %2744 = vmatprep.subr.mxu0 0.0
        %v2745 = vand.u32 %v1187, 4294901760
        %v2746 = vsub.f32 %v1187, %v2745
        %2747 = vmatpush1.msra.mxu0 %v2746
        %2748 = vmatprep.subr.mxu0 0.0
        %2749 = vmatpush1.msra.mxu0 0.0
        %2750 = vmatprep.subr.mxu0 0.0
        %2751 = vmatpush1.msra.mxu0 0.0
        %2752 = vmatprep.subr.mxu0 0.0
        %2753 = vmatpush1.msra.mxu0 0.0
        %2754 = vmatprep.subr.mxu0 0.0
        %2755 = vmatpush1.msra.mxu0 0.0
        %2756 = vmatprep.subr.mxu0 0.0
        %2757 = vmatpush1.msra.mxu0 0.0
        %2758 = vmatprep.subr.mxu0 0.0
        %2759 = vmatpush1.msra.mxu0 0.0
        %2760 = vmatprep.subr.mxu0 0.0
        %2761 = vmatpush1.msra.mxu0 0.0
        %2762 = vmatprep.subr.mxu0 0.0
        %2763 = vmatpush1.msra.mxu0 0.0
        %2764 = vmatprep.subr.mxu0 0.0
        %2765 = vmatpush1.msra.mxu0 0.0
        %2766 = vmatprep.subr.mxu0 0.0
        %2767 = vmatpush1.msra.mxu0 0.0
        %2768 = vmatprep.subr.mxu0 0.0
        %2769 = vmatpush1.msra.mxu0 0.0
        %2770 = vmatprep.subr.mxu0 0.0
        %2771 = vmatpush1.msra.mxu0 0.0
        %2772 = vmatprep.subr.mxu0 0.0
        %2773 = vmatpush1.msra.mxu0 0.0
        %2774 = vmatprep.subr.mxu0 0.0
        %2775 = vmatpush1.msra.mxu0 0.0
        %2776 = vmatprep.subr.mxu0 0.0
        %2777 = vmatpush1.msra.mxu0 0.0
        %2778 = vmatprep.subr.mxu0 0.0
        %2779 = vmatpush1.msra.mxu0 0.0
        %2780 = vmatprep.subr.mxu0 0.0
        %2781 = vmatpush1.msra.mxu0 0.0
        %2782 = vmatprep.subr.mxu0 0.0
        %2783 = vmatpush1.msra.mxu0 0.0
        %2784 = vmatprep.subr.mxu0 0.0
        %2785 = vmatpush1.msra.mxu0 0.0
        %2786 = vmatprep.subr.mxu0 0.0
        %2787 = vmatpush1.msra.mxu0 0.0
        %2788 = vmatprep.subr.mxu0 0.0
        %2789 = vmatpush1.msra.mxu0 0.0
        %2790 = vmatprep.subr.mxu0 0.0
        %2791 = vmatpush1.msra.mxu0 0.0
        %2792 = vmatprep.subr.mxu0 0.0
        %2793 = vmatpush1.msra.mxu0 0.0
        %2794 = vmatprep.subr.mxu0 0.0
        %2795 = vmatpush1.msra.mxu0 0.0
        %2796 = vmatprep.subr.mxu0 0.0
        %2797 = vmatpush1.msra.mxu0 0.0
        %2798 = vmatprep.subr.mxu0 0.0
        %2799 = vmatpush1.msra.mxu0 0.0
        %2800 = vmatprep.subr.mxu0 0.0
        %2801 = vmatpush1.msra.mxu0 0.0
        %2802 = vmatprep.subr.mxu0 0.0
        %2803 = vmatpush1.msra.mxu0 0.0
        %2804 = vmatprep.subr.mxu0 0.0
        %2805 = vmatpush1.msra.mxu0 0.0
        %2806 = vmatprep.subr.mxu0 0.0
        %2807 = vmatpush1.msra.mxu0 0.0
        %2808 = vmatprep.mubr.f32.mxu0 0.0
        %v2809 = vand.u32 %v1203, 4294901760
        %v2810 = vsub.f32 %v1203, %v2809
        %2811 = vmatmul.mubr.f32.gmra.mrb[0].mxu0 %v2810
        %v2812 = vpop.f32.mrb[0].mxu0
        %v2813 = vadd.f32 %v2737, %v2812
        %v2814 = vpop.f32.mrb[0].mxu0
        %2815 = vdwg.mxu0
        %2816 = vmatprep.subr.mxu0 0.0
        %v2817 = vand.u32 %v1181, 4294901760
        %2818 = vmatpush1.msra.mxu0 %v2817
        %2819 = vmatprep.subr.mxu0 0.0
        %v2820 = vand.u32 %v1187, 4294901760
        %2821 = vmatpush1.msra.mxu0 %v2820
        %2822 = vmatprep.subr.mxu0 0.0
        %2823 = vmatpush1.msra.mxu0 0.0
        %2824 = vmatprep.subr.mxu0 0.0
        %2825 = vmatpush1.msra.mxu0 0.0
        %2826 = vmatprep.subr.mxu0 0.0
        %2827 = vmatpush1.msra.mxu0 0.0
        %2828 = vmatprep.subr.mxu0 0.0
        %2829 = vmatpush1.msra.mxu0 0.0
        %2830 = vmatprep.subr.mxu0 0.0
        %2831 = vmatpush1.msra.mxu0 0.0
        %2832 = vmatprep.subr.mxu0 0.0
        %2833 = vmatpush1.msra.mxu0 0.0
        %2834 = vmatprep.subr.mxu0 0.0
        %2835 = vmatpush1.msra.mxu0 0.0
        %2836 = vmatprep.subr.mxu0 0.0
        %2837 = vmatpush1.msra.mxu0 0.0
        %2838 = vmatprep.subr.mxu0 0.0
        %2839 = vmatpush1.msra.mxu0 0.0
        %2840 = vmatprep.subr.mxu0 0.0
        %2841 = vmatpush1.msra.mxu0 0.0
        %2842 = vmatprep.subr.mxu0 0.0
        %2843 = vmatpush1.msra.mxu0 0.0
        %2844 = vmatprep.subr.mxu0 0.0
        %2845 = vmatpush1.msra.mxu0 0.0
        %2846 = vmatprep.subr.mxu0 0.0
        %2847 = vmatpush1.msra.mxu0 0.0
        %2848 = vmatprep.subr.mxu0 0.0
        %2849 = vmatpush1.msra.mxu0 0.0
        %2850 = vmatprep.subr.mxu0 0.0
        %2851 = vmatpush1.msra.mxu0 0.0
        %2852 = vmatprep.subr.mxu0 0.0
        %2853 = vmatpush1.msra.mxu0 0.0
        %2854 = vmatprep.subr.mxu0 0.0
        %2855 = vmatpush1.msra.mxu0 0.0
        %2856 = vmatprep.subr.mxu0 0.0
        %2857 = vmatpush1.msra.mxu0 0.0
        %2858 = vmatprep.subr.mxu0 0.0
        %2859 = vmatpush1.msra.mxu0 0.0
        %2860 = vmatprep.subr.mxu0 0.0
        %2861 = vmatpush1.msra.mxu0 0.0
        %2862 = vmatprep.subr.mxu0 0.0
        %2863 = vmatpush1.msra.mxu0 0.0
        %2864 = vmatprep.subr.mxu0 0.0
        %2865 = vmatpush1.msra.mxu0 0.0
        %2866 = vmatprep.subr.mxu0 0.0
        %2867 = vmatpush1.msra.mxu0 0.0
        %2868 = vmatprep.subr.mxu0 0.0
        %2869 = vmatpush1.msra.mxu0 0.0
        %2870 = vmatprep.subr.mxu0 0.0
        %2871 = vmatpush1.msra.mxu0 0.0
        %2872 = vmatprep.subr.mxu0 0.0
        %2873 = vmatpush1.msra.mxu0 0.0
        %2874 = vmatprep.subr.mxu0 0.0
        %2875 = vmatpush1.msra.mxu0 0.0
        %2876 = vmatprep.subr.mxu0 0.0
        %2877 = vmatpush1.msra.mxu0 0.0
        %2878 = vmatprep.subr.mxu0 0.0
        %2879 = vmatpush1.msra.mxu0 0.0
        %2880 = vmatprep.subr.mxu0 0.0
        %2881 = vmatpush1.msra.mxu0 0.0
        %2882 = vmatprep.mubr.f32.mxu0 0.0
        %v2883 = vand.u32 %v1203, 4294901760
        %v2884 = vsub.f32 %v1203, %v2883
        %v2885 = vand.u32 %v2884, 4294901760
        %2886 = vmatmul.mubr.f32.gmra.mrb[0].mxu0 %v2885
        %v2887 = vpop.f32.mrb[0].mxu0
        %v2888 = vadd.f32 %v2813, %v2887
        %v2889 = vpop.f32.mrb[0].mxu0
        %2890 = vdwg.mxu0
        %2891 = vmatprep.subr.mxu0 0.0
        %v2892 = vand.u32 %v1181, 4294901760
        %v2893 = vsub.f32 %v1181, %v2892
        %v2894 = vand.u32 %v2893, 4294901760
        %2895 = vmatpush1.msra.mxu0 %v2894
        %2896 = vmatprep.subr.mxu0 0.0
        %v2897 = vand.u32 %v1187, 4294901760
        %v2898 = vsub.f32 %v1187, %v2897
        %v2899 = vand.u32 %v2898, 4294901760
        %2900 = vmatpush1.msra.mxu0 %v2899
        %2901 = vmatprep.subr.mxu0 0.0
        %2902 = vmatpush1.msra.mxu0 0.0
        %2903 = vmatprep.subr.mxu0 0.0
        %2904 = vmatpush1.msra.mxu0 0.0
        %2905 = vmatprep.subr.mxu0 0.0
        %2906 = vmatpush1.msra.mxu0 0.0
        %2907 = vmatprep.subr.mxu0 0.0
        %2908 = vmatpush1.msra.mxu0 0.0
        %2909 = vmatprep.subr.mxu0 0.0
        %2910 = vmatpush1.msra.mxu0 0.0
        %2911 = vmatprep.subr.mxu0 0.0
        %2912 = vmatpush1.msra.mxu0 0.0
        %2913 = vmatprep.subr.mxu0 0.0
        %2914 = vmatpush1.msra.mxu0 0.0
        %2915 = vmatprep.subr.mxu0 0.0
        %2916 = vmatpush1.msra.mxu0 0.0
        %2917 = vmatprep.subr.mxu0 0.0
        %2918 = vmatpush1.msra.mxu0 0.0
        %2919 = vmatprep.subr.mxu0 0.0
        %2920 = vmatpush1.msra.mxu0 0.0
        %2921 = vmatprep.subr.mxu0 0.0
        %2922 = vmatpush1.msra.mxu0 0.0
        %2923 = vmatprep.subr.mxu0 0.0
        %2924 = vmatpush1.msra.mxu0 0.0
        %2925 = vmatprep.subr.mxu0 0.0
        %2926 = vmatpush1.msra.mxu0 0.0
        %2927 = vmatprep.subr.mxu0 0.0
        %2928 = vmatpush1.msra.mxu0 0.0
        %2929 = vmatprep.subr.mxu0 0.0
        %2930 = vmatpush1.msra.mxu0 0.0
        %2931 = vmatprep.subr.mxu0 0.0
        %2932 = vmatpush1.msra.mxu0 0.0
        %2933 = vmatprep.subr.mxu0 0.0
        %2934 = vmatpush1.msra.mxu0 0.0
        %2935 = vmatprep.subr.mxu0 0.0
        %2936 = vmatpush1.msra.mxu0 0.0
        %2937 = vmatprep.subr.mxu0 0.0
        %2938 = vmatpush1.msra.mxu0 0.0
        %2939 = vmatprep.subr.mxu0 0.0
        %2940 = vmatpush1.msra.mxu0 0.0
        %2941 = vmatprep.subr.mxu0 0.0
        %2942 = vmatpush1.msra.mxu0 0.0
        %2943 = vmatprep.subr.mxu0 0.0
        %2944 = vmatpush1.msra.mxu0 0.0
        %2945 = vmatprep.subr.mxu0 0.0
        %2946 = vmatpush1.msra.mxu0 0.0
        %2947 = vmatprep.subr.mxu0 0.0
        %2948 = vmatpush1.msra.mxu0 0.0
        %2949 = vmatprep.subr.mxu0 0.0
        %2950 = vmatpush1.msra.mxu0 0.0
        %2951 = vmatprep.subr.mxu0 0.0
        %2952 = vmatpush1.msra.mxu0 0.0
        %2953 = vmatprep.subr.mxu0 0.0
        %2954 = vmatpush1.msra.mxu0 0.0
        %2955 = vmatprep.subr.mxu0 0.0
        %2956 = vmatpush1.msra.mxu0 0.0
        %2957 = vmatprep.subr.mxu0 0.0
        %2958 = vmatpush1.msra.mxu0 0.0
        %2959 = vmatprep.subr.mxu0 0.0
        %2960 = vmatpush1.msra.mxu0 0.0
        %2961 = vmatprep.mubr.f32.mxu0 0.0
        %v2962 = vand.u32 %v1203, 4294901760
        %2963 = vmatmul.mubr.f32.gmra.mrb[0].mxu0 %v2962
        %v2964 = vpop.f32.mrb[0].mxu0
        %v2965 = vadd.f32 %v2888, %v2964
        %v2966 = vpop.f32.mrb[0].mxu0
        %2967 = vdwg.mxu0
        %2968 = vmatprep.subr.mxu0 0.0
        %v2969 = vand.u32 %v1181, 4294901760
        %2970 = vmatpush1.msra.mxu0 %v2969
        %2971 = vmatprep.subr.mxu0 0.0
        %v2972 = vand.u32 %v1187, 4294901760
        %2973 = vmatpush1.msra.mxu0 %v2972
        %2974 = vmatprep.subr.mxu0 0.0
        %2975 = vmatpush1.msra.mxu0 0.0
        %2976 = vmatprep.subr.mxu0 0.0
        %2977 = vmatpush1.msra.mxu0 0.0
        %2978 = vmatprep.subr.mxu0 0.0
        %2979 = vmatpush1.msra.mxu0 0.0
        %2980 = vmatprep.subr.mxu0 0.0
        %2981 = vmatpush1.msra.mxu0 0.0
        %2982 = vmatprep.subr.mxu0 0.0
        %2983 = vmatpush1.msra.mxu0 0.0
        %2984 = vmatprep.subr.mxu0 0.0
        %2985 = vmatpush1.msra.mxu0 0.0
        %2986 = vmatprep.subr.mxu0 0.0
        %2987 = vmatpush1.msra.mxu0 0.0
        %2988 = vmatprep.subr.mxu0 0.0
        %2989 = vmatpush1.msra.mxu0 0.0
        %2990 = vmatprep.subr.mxu0 0.0
        %2991 = vmatpush1.msra.mxu0 0.0
        %2992 = vmatprep.subr.mxu0 0.0
        %2993 = vmatpush1.msra.mxu0 0.0
        %2994 = vmatprep.subr.mxu0 0.0
        %2995 = vmatpush1.msra.mxu0 0.0
        %2996 = vmatprep.subr.mxu0 0.0
        %2997 = vmatpush1.msra.mxu0 0.0
        %2998 = vmatprep.subr.mxu0 0.0
        %2999 = vmatpush1.msra.mxu0 0.0
        %3000 = vmatprep.subr.mxu0 0.0
        %3001 = vmatpush1.msra.mxu0 0.0
        %3002 = vmatprep.subr.mxu0 0.0
        %3003 = vmatpush1.msra.mxu0 0.0
        %3004 = vmatprep.subr.mxu0 0.0
        %3005 = vmatpush1.msra.mxu0 0.0
        %3006 = vmatprep.subr.mxu0 0.0
        %3007 = vmatpush1.msra.mxu0 0.0
        %3008 = vmatprep.subr.mxu0 0.0
        %3009 = vmatpush1.msra.mxu0 0.0
        %3010 = vmatprep.subr.mxu0 0.0
        %3011 = vmatpush1.msra.mxu0 0.0
        %3012 = vmatprep.subr.mxu0 0.0
        %3013 = vmatpush1.msra.mxu0 0.0
        %3014 = vmatprep.subr.mxu0 0.0
        %3015 = vmatpush1.msra.mxu0 0.0
        %3016 = vmatprep.subr.mxu0 0.0
        %3017 = vmatpush1.msra.mxu0 0.0
        %3018 = vmatprep.subr.mxu0 0.0
        %3019 = vmatpush1.msra.mxu0 0.0
        %3020 = vmatprep.subr.mxu0 0.0
        %3021 = vmatpush1.msra.mxu0 0.0
        %3022 = vmatprep.subr.mxu0 0.0
        %3023 = vmatpush1.msra.mxu0 0.0
        %3024 = vmatprep.subr.mxu0 0.0
        %3025 = vmatpush1.msra.mxu0 0.0
        %3026 = vmatprep.subr.mxu0 0.0
        %3027 = vmatpush1.msra.mxu0 0.0
        %3028 = vmatprep.subr.mxu0 0.0
        %3029 = vmatpush1.msra.mxu0 0.0
        %3030 = vmatprep.subr.mxu0 0.0
        %3031 = vmatpush1.msra.mxu0 0.0
        %3032 = vmatprep.subr.mxu0 0.0
        %3033 = vmatpush1.msra.mxu0 0.0
        %3034 = vmatprep.mubr.f32.mxu0 0.0
        %v3035 = vand.u32 %v1203, 4294901760
        %3036 = vmatmul.mubr.f32.gmra.mrb[0].mxu0 %v3035
        %v3037 = vpop.f32.mrb[0].mxu0
        %v3038 = vadd.f32 %v2965, %v3037
        %v3039 = vpop.f32.mrb[0].mxu0
        %3040 = vdwg.mxu0
        %3041 = vmatprep.subr.mxu0 0.0
        %v3042 = vand.u32 %v1193, 4294901760
        %3043 = vmatpush1.msra.mxu0 %v3042
        %3044 = vmatprep.subr.mxu0 0.0
        %v3045 = vand.u32 %v1199, 4294901760
        %3046 = vmatpush1.msra.mxu0 %v3045
        %3047 = vmatprep.subr.mxu0 0.0
        %3048 = vmatpush1.msra.mxu0 0.0
        %3049 = vmatprep.subr.mxu0 0.0
        %3050 = vmatpush1.msra.mxu0 0.0
        %3051 = vmatprep.subr.mxu0 0.0
        %3052 = vmatpush1.msra.mxu0 0.0
        %3053 = vmatprep.subr.mxu0 0.0
        %3054 = vmatpush1.msra.mxu0 0.0
        %3055 = vmatprep.subr.mxu0 0.0
        %3056 = vmatpush1.msra.mxu0 0.0
        %3057 = vmatprep.subr.mxu0 0.0
        %3058 = vmatpush1.msra.mxu0 0.0
        %3059 = vmatprep.subr.mxu0 0.0
        %3060 = vmatpush1.msra.mxu0 0.0
        %3061 = vmatprep.subr.mxu0 0.0
        %3062 = vmatpush1.msra.mxu0 0.0
        %3063 = vmatprep.subr.mxu0 0.0
        %3064 = vmatpush1.msra.mxu0 0.0
        %3065 = vmatprep.subr.mxu0 0.0
        %3066 = vmatpush1.msra.mxu0 0.0
        %3067 = vmatprep.subr.mxu0 0.0
        %3068 = vmatpush1.msra.mxu0 0.0
        %3069 = vmatprep.subr.mxu0 0.0
        %3070 = vmatpush1.msra.mxu0 0.0
        %3071 = vmatprep.subr.mxu0 0.0
        %3072 = vmatpush1.msra.mxu0 0.0
        %3073 = vmatprep.subr.mxu0 0.0
        %3074 = vmatpush1.msra.mxu0 0.0
        %3075 = vmatprep.subr.mxu0 0.0
        %3076 = vmatpush1.msra.mxu0 0.0
        %3077 = vmatprep.subr.mxu0 0.0
        %3078 = vmatpush1.msra.mxu0 0.0
        %3079 = vmatprep.subr.mxu0 0.0
        %3080 = vmatpush1.msra.mxu0 0.0
        %3081 = vmatprep.subr.mxu0 0.0
        %3082 = vmatpush1.msra.mxu0 0.0
        %3083 = vmatprep.subr.mxu0 0.0
        %3084 = vmatpush1.msra.mxu0 0.0
        %3085 = vmatprep.subr.mxu0 0.0
        %3086 = vmatpush1.msra.mxu0 0.0
        %3087 = vmatprep.subr.mxu0 0.0
        %3088 = vmatpush1.msra.mxu0 0.0
        %3089 = vmatprep.subr.mxu0 0.0
        %3090 = vmatpush1.msra.mxu0 0.0
        %3091 = vmatprep.subr.mxu0 0.0
        %3092 = vmatpush1.msra.mxu0 0.0
        %3093 = vmatprep.subr.mxu0 0.0
        %3094 = vmatpush1.msra.mxu0 0.0
        %3095 = vmatprep.subr.mxu0 0.0
        %3096 = vmatpush1.msra.mxu0 0.0
        %3097 = vmatprep.subr.mxu0 0.0
        %3098 = vmatpush1.msra.mxu0 0.0
        %3099 = vmatprep.subr.mxu0 0.0
        %3100 = vmatpush1.msra.mxu0 0.0
        %3101 = vmatprep.subr.mxu0 0.0
        %3102 = vmatpush1.msra.mxu0 0.0
        %3103 = vmatprep.subr.mxu0 0.0
        %3104 = vmatpush1.msra.mxu0 0.0
        %3105 = vmatprep.subr.mxu0 0.0
        %3106 = vmatpush1.msra.mxu0 0.0
        %3107 = vmatprep.mubr.f32.mxu0 0.0
        %v3108 = vand.u32 %v1203, 4294901760
        %v3109 = vsub.f32 %v1203, %v3108
        %v3110 = vand.u32 %v3109, 4294901760
        %v3111 = vsub.f32 %v3109, %v3110
        %v3112 = vand.u32 %v3111, 4294901760
        %3113 = vmatmul.mubr.f32.gmra.mrb[0].mxu0 %v3112
        %v3114 = vpop.f32.mrb[0].mxu0
        %v3115 = vadd.f32 0.0, %v3114
        %v3116 = vpop.f32.mrb[0].mxu0
        %3117 = vdwg.mxu0
        %3118 = vmatprep.subr.mxu0 0.0
        %v3119 = vand.u32 %v1193, 4294901760
        %v3120 = vsub.f32 %v1193, %v3119
        %v3121 = vand.u32 %v3120, 4294901760
        %v3122 = vsub.f32 %v3120, %v3121
        %v3123 = vand.u32 %v3122, 4294901760
        %3124 = vmatpush1.msra.mxu0 %v3123
        %3125 = vmatprep.subr.mxu0 0.0
        %v3126 = vand.u32 %v1199, 4294901760
        %v3127 = vsub.f32 %v1199, %v3126
        %v3128 = vand.u32 %v3127, 4294901760
        %v3129 = vsub.f32 %v3127, %v3128
        %v3130 = vand.u32 %v3129, 4294901760
        %3131 = vmatpush1.msra.mxu0 %v3130
        %3132 = vmatprep.subr.mxu0 0.0
        %3133 = vmatpush1.msra.mxu0 0.0
        %3134 = vmatprep.subr.mxu0 0.0
        %3135 = vmatpush1.msra.mxu0 0.0
        %3136 = vmatprep.subr.mxu0 0.0
        %3137 = vmatpush1.msra.mxu0 0.0
        %3138 = vmatprep.subr.mxu0 0.0
        %3139 = vmatpush1.msra.mxu0 0.0
        %3140 = vmatprep.subr.mxu0 0.0
        %3141 = vmatpush1.msra.mxu0 0.0
        %3142 = vmatprep.subr.mxu0 0.0
        %3143 = vmatpush1.msra.mxu0 0.0
        %3144 = vmatprep.subr.mxu0 0.0
        %3145 = vmatpush1.msra.mxu0 0.0
        %3146 = vmatprep.subr.mxu0 0.0
        %3147 = vmatpush1.msra.mxu0 0.0
        %3148 = vmatprep.subr.mxu0 0.0
        %3149 = vmatpush1.msra.mxu0 0.0
        %3150 = vmatprep.subr.mxu0 0.0
        %3151 = vmatpush1.msra.mxu0 0.0
        %3152 = vmatprep.subr.mxu0 0.0
        %3153 = vmatpush1.msra.mxu0 0.0
        %3154 = vmatprep.subr.mxu0 0.0
        %3155 = vmatpush1.msra.mxu0 0.0
        %3156 = vmatprep.subr.mxu0 0.0
        %3157 = vmatpush1.msra.mxu0 0.0
        %3158 = vmatprep.subr.mxu0 0.0
        %3159 = vmatpush1.msra.mxu0 0.0
        %3160 = vmatprep.subr.mxu0 0.0
        %3161 = vmatpush1.msra.mxu0 0.0
        %3162 = vmatprep.subr.mxu0 0.0
        %3163 = vmatpush1.msra.mxu0 0.0
        %3164 = vmatprep.subr.mxu0 0.0
        %3165 = vmatpush1.msra.mxu0 0.0
        %3166 = vmatprep.subr.mxu0 0.0
        %3167 = vmatpush1.msra.mxu0 0.0
        %3168 = vmatprep.subr.mxu0 0.0
        %3169 = vmatpush1.msra.mxu0 0.0
        %3170 = vmatprep.subr.mxu0 0.0
        %3171 = vmatpush1.msra.mxu0 0.0
        %3172 = vmatprep.subr.mxu0 0.0
        %3173 = vmatpush1.msra.mxu0 0.0
        %3174 = vmatprep.subr.mxu0 0.0
        %3175 = vmatpush1.msra.mxu0 0.0
        %3176 = vmatprep.subr.mxu0 0.0
        %3177 = vmatpush1.msra.mxu0 0.0
        %3178 = vmatprep.subr.mxu0 0.0
        %3179 = vmatpush1.msra.mxu0 0.0
        %3180 = vmatprep.subr.mxu0 0.0
        %3181 = vmatpush1.msra.mxu0 0.0
        %3182 = vmatprep.subr.mxu0 0.0
        %3183 = vmatpush1.msra.mxu0 0.0
        %3184 = vmatprep.subr.mxu0 0.0
        %3185 = vmatpush1.msra.mxu0 0.0
        %3186 = vmatprep.subr.mxu0 0.0
        %3187 = vmatpush1.msra.mxu0 0.0
        %3188 = vmatprep.subr.mxu0 0.0
        %3189 = vmatpush1.msra.mxu0 0.0
        %3190 = vmatprep.subr.mxu0 0.0
        %3191 = vmatpush1.msra.mxu0 0.0
        %3192 = vmatprep.mubr.f32.mxu0 0.0
        %v3193 = vand.u32 %v1203, 4294901760
        %3194 = vmatmul.mubr.f32.gmra.mrb[0].mxu0 %v3193
        %v3195 = vpop.f32.mrb[0].mxu0
        %v3196 = vadd.f32 %v3115, %v3195
        %v3197 = vpop.f32.mrb[0].mxu0
        %3198 = vdwg.mxu0
        %3199 = vmatprep.subr.mxu0 0.0
        %v3200 = vand.u32 %v1193, 4294901760
        %v3201 = vsub.f32 %v1193, %v3200
        %3202 = vmatpush1.msra.mxu0 %v3201
        %3203 = vmatprep.subr.mxu0 0.0
        %v3204 = vand.u32 %v1199, 4294901760
        %v3205 = vsub.f32 %v1199, %v3204
        %3206 = vmatpush1.msra.mxu0 %v3205
        %3207 = vmatprep.subr.mxu0 0.0
        %3208 = vmatpush1.msra.mxu0 0.0
        %3209 = vmatprep.subr.mxu0 0.0
        %3210 = vmatpush1.msra.mxu0 0.0
        %3211 = vmatprep.subr.mxu0 0.0
        %3212 = vmatpush1.msra.mxu0 0.0
        %3213 = vmatprep.subr.mxu0 0.0
        %3214 = vmatpush1.msra.mxu0 0.0
        %3215 = vmatprep.subr.mxu0 0.0
        %3216 = vmatpush1.msra.mxu0 0.0
        %3217 = vmatprep.subr.mxu0 0.0
        %3218 = vmatpush1.msra.mxu0 0.0
        %3219 = vmatprep.subr.mxu0 0.0
        %3220 = vmatpush1.msra.mxu0 0.0
        %3221 = vmatprep.subr.mxu0 0.0
        %3222 = vmatpush1.msra.mxu0 0.0
        %3223 = vmatprep.subr.mxu0 0.0
        %3224 = vmatpush1.msra.mxu0 0.0
        %3225 = vmatprep.subr.mxu0 0.0
        %3226 = vmatpush1.msra.mxu0 0.0
        %3227 = vmatprep.subr.mxu0 0.0
        %3228 = vmatpush1.msra.mxu0 0.0
        %3229 = vmatprep.subr.mxu0 0.0
        %3230 = vmatpush1.msra.mxu0 0.0
        %3231 = vmatprep.subr.mxu0 0.0
        %3232 = vmatpush1.msra.mxu0 0.0
        %3233 = vmatprep.subr.mxu0 0.0
        %3234 = vmatpush1.msra.mxu0 0.0
        %3235 = vmatprep.subr.mxu0 0.0
        %3236 = vmatpush1.msra.mxu0 0.0
        %3237 = vmatprep.subr.mxu0 0.0
        %3238 = vmatpush1.msra.mxu0 0.0
        %3239 = vmatprep.subr.mxu0 0.0
        %3240 = vmatpush1.msra.mxu0 0.0
        %3241 = vmatprep.subr.mxu0 0.0
        %3242 = vmatpush1.msra.mxu0 0.0
        %3243 = vmatprep.subr.mxu0 0.0
        %3244 = vmatpush1.msra.mxu0 0.0
        %3245 = vmatprep.subr.mxu0 0.0
        %3246 = vmatpush1.msra.mxu0 0.0
        %3247 = vmatprep.subr.mxu0 0.0
        %3248 = vmatpush1.msra.mxu0 0.0
        %3249 = vmatprep.subr.mxu0 0.0
        %3250 = vmatpush1.msra.mxu0 0.0
        %3251 = vmatprep.subr.mxu0 0.0
        %3252 = vmatpush1.msra.mxu0 0.0
        %3253 = vmatprep.subr.mxu0 0.0
        %3254 = vmatpush1.msra.mxu0 0.0
        %3255 = vmatprep.subr.mxu0 0.0
        %3256 = vmatpush1.msra.mxu0 0.0
        %3257 = vmatprep.subr.mxu0 0.0
        %3258 = vmatpush1.msra.mxu0 0.0
        %3259 = vmatprep.subr.mxu0 0.0
        %3260 = vmatpush1.msra.mxu0 0.0
        %3261 = vmatprep.subr.mxu0 0.0
        %3262 = vmatpush1.msra.mxu0 0.0
        %3263 = vmatprep.subr.mxu0 0.0
        %3264 = vmatpush1.msra.mxu0 0.0
        %3265 = vmatprep.subr.mxu0 0.0
        %3266 = vmatpush1.msra.mxu0 0.0
        %3267 = vmatprep.mubr.f32.mxu0 0.0
        %v3268 = vand.u32 %v1203, 4294901760
        %v3269 = vsub.f32 %v1203, %v3268
        %3270 = vmatmul.mubr.f32.gmra.mrb[0].mxu0 %v3269
        %v3271 = vpop.f32.mrb[0].mxu0
        %v3272 = vadd.f32 %v3196, %v3271
        %v3273 = vpop.f32.mrb[0].mxu0
        %3274 = vdwg.mxu0
        %3275 = vmatprep.subr.mxu0 0.0
        %v3276 = vand.u32 %v1193, 4294901760
        %3277 = vmatpush1.msra.mxu0 %v3276
        %3278 = vmatprep.subr.mxu0 0.0
        %v3279 = vand.u32 %v1199, 4294901760
        %3280 = vmatpush1.msra.mxu0 %v3279
        %3281 = vmatprep.subr.mxu0 0.0
        %3282 = vmatpush1.msra.mxu0 0.0
        %3283 = vmatprep.subr.mxu0 0.0
        %3284 = vmatpush1.msra.mxu0 0.0
        %3285 = vmatprep.subr.mxu0 0.0
        %3286 = vmatpush1.msra.mxu0 0.0
        %3287 = vmatprep.subr.mxu0 0.0
        %3288 = vmatpush1.msra.mxu0 0.0
        %3289 = vmatprep.subr.mxu0 0.0
        %3290 = vmatpush1.msra.mxu0 0.0
        %3291 = vmatprep.subr.mxu0 0.0
        %3292 = vmatpush1.msra.mxu0 0.0
        %3293 = vmatprep.subr.mxu0 0.0
        %3294 = vmatpush1.msra.mxu0 0.0
        %3295 = vmatprep.subr.mxu0 0.0
        %3296 = vmatpush1.msra.mxu0 0.0
        %3297 = vmatprep.subr.mxu0 0.0
        %3298 = vmatpush1.msra.mxu0 0.0
        %3299 = vmatprep.subr.mxu0 0.0
        %3300 = vmatpush1.msra.mxu0 0.0
        %3301 = vmatprep.subr.mxu0 0.0
        %3302 = vmatpush1.msra.mxu0 0.0
        %3303 = vmatprep.subr.mxu0 0.0
        %3304 = vmatpush1.msra.mxu0 0.0
        %3305 = vmatprep.subr.mxu0 0.0
        %3306 = vmatpush1.msra.mxu0 0.0
        %3307 = vmatprep.subr.mxu0 0.0
        %3308 = vmatpush1.msra.mxu0 0.0
        %3309 = vmatprep.subr.mxu0 0.0
        %3310 = vmatpush1.msra.mxu0 0.0
        %3311 = vmatprep.subr.mxu0 0.0
        %3312 = vmatpush1.msra.mxu0 0.0
        %3313 = vmatprep.subr.mxu0 0.0
        %3314 = vmatpush1.msra.mxu0 0.0
        %3315 = vmatprep.subr.mxu0 0.0
        %3316 = vmatpush1.msra.mxu0 0.0
        %3317 = vmatprep.subr.mxu0 0.0
        %3318 = vmatpush1.msra.mxu0 0.0
        %3319 = vmatprep.subr.mxu0 0.0
        %3320 = vmatpush1.msra.mxu0 0.0
        %3321 = vmatprep.subr.mxu0 0.0
        %3322 = vmatpush1.msra.mxu0 0.0
        %3323 = vmatprep.subr.mxu0 0.0
        %3324 = vmatpush1.msra.mxu0 0.0
        %3325 = vmatprep.subr.mxu0 0.0
        %3326 = vmatpush1.msra.mxu0 0.0
        %3327 = vmatprep.subr.mxu0 0.0
        %3328 = vmatpush1.msra.mxu0 0.0
        %3329 = vmatprep.subr.mxu0 0.0
        %3330 = vmatpush1.msra.mxu0 0.0
        %3331 = vmatprep.subr.mxu0 0.0
        %3332 = vmatpush1.msra.mxu0 0.0
        %3333 = vmatprep.subr.mxu0 0.0
        %3334 = vmatpush1.msra.mxu0 0.0
        %3335 = vmatprep.subr.mxu0 0.0
        %3336 = vmatpush1.msra.mxu0 0.0
        %3337 = vmatprep.subr.mxu0 0.0
        %3338 = vmatpush1.msra.mxu0 0.0
        %3339 = vmatprep.subr.mxu0 0.0
        %3340 = vmatpush1.msra.mxu0 0.0
        %3341 = vmatprep.mubr.f32.mxu0 0.0
        %v3342 = vand.u32 %v1203, 4294901760
        %v3343 = vsub.f32 %v1203, %v3342
        %v3344 = vand.u32 %v3343, 4294901760
        %3345 = vmatmul.mubr.f32.gmra.mrb[0].mxu0 %v3344
        %v3346 = vpop.f32.mrb[0].mxu0
        %v3347 = vadd.f32 %v3272, %v3346
        %v3348 = vpop.f32.mrb[0].mxu0
        %3349 = vdwg.mxu0
        %3350 = vmatprep.subr.mxu0 0.0
        %v3351 = vand.u32 %v1193, 4294901760
        %v3352 = vsub.f32 %v1193, %v3351
        %v3353 = vand.u32 %v3352, 4294901760
        %3354 = vmatpush1.msra.mxu0 %v3353
        %3355 = vmatprep.subr.mxu0 0.0
        %v3356 = vand.u32 %v1199, 4294901760
        %v3357 = vsub.f32 %v1199, %v3356
        %v3358 = vand.u32 %v3357, 4294901760
        %3359 = vmatpush1.msra.mxu0 %v3358
        %3360 = vmatprep.subr.mxu0 0.0
        %3361 = vmatpush1.msra.mxu0 0.0
        %3362 = vmatprep.subr.mxu0 0.0
        %3363 = vmatpush1.msra.mxu0 0.0
        %3364 = vmatprep.subr.mxu0 0.0
        %3365 = vmatpush1.msra.mxu0 0.0
        %3366 = vmatprep.subr.mxu0 0.0
        %3367 = vmatpush1.msra.mxu0 0.0
        %3368 = vmatprep.subr.mxu0 0.0
        %3369 = vmatpush1.msra.mxu0 0.0
        %3370 = vmatprep.subr.mxu0 0.0
        %3371 = vmatpush1.msra.mxu0 0.0
        %3372 = vmatprep.subr.mxu0 0.0
        %3373 = vmatpush1.msra.mxu0 0.0
        %3374 = vmatprep.subr.mxu0 0.0
        %3375 = vmatpush1.msra.mxu0 0.0
        %3376 = vmatprep.subr.mxu0 0.0
        %3377 = vmatpush1.msra.mxu0 0.0
        %3378 = vmatprep.subr.mxu0 0.0
        %3379 = vmatpush1.msra.mxu0 0.0
        %3380 = vmatprep.subr.mxu0 0.0
        %3381 = vmatpush1.msra.mxu0 0.0
        %3382 = vmatprep.subr.mxu0 0.0
        %3383 = vmatpush1.msra.mxu0 0.0
        %3384 = vmatprep.subr.mxu0 0.0
        %3385 = vmatpush1.msra.mxu0 0.0
        %3386 = vmatprep.subr.mxu0 0.0
        %3387 = vmatpush1.msra.mxu0 0.0
        %3388 = vmatprep.subr.mxu0 0.0
        %3389 = vmatpush1.msra.mxu0 0.0
        %3390 = vmatprep.subr.mxu0 0.0
        %3391 = vmatpush1.msra.mxu0 0.0
        %3392 = vmatprep.subr.mxu0 0.0
        %3393 = vmatpush1.msra.mxu0 0.0
        %3394 = vmatprep.subr.mxu0 0.0
        %3395 = vmatpush1.msra.mxu0 0.0
        %3396 = vmatprep.subr.mxu0 0.0
        %3397 = vmatpush1.msra.mxu0 0.0
        %3398 = vmatprep.subr.mxu0 0.0
        %3399 = vmatpush1.msra.mxu0 0.0
        %3400 = vmatprep.subr.mxu0 0.0
        %3401 = vmatpush1.msra.mxu0 0.0
        %3402 = vmatprep.subr.mxu0 0.0
        %3403 = vmatpush1.msra.mxu0 0.0
        %3404 = vmatprep.subr.mxu0 0.0
        %3405 = vmatpush1.msra.mxu0 0.0
        %3406 = vmatprep.subr.mxu0 0.0
        %3407 = vmatpush1.msra.mxu0 0.0
        %3408 = vmatprep.subr.mxu0 0.0
        %3409 = vmatpush1.msra.mxu0 0.0
        %3410 = vmatprep.subr.mxu0 0.0
        %3411 = vmatpush1.msra.mxu0 0.0
        %3412 = vmatprep.subr.mxu0 0.0
        %3413 = vmatpush1.msra.mxu0 0.0
        %3414 = vmatprep.subr.mxu0 0.0
        %3415 = vmatpush1.msra.mxu0 0.0
        %3416 = vmatprep.subr.mxu0 0.0
        %3417 = vmatpush1.msra.mxu0 0.0
        %3418 = vmatprep.subr.mxu0 0.0
        %3419 = vmatpush1.msra.mxu0 0.0
        %3420 = vmatprep.mubr.f32.mxu0 0.0
        %v3421 = vand.u32 %v1203, 4294901760
        %3422 = vmatmul.mubr.f32.gmra.mrb[0].mxu0 %v3421
        %v3423 = vpop.f32.mrb[0].mxu0
        %v3424 = vadd.f32 %v3347, %v3423
        %v3425 = vpop.f32.mrb[0].mxu0
        %3426 = vdwg.mxu0
        %3427 = vmatprep.subr.mxu0 0.0
        %v3428 = vand.u32 %v1193, 4294901760
        %3429 = vmatpush1.msra.mxu0 %v3428
        %3430 = vmatprep.subr.mxu0 0.0
        %v3431 = vand.u32 %v1199, 4294901760
        %3432 = vmatpush1.msra.mxu0 %v3431
        %3433 = vmatprep.subr.mxu0 0.0
        %3434 = vmatpush1.msra.mxu0 0.0
        %3435 = vmatprep.subr.mxu0 0.0
        %3436 = vmatpush1.msra.mxu0 0.0
        %3437 = vmatprep.subr.mxu0 0.0
        %3438 = vmatpush1.msra.mxu0 0.0
        %3439 = vmatprep.subr.mxu0 0.0
        %3440 = vmatpush1.msra.mxu0 0.0
        %3441 = vmatprep.subr.mxu0 0.0
        %3442 = vmatpush1.msra.mxu0 0.0
        %3443 = vmatprep.subr.mxu0 0.0
        %3444 = vmatpush1.msra.mxu0 0.0
        %3445 = vmatprep.subr.mxu0 0.0
        %3446 = vmatpush1.msra.mxu0 0.0
        %3447 = vmatprep.subr.mxu0 0.0
        %3448 = vmatpush1.msra.mxu0 0.0
        %3449 = vmatprep.subr.mxu0 0.0
        %3450 = vmatpush1.msra.mxu0 0.0
        %3451 = vmatprep.subr.mxu0 0.0
        %3452 = vmatpush1.msra.mxu0 0.0
        %3453 = vmatprep.subr.mxu0 0.0
        %3454 = vmatpush1.msra.mxu0 0.0
        %3455 = vmatprep.subr.mxu0 0.0
        %3456 = vmatpush1.msra.mxu0 0.0
        %3457 = vmatprep.subr.mxu0 0.0
        %3458 = vmatpush1.msra.mxu0 0.0
        %3459 = vmatprep.subr.mxu0 0.0
        %3460 = vmatpush1.msra.mxu0 0.0
        %3461 = vmatprep.subr.mxu0 0.0
        %3462 = vmatpush1.msra.mxu0 0.0
        %3463 = vmatprep.subr.mxu0 0.0
        %3464 = vmatpush1.msra.mxu0 0.0
        %3465 = vmatprep.subr.mxu0 0.0
        %3466 = vmatpush1.msra.mxu0 0.0
        %3467 = vmatprep.subr.mxu0 0.0
        %3468 = vmatpush1.msra.mxu0 0.0
        %3469 = vmatprep.subr.mxu0 0.0
        %3470 = vmatpush1.msra.mxu0 0.0
        %3471 = vmatprep.subr.mxu0 0.0
        %3472 = vmatpush1.msra.mxu0 0.0
        %3473 = vmatprep.subr.mxu0 0.0
        %3474 = vmatpush1.msra.mxu0 0.0
        %3475 = vmatprep.subr.mxu0 0.0
        %3476 = vmatpush1.msra.mxu0 0.0
        %3477 = vmatprep.subr.mxu0 0.0
        %3478 = vmatpush1.msra.mxu0 0.0
        %3479 = vmatprep.subr.mxu0 0.0
        %3480 = vmatpush1.msra.mxu0 0.0
        %3481 = vmatprep.subr.mxu0 0.0
        %3482 = vmatpush1.msra.mxu0 0.0
        %3483 = vmatprep.subr.mxu0 0.0
        %3484 = vmatpush1.msra.mxu0 0.0
        %3485 = vmatprep.subr.mxu0 0.0
        %3486 = vmatpush1.msra.mxu0 0.0
        %3487 = vmatprep.subr.mxu0 0.0
        %3488 = vmatpush1.msra.mxu0 0.0
        %3489 = vmatprep.subr.mxu0 0.0
        %3490 = vmatpush1.msra.mxu0 0.0
        %3491 = vmatprep.subr.mxu0 0.0
        %3492 = vmatpush1.msra.mxu0 0.0
        %3493 = vmatprep.mubr.f32.mxu0 0.0
        %v3494 = vand.u32 %v1203, 4294901760
        %3495 = vmatmul.mubr.f32.gmra.mrb[0].mxu0 %v3494
        %v3496 = vpop.f32.mrb[0].mxu0
        %v3497 = vadd.f32 %v3424, %v3496
        %v3498 = vpop.f32.mrb[0].mxu0
        %3499 = vdwg.mxu0
        %v3500 = vmul.f32 %v1661, %v1661
        %v3501 = vsub.f32 %v2579, %v3500
        %v3502 = vmul.f32 %v3501, 1.0083333
        %v3503 = vmul.f32 %v2120, %v2120
        %v3504 = vsub.f32 %v3038, %v3503
        %v3505 = vmul.f32 %v3504, 1.0083333
        %v3506 = vmul.f32 %v1661, %v2120
        %v3507 = vsub.f32 %v3497, %v3506
        %v3508 = vmul.f32 %v3507, 1.0083333
        %v3509 = vmul.f32 %v1661, 2.0
        %v3510 = vmul.f32 %v3509, %v2120
        %v3511 = vstv %s309
        %v3512 = vadd.f32 %v3510, %v3511
        %v3513 = vmul.f32 %v3508, 2.0
        %v3514 = vstv %s311
        %v3515 = vadd.f32 %v3513, %v3514
        %v3516 = vadd.f32 %v3500, %v3503
        %v3517 = vadd.f32 %v3516, %v3511
        %v3518 = vadd.f32 %v3502, %v3505
        %v3519 = vadd.f32 %v3518, %v3514
        %v3520 = vmul.f32 %v3512, %v3515
        %v3521 = vmul.f32 %v3517, %v3519
        %v3522 = vrcp.pop %v3521
        %v3523 = vmul.f32 %v3520, %v3522
        %v3524 = vlaneseq
        %v3525 = vshrl.u32 %v3524, 7
        %v3526 = vlaneseq
        %v3527 = vand.u32 %v3526, 127
        %vm3528 = vcmp.lt.s32.totalorder %v3525, 6
        %vm3529 = vcmp.lt.s32.totalorder %v3527, 6
        %vm3530 = vmand %vm3528, %vm3529
        %v3531 = vsel %vm3530, %v3523, 0.0
        %3532 = vadd.xlane.f32.xlu0 %v3531
        %v3533 = vpop.xlane.xlu0 %3532
        %v3534 = vrot.slane %v3533, 4
        %v3535 = vadd.f32 %v3533, %v3534
        %v3536 = vrot.slane %v3535, 2
        %v3537 = vadd.f32 %v3535, %v3536
        %v3538 = vrot.slane %v3537, 1
        %v3539 = vadd.f32 %v3537, %v3538
        %s3540 = vtos %v3539
        %v3541 = vstv %s3540
        %vm3542 = vcmask 0
        %3543 = vst.msk [vmem:[%s306] sm:$0x1] %vm3542, %v3541
        %p3544 = scmp.lt.s32.totalorder %s23, 1
        %s3545 = scalar_select %p3544, %s23, 1
        %s3546 = scalar_lea.vmem %s5, %s3545
        // Predicated region
        $region57: #{tpu_custom_call.1} parent=39 // pred_check
          %p3547 = pneg %p156
        $region58: #{tpu_custom_call.1} parent=39 // pred_check_branch
          %3549 = sbr.rel (%p3547) target = $region60
        $region59: #{tpu_custom_call.1} parent=39 // pred_region
          _
        $region60: #{tpu_custom_call.1} parent=39 // pred_fallthru
          _
      $region40: #{tpu_custom_call.1} parent=5 // pred_fallthru
        _
      %p3550 = scmp.le.s32.totalorder 2, %s18
      // Predicated region
      $region61: #{tpu_custom_call.1} parent=5 // pred_check
        %p3551 = pneg %p3550
      $region62: #{tpu_custom_call.1} parent=5 // pred_check_branch
        %3553 = sbr.rel (%p3551) target = $region64
      $region63: #{tpu_custom_call.1} parent=5 // pred_region
        %s3554 = ssub.s32 %s18, 2
        // Predicated region
        $region65: #{tpu_custom_call.1} parent=63 // pred_check
          %p3555 = pneg %p162
        $region66: #{tpu_custom_call.1} parent=63 // pred_check_branch
          %3557 = sbr.rel (%p3555) target = $region68
        $region67: #{tpu_custom_call.1} parent=63 // pred_region
          %p3558 = scmp.lt.s32.totalorder %s24, 1
          %s3559 = scalar_select %p3558, %s24, 1
          %s3560 = scalar_lea.vmem %s5, %s3559
        $region68: #{tpu_custom_call.1} parent=63 // pred_fallthru
          _
      $region64: #{tpu_custom_call.1} parent=5 // pred_fallthru
        _
    $region6: #{tpu_custom_call.1} parent=1 // loop_footer
      %s22 = sadd.s32 1, %s18
    $region7: #{tpu_custom_call.1} parent=1 // loop_footer_branch
      %17 = sbr.rel target = $region3
    $region8: #{tpu_custom_call.1} parent=1 // loop_exit
      _
    %3561 = vsyncpa [#allocation3], 1
    %s3562 = scalar_lea.sflag [#allocation3], 1
    %3563 = vsyncpa %s3562, 1
    %3564 = vsyncpa [#allocation7], 1
    %s3565 = scalar_lea.sflag [#allocation7], 1
    %3566 = vsyncpa %s3565, 1
    %3567 = vsyncpa [#allocation4], 1
    %s3568 = scalar_lea.sflag [#allocation4], 1
    %3569 = vsyncpa %s3568, 1

</llo_original>
